<compile_context>
chip_gen: v5e
topology: v5e:2x2
jax: 0.10.0
libtpu: 0.0.40
codegen_flags: <defaults>
</compile_context>

<pallas_src>
import functools

import jax
import jax.numpy as jnp
import numpy as np
from jax.experimental import pallas as pl
from jax.experimental.pallas import tpu as pltpu

HIDDEN = 128  # hardcoded in Detector_Head: nn.LSTM(input_channel, 128, bidirectional=True)


def _predictor_kernel(x_ref, mask_ref, wih_ref, bih_ref, whh_f_ref, whh_b_ref,
                      wlf_ref, wlb_ref, blin_ref, out_ref, xproj_ref, *, T, B, H):
    """Fused bidirectional masked LSTM + final linear.

    x_ref:     (T*B, C)   bf16 time-major input; rows t*B..t*B+B-1 = timestep t
    mask_ref:  (T*B, H)   f32 {0,1}; row t*B+b = (t < length_b)
    wih_ref:   (C, 8H)    bf16 [W_ih_fwd.T | W_ih_bwd.T], gate order i,f,o,g
    bih_ref:   (1, 8H)    f32  [b_fwd | b_bwd] (each = b_ih + b_hh, perm i,f,o,g)
    whh_*_ref: (H, 4H)    bf16 hidden->gate weights (transposed, perm i,f,o,g)
    wlf_ref:   (2T*B, H)  f32 final-linear fwd rows, pre-broadcast over B
    wlb_ref:   (2T*B, H)  f32 final-linear bwd rows, pre-broadcast over B
    blin_ref:  (1, 2)     f32
    out_ref:   (B, 2)     f32
    xproj_ref: (T*B, 8H)  f32 VMEM scratch for the hoisted input projection
    """
    f32 = jnp.float32
    bf16 = jnp.bfloat16

    # --- Hoisted input projection + biases for BOTH directions: one MXU matmul.
    xproj_ref[...] = (
        jnp.dot(x_ref[...], wih_ref[...], preferred_element_type=f32)
        + bih_ref[...]
    )

    whh_f = whh_f_ref[...]  # loaded once, constant across the unrolled loop
    whh_b = whh_b_ref[...]

    def gate_math(gates, c):
        # gate order i, f, o, g: sigmoids contiguous -> one EUP stream + one tanh
        sig = jax.nn.sigmoid(gates[:, 0:3 * H])
        g = jnp.tanh(gates[:, 3 * H:4 * H])
        i_g = sig[:, 0:H]
        f_g = sig[:, H:2 * H]
        o_g = sig[:, 2 * H:3 * H]
        c_new = f_g * c + i_g * g
        h_new = o_g * jnp.tanh(c_new)
        return h_new, c_new

    zeros = jnp.zeros((B, H), f32)
    h_f, c_f = zeros, zeros
    h_b, c_b = zeros, zeros
    acc0, acc1 = zeros, zeros  # lane-dense VPU accumulators for the two logits

    # --- Fused, fully-unrolled recurrence: fwd at t=s, bwd at t=T-1-s.
    # Masking invariants (lengths are fixed per row):
    #   * fwd mask mf(t) is monotone non-increasing over the loop: once a row
    #     passes its length it never re-enters, so the fwd state need NOT be
    #     frozen — only the per-step output is zeroed (1 mul).
    #   * bwd mask mb(t) is monotone non-decreasing: while mb==0 the bwd state
    #     must stay exactly 0 (it enters from zero state at t=L-1), which
    #     "state *= mb" provides for free; afterwards mb==1 forever (2 muls).
    # TODO(synk): keep W_hh resident in MXU weight regs (pltpu.matmul_push_rhs /
    # matmul_acc_lhs / matmul_pop) if the bundle dump shows per-step re-pushes.
    # TODO(synk): on v7x optionally run fwd/bwd on the two TensorCores
    # (core_map) if the fused loop turns out EUP/MXU-throughput bound.
    # TODO(synk): for T >~ 16 switch to lax.fori_loop(unroll=2..4) and tile the
    # xproj scratch (bf16 / grid over T) to bound vreg/VMEM pressure.
    for s in range(T):
        tf = s
        tb = T - 1 - s

        # Recurrent matmuls only (input projection already in xproj_ref).
        gates_f = (xproj_ref[tf * B:(tf + 1) * B, 0:4 * H]
                   + jnp.dot(h_f.astype(bf16), whh_f, preferred_element_type=f32))
        gates_b = (xproj_ref[tb * B:(tb + 1) * B, 4 * H:8 * H]
                   + jnp.dot(h_b.astype(bf16), whh_b, preferred_element_type=f32))

        hf_new, cf_new = gate_math(gates_f, c_f)
        hb_new, cb_new = gate_math(gates_b, c_b)

        mf = mask_ref[tf * B:(tf + 1) * B, :]  # (B, H) f32, precomputed
        mb = mask_ref[tb * B:(tb + 1) * B, :]

        h_f, c_f = hf_new, cf_new          # fwd state never re-used past L_b
        hf_out = hf_new * mf               # pad_packed padding_value = 0
        h_b = hb_new * mb                  # bwd state held at 0 until t = L_b-1
        c_b = cb_new * mb
        hb_out = h_b

        # Final linear folded into the loop as lane-dense VPU FMAs against
        # pre-broadcast aligned (B, H) weight tiles.
        acc0 = (acc0 + hf_out * wlf_ref[tf * B:(tf + 1) * B, :]
                + hb_out * wlb_ref[tb * B:(tb + 1) * B, :])
        acc1 = (acc1 + hf_out * wlf_ref[(T + tf) * B:(T + tf + 1) * B, :]
                + hb_out * wlb_ref[(T + tb) * B:(T + tb + 1) * B, :])

    out0 = jnp.sum(acc0, axis=-1, keepdims=True)   # (B, 1)
    out1 = jnp.sum(acc1, axis=-1, keepdims=True)   # (B, 1)
    out_ref[...] = jnp.concatenate([out0, out1], axis=-1) + blin_ref[...]


def _perm_ifog(w):
    """Reorder PyTorch LSTM gate blocks (i,f,g,o) -> (i,f,o,g) along axis 0."""
    H = HIDDEN
    return jnp.concatenate([w[0:2 * H], w[3 * H:4 * H], w[2 * H:3 * H]], axis=0)


def predictor_forward(x, lengths, params, max_length):
    """x: (B, T, C) batch-first (like the PyTorch module); lengths: (B,) int32,
    sorted descending (enforce_sorted=True)."""
    B, T, C = x.shape
    H = HIDDEN
    assert T <= max_length
    # pack_padded_sequence(enforce_sorted=True) raises if any length > T.
    try:
        assert int(jnp.max(lengths)) <= T, "length exceeds sequence length"
    except jax.errors.ConcretizationTypeError:
        pass  # traced lengths: skip the eager check

    # Pad the batch to the f32 sublane floor so every per-timestep row slice in
    # the kernel is an aligned (8, 128) tile.  Padded rows get length 0 -> all
    # masks 0 -> they contribute nothing and are sliced off below.
    # TODO(synk): the real throughput lever is stacking many independent
    # (x, lengths) problems along this axis (64-256 rows); here we only pad.
    Bp = max(8, ((B + 7) // 8) * 8)
    lengths = lengths.astype(jnp.int32)
    if Bp != B:
        x = jnp.pad(x, ((0, Bp - B), (0, 0), (0, 0)))
        lengths = jnp.pad(lengths, (0, Bp - B))

    # Time-major, flattened: input projection is one big bf16 MXU matmul.
    x_flat = jnp.transpose(x, (1, 0, 2)).reshape(T * Bp, C).astype(jnp.bfloat16)

    # Per-(t, b) validity mask, lane-dense over H (precomputed, not per-step).
    tvec = jnp.arange(T, dtype=jnp.int32)
    mask = (tvec[:, None] < lengths[None, :]).astype(jnp.float32)          # (T, Bp)
    mask_full = jnp.broadcast_to(mask[:, :, None], (T, Bp, H)).reshape(T * Bp, H)

    # Gate-permuted (i,f,o,g), transposed, bf16 MXU weights.
    wih_cat = jnp.concatenate(
        [_perm_ifog(params["wih_f"]).T, _perm_ifog(params["wih_b"]).T],
        axis=1).astype(jnp.bfloat16)                                       # (C, 8H)
    bih_cat = jnp.concatenate(
        [_perm_ifog(params["b_f"]), _perm_ifog(params["b_b"])]).reshape(1, 8 * H)
    whh_f_t = _perm_ifog(params["whh_f"]).T.astype(jnp.bfloat16)           # (H, 4H)
    whh_b_t = _perm_ifog(params["whh_b"]).T.astype(jnp.bfloat16)           # (H, 4H)

    # Final-linear weight (2, ML*2H): flat index = t*2H + dir*H + h.
    # Per-timestep rows (2T, H) with row = out_j*T + t, pre-broadcast over the
    # batch sublanes so the in-loop FMA loads are plain aligned tiles.
    w_r = params["w_lin"].reshape(2, max_length, 2, H)
    wlf = w_r[:, :T, 0, :].reshape(2 * T, H)                               # fwd half
    wlb = w_r[:, :T, 1, :].reshape(2 * T, H)                               # bwd half
    wlf_b = jnp.broadcast_to(wlf[:, None, :], (2 * T, Bp, H)).reshape(2 * T * Bp, H)
    wlb_b = jnp.broadcast_to(wlb[:, None, :], (2 * T, Bp, H)).reshape(2 * T * Bp, H)
    blin = params["b_lin"].reshape(1, 2)

    kernel = functools.partial(_predictor_kernel, T=T, B=Bp, H=H)
    out_full = pl.pallas_call(
        kernel,
        out_shape=jax.ShapeDtypeStruct((Bp, 2), jnp.float32),
        in_specs=[pl.BlockSpec(memory_space=pltpu.MemorySpace.VMEM)] * 9,
        out_specs=pl.BlockSpec(memory_space=pltpu.MemorySpace.VMEM),
        scratch_shapes=[pltpu.VMEM((T * Bp, 8 * H), jnp.float32)],
    )(x_flat, mask_full, wih_cat, bih_cat, whh_f_t, whh_b_t, wlf_b, wlb_b, blin)
    return out_full[:B]


def predictor_reference(x, lengths, params, max_length):
    """Pure-JAX f32 reference (packed bi-LSTM emulated by masking)."""
    B, T, C = x.shape
    H = HIDDEN

    def run_dir(wih, whh, b, reverse):
        h = jnp.zeros((B, H), jnp.float32)
        c = jnp.zeros((B, H), jnp.float32)
        outs = [None] * T
        order = range(T - 1, -1, -1) if reverse else range(T)
        for t in order:
            xt = x[:, t, :]
            gates = xt @ wih.T + h @ whh.T + b
            i = jax.nn.sigmoid(gates[:, 0:H])
            f = jax.nn.sigmoid(gates[:, H:2 * H])
            g = jnp.tanh(gates[:, 2 * H:3 * H])
            o = jax.nn.sigmoid(gates[:, 3 * H:4 * H])
            c_new = f * c + i * g
            h_new = o * jnp.tanh(c_new)
            mask = (t < lengths)[:, None]
            h = jnp.where(mask, h_new, h)
            c = jnp.where(mask, c_new, c)
            outs[t] = jnp.where(mask, h_new, 0.0)
        return jnp.stack(outs, axis=1)                            # (B, T, H)

    fwd = run_dir(params["wih_f"], params["whh_f"], params["b_f"], False)
    bwd = run_dir(params["wih_b"], params["whh_b"], params["b_b"], True)
    out = jnp.concatenate([fwd, bwd], axis=-1)                    # (B, T, 2H)
    pad = jnp.zeros((B, max_length - T, 2 * H), jnp.float32)
    out = jnp.concatenate([out, pad], axis=1)                     # (B, ML, 2H)
    flat = out.reshape(B, max_length * 2 * H)
    return flat @ params["w_lin"].T + params["b_lin"]


def init_params(key, input_channel, max_length):
    H = HIDDEN
    ks = jax.random.split(key, 12)
    s = 1.0 / np.sqrt(H)

    def u(k, shape, scale):
        return jax.random.uniform(k, shape, jnp.float32, -scale, scale)

    params = {
        "wih_f": u(ks[0], (4 * H, input_channel), s),
        "whh_f": u(ks[1], (4 * H, H), s),
        "b_f":   u(ks[2], (4 * H,), s) + u(ks[3], (4 * H,), s),   # b_ih + b_hh
        "wih_b": u(ks[4], (4 * H, input_channel), s),
        "whh_b": u(ks[5], (4 * H, H), s),
        "b_b":   u(ks[6], (4 * H,), s) + u(ks[7], (4 * H,), s),
    }
    s_lin = 1.0 / np.sqrt(max_length * 2 * H)
    params["w_lin"] = u(ks[8], (2, max_length * 2 * H), s_lin)
    params["b_lin"] = u(ks[9], (2,), s_lin)
    return params


if __name__ == "__main__":
    B, C, ML = 2, 32, 8          # small: batch=2, input_channel=32, max_length=8
    T = 8                        # input sequence length (== max(lengths))
    key = jax.random.PRNGKey(0)
    k_p, k_x = jax.random.split(key)

    params = init_params(k_p, C, ML)
    x = jax.random.normal(k_x, (B, T, C), jnp.float32)
    lengths = jnp.array([8, 5], dtype=jnp.int32)   # sorted descending (enforce_sorted=True)

    out = predictor_forward(x, lengths, params, ML)
    out = jax.block_until_ready(out)
    assert out.shape == (B, 2), out.shape

    ref = jax.block_until_ready(predictor_reference(x, lengths, params, ML))
    # Tolerance sized for bf16 MXU operands (f32 accumulation, f32 gate math).
    np.testing.assert_allclose(np.asarray(out), np.asarray(ref), rtol=5e-2, atol=1e-2)

    print("KERNEL_OK")
</pallas_src>

<mosaic_0001>
module attributes {stable_mosaic.version = 11 : i64} {
  func.func @_predictor_kernel(%arg0: memref<64x32xbf16, #tpu.memory_space<vmem>>, %arg1: memref<64x128xf32, #tpu.memory_space<vmem>>, %arg2: memref<32x1024xbf16, #tpu.memory_space<vmem>>, %arg3: memref<1x1024xf32, #tpu.memory_space<vmem>>, %arg4: memref<128x512xbf16, #tpu.memory_space<vmem>>, %arg5: memref<128x512xbf16, #tpu.memory_space<vmem>>, %arg6: memref<128x128xf32, #tpu.memory_space<vmem>>, %arg7: memref<128x128xf32, #tpu.memory_space<vmem>>, %arg8: memref<1x2xf32, #tpu.memory_space<vmem>>, %arg9: memref<8x2xf32, #tpu.memory_space<vmem>>, %arg10: memref<64x1024xf32, #tpu.memory_space<vmem>>) attributes {dimension_semantics = [], scalar_prefetch = 0 : i64, scratch_operands = 1 : i64, tpu.core_type = #tpu.core_type<tc>} {
    %c0 = arith.constant 0 : index
    %c0_0 = arith.constant 0 : index
    %0 = vector.load %arg0[%c0, %c0_0] : memref<64x32xbf16, #tpu.memory_space<vmem>>, vector<64x32xbf16>
    %c0_1 = arith.constant 0 : index
    %c0_2 = arith.constant 0 : index
    %1 = vector.load %arg2[%c0_1, %c0_2] : memref<32x1024xbf16, #tpu.memory_space<vmem>>, vector<32x1024xbf16>
    %cst = arith.constant dense<0.000000e+00> : vector<64x1024xf32>
    %2 = tpu.matmul %0, %1, %cst {dimension_numbers = #tpu.dot_dimension_numbers<[1], [0], [0], [1], [0, 0, 1, 1], [], []>} : vector<64x32xbf16>, vector<32x1024xbf16>, vector<64x1024xf32> -> vector<64x1024xf32>
    %c0_3 = arith.constant 0 : index
    %c0_4 = arith.constant 0 : index
    %3 = vector.load %arg3[%c0_3, %c0_4] : memref<1x1024xf32, #tpu.memory_space<vmem>>, vector<1x1024xf32>
    %4 = vector.broadcast %3 : vector<1x1024xf32> to vector<64x1024xf32>
    %5 = arith.addf %2, %4 : vector<64x1024xf32>
    %c0_5 = arith.constant 0 : index
    %c0_6 = arith.constant 0 : index
    %6 = vector.load %arg10[%c0_5, %c0_6] : memref<64x1024xf32, #tpu.memory_space<vmem>>, vector<64x1024xf32>
    tpu.vector_store %arg10[%c0_5, %c0_6], %5 {strides = array<i32>} : memref<64x1024xf32, #tpu.memory_space<vmem>>, vector<64x1024xf32>,
    %c0_7 = arith.constant 0 : index
    %c0_8 = arith.constant 0 : index
    %7 = vector.load %arg4[%c0_7, %c0_8] : memref<128x512xbf16, #tpu.memory_space<vmem>>, vector<128x512xbf16>
    %c0_9 = arith.constant 0 : index
    %c0_10 = arith.constant 0 : index
    %8 = vector.load %arg5[%c0_9, %c0_10] : memref<128x512xbf16, #tpu.memory_space<vmem>>, vector<128x512xbf16>
    %cst_11 = arith.constant 0.000000e+00 : f32
    %9 = vector.broadcast %cst_11 : f32 to vector<8x128xf32>
    %c0_12 = arith.constant 0 : index
    %c0_13 = arith.constant 0 : index
    %10 = vector.load %arg10[%c0_12, %c0_13] : memref<64x1024xf32, #tpu.memory_space<vmem>>, vector<8x512xf32>
    %11 = arith.truncf %9 : vector<8x128xf32> to vector<8x128xbf16>
    %cst_14 = arith.constant dense<0.000000e+00> : vector<8x512xf32>
    %12 = tpu.matmul %11, %7, %cst_14 {dimension_numbers = #tpu.dot_dimension_numbers<[1], [0], [0], [1], [0, 0, 1, 1], [], []>} : vector<8x128xbf16>, vector<128x512xbf16>, vector<8x512xf32> -> vector<8x512xf32>
    %13 = arith.addf %10, %12 : vector<8x512xf32>
    %c56 = arith.constant 56 : index
    %c512 = arith.constant 512 : index
    %14 = vector.load %arg10[%c56, %c512] : memref<64x1024xf32, #tpu.memory_space<vmem>>, vector<8x512xf32>
    %15 = arith.truncf %9 : vector<8x128xf32> to vector<8x128xbf16>
    %cst_15 = arith.constant dense<0.000000e+00> : vector<8x512xf32>
    %16 = tpu.matmul %15, %8, %cst_15 {dimension_numbers = #tpu.dot_dimension_numbers<[1], [0], [0], [1], [0, 0, 1, 1], [], []>} : vector<8x128xbf16>, vector<128x512xbf16>, vector<8x512xf32> -> vector<8x512xf32>
    %17 = arith.addf %14, %16 : vector<8x512xf32>
    %18 = vector.extract_strided_slice %13 {offsets = [0, 0], sizes = [8, 384], strides = [1, 1]} : vector<8x512xf32> to vector<8x384xf32>
    %19 = arith.negf %18 : vector<8x384xf32>
    %20 = math.exp %19 : vector<8x384xf32>
    %cst_16 = arith.constant 1.000000e+00 : f32
    %21 = vector.broadcast %cst_16 : f32 to vector<8x384xf32>
    %22 = arith.addf %21, %20 : vector<8x384xf32>
    %23 = arith.divf %21, %22 : vector<8x384xf32>
    %24 = vector.extract_strided_slice %13 {offsets = [0, 384], sizes = [8, 128], strides = [1, 1]} : vector<8x512xf32> to vector<8x128xf32>
    %25 = math.tanh %24 : vector<8x128xf32>
    %26 = vector.extract_strided_slice %23 {offsets = [0, 0], sizes = [8, 128], strides = [1, 1]} : vector<8x384xf32> to vector<8x128xf32>
    %27 = vector.extract_strided_slice %23 {offsets = [0, 128], sizes = [8, 128], strides = [1, 1]} : vector<8x384xf32> to vector<8x128xf32>
    %28 = vector.extract_strided_slice %23 {offsets = [0, 256], sizes = [8, 128], strides = [1, 1]} : vector<8x384xf32> to vector<8x128xf32>
    %29 = arith.mulf %27, %9 : vector<8x128xf32>
    %30 = arith.mulf %26, %25 : vector<8x128xf32>
    %31 = arith.addf %29, %30 : vector<8x128xf32>
    %32 = math.tanh %31 : vector<8x128xf32>
    %33 = arith.mulf %28, %32 : vector<8x128xf32>
    %34 = vector.extract_strided_slice %17 {offsets = [0, 0], sizes = [8, 384], strides = [1, 1]} : vector<8x512xf32> to vector<8x384xf32>
    %35 = arith.negf %34 : vector<8x384xf32>
    %36 = math.exp %35 : vector<8x384xf32>
    %cst_17 = arith.constant 1.000000e+00 : f32
    %37 = vector.broadcast %cst_17 : f32 to vector<8x384xf32>
    %38 = arith.addf %37, %36 : vector<8x384xf32>
    %39 = arith.divf %37, %38 : vector<8x384xf32>
    %40 = vector.extract_strided_slice %17 {offsets = [0, 384], sizes = [8, 128], strides = [1, 1]} : vector<8x512xf32> to vector<8x128xf32>
    %41 = math.tanh %40 : vector<8x128xf32>
    %42 = vector.extract_strided_slice %39 {offsets = [0, 0], sizes = [8, 128], strides = [1, 1]} : vector<8x384xf32> to vector<8x128xf32>
    %43 = vector.extract_strided_slice %39 {offsets = [0, 128], sizes = [8, 128], strides = [1, 1]} : vector<8x384xf32> to vector<8x128xf32>
    %44 = vector.extract_strided_slice %39 {offsets = [0, 256], sizes = [8, 128], strides = [1, 1]} : vector<8x384xf32> to vector<8x128xf32>
    %45 = arith.mulf %43, %9 : vector<8x128xf32>
    %46 = arith.mulf %42, %41 : vector<8x128xf32>
    %47 = arith.addf %45, %46 : vector<8x128xf32>
    %48 = math.tanh %47 : vector<8x128xf32>
    %49 = arith.mulf %44, %48 : vector<8x128xf32>
    %c0_18 = arith.constant 0 : index
    %c0_19 = arith.constant 0 : index
    %50 = vector.load %arg1[%c0_18, %c0_19] : memref<64x128xf32, #tpu.memory_space<vmem>>, vector<8x128xf32>
    %c56_20 = arith.constant 56 : index
    %c0_21 = arith.constant 0 : index
    %51 = vector.load %arg1[%c56_20, %c0_21] : memref<64x128xf32, #tpu.memory_space<vmem>>, vector<8x128xf32>
    %52 = arith.mulf %33, %50 : vector<8x128xf32>
    %53 = arith.mulf %49, %51 : vector<8x128xf32>
    %54 = arith.mulf %47, %51 : vector<8x128xf32>
    %c0_22 = arith.constant 0 : index
    %c0_23 = arith.constant 0 : index
    %55 = vector.load %arg6[%c0_22, %c0_23] : memref<128x128xf32, #tpu.memory_space<vmem>>, vector<8x128xf32>
    %56 = arith.mulf %52, %55 : vector<8x128xf32>
    %57 = arith.addf %9, %56 : vector<8x128xf32>
    %c56_24 = arith.constant 56 : index
    %c0_25 = arith.constant 0 : index
    %58 = vector.load %arg7[%c56_24, %c0_25] : memref<128x128xf32, #tpu.memory_space<vmem>>, vector<8x128xf32>
    %59 = arith.mulf %53, %58 : vector<8x128xf32>
    %60 = arith.addf %57, %59 : vector<8x128xf32>
    %c64 = arith.constant 64 : index
    %c0_26 = arith.constant 0 : index
    %61 = vector.load %arg6[%c64, %c0_26] : memref<128x128xf32, #tpu.memory_space<vmem>>, vector<8x128xf32>
    %62 = arith.mulf %52, %61 : vector<8x128xf32>
    %63 = arith.addf %9, %62 : vector<8x128xf32>
    %c120 = arith.constant 120 : index
    %c0_27 = arith.constant 0 : index
    %64 = vector.load %arg7[%c120, %c0_27] : memref<128x128xf32, #tpu.memory_space<vmem>>, vector<8x128xf32>
    %65 = arith.mulf %53, %64 : vector<8x128xf32>
    %66 = arith.addf %63, %65 : vector<8x128xf32>
    %c8 = arith.constant 8 : index
    %c0_28 = arith.constant 0 : index
    %67 = vector.load %arg10[%c8, %c0_28] : memref<64x1024xf32, #tpu.memory_space<vmem>>, vector<8x512xf32>
    %68 = arith.truncf %33 : vector<8x128xf32> to vector<8x128xbf16>
    %cst_29 = arith.constant dense<0.000000e+00> : vector<8x512xf32>
    %69 = tpu.matmul %68, %7, %cst_29 {dimension_numbers = #tpu.dot_dimension_numbers<[1], [0], [0], [1], [0, 0, 1, 1], [], []>} : vector<8x128xbf16>, vector<128x512xbf16>, vector<8x512xf32> -> vector<8x512xf32>
    %70 = arith.addf %67, %69 : vector<8x512xf32>
    %c48 = arith.constant 48 : index
    %c512_30 = arith.constant 512 : index
    %71 = vector.load %arg10[%c48, %c512_30] : memref<64x1024xf32, #tpu.memory_space<vmem>>, vector<8x512xf32>
    %72 = arith.truncf %53 : vector<8x128xf32> to vector<8x128xbf16>
    %cst_31 = arith.constant dense<0.000000e+00> : vector<8x512xf32>
    %73 = tpu.matmul %72, %8, %cst_31 {dimension_numbers = #tpu.dot_dimension_numbers<[1], [0], [0], [1], [0, 0, 1, 1], [], []>} : vector<8x128xbf16>, vector<128x512xbf16>, vector<8x512xf32> -> vector<8x512xf32>
    %74 = arith.addf %71, %73 : vector<8x512xf32>
    %75 = vector.extract_strided_slice %70 {offsets = [0, 0], sizes = [8, 384], strides = [1, 1]} : vector<8x512xf32> to vector<8x384xf32>
    %76 = arith.negf %75 : vector<8x384xf32>
    %77 = math.exp %76 : vector<8x384xf32>
    %cst_32 = arith.constant 1.000000e+00 : f32
    %78 = vector.broadcast %cst_32 : f32 to vector<8x384xf32>
    %79 = arith.addf %78, %77 : vector<8x384xf32>
    %80 = arith.divf %78, %79 : vector<8x384xf32>
    %81 = vector.extract_strided_slice %70 {offsets = [0, 384], sizes = [8, 128], strides = [1, 1]} : vector<8x512xf32> to vector<8x128xf32>
    %82 = math.tanh %81 : vector<8x128xf32>
    %83 = vector.extract_strided_slice %80 {offsets = [0, 0], sizes = [8, 128], strides = [1, 1]} : vector<8x384xf32> to vector<8x128xf32>
    %84 = vector.extract_strided_slice %80 {offsets = [0, 128], sizes = [8, 128], strides = [1, 1]} : vector<8x384xf32> to vector<8x128xf32>
    %85 = vector.extract_strided_slice %80 {offsets = [0, 256], sizes = [8, 128], strides = [1, 1]} : vector<8x384xf32> to vector<8x128xf32>
    %86 = arith.mulf %84, %31 : vector<8x128xf32>
    %87 = arith.mulf %83, %82 : vector<8x128xf32>
    %88 = arith.addf %86, %87 : vector<8x128xf32>
    %89 = math.tanh %88 : vector<8x128xf32>
    %90 = arith.mulf %85, %89 : vector<8x128xf32>
    %91 = vector.extract_strided_slice %74 {offsets = [0, 0], sizes = [8, 384], strides = [1, 1]} : vector<8x512xf32> to vector<8x384xf32>
    %92 = arith.negf %91 : vector<8x384xf32>
    %93 = math.exp %92 : vector<8x384xf32>
    %cst_33 = arith.constant 1.000000e+00 : f32
    %94 = vector.broadcast %cst_33 : f32 to vector<8x384xf32>
    %95 = arith.addf %94, %93 : vector<8x384xf32>
    %96 = arith.divf %94, %95 : vector<8x384xf32>
    %97 = vector.extract_strided_slice %74 {offsets = [0, 384], sizes = [8, 128], strides = [1, 1]} : vector<8x512xf32> to vector<8x128xf32>
    %98 = math.tanh %97 : vector<8x128xf32>
    %99 = vector.extract_strided_slice %96 {offsets = [0, 0], sizes = [8, 128], strides = [1, 1]} : vector<8x384xf32> to vector<8x128xf32>
    %100 = vector.extract_strided_slice %96 {offsets = [0, 128], sizes = [8, 128], strides = [1, 1]} : vector<8x384xf32> to vector<8x128xf32>
    %101 = vector.extract_strided_slice %96 {offsets = [0, 256], sizes = [8, 128], strides = [1, 1]} : vector<8x384xf32> to vector<8x128xf32>
    %102 = arith.mulf %100, %54 : vector<8x128xf32>
    %103 = arith.mulf %99, %98 : vector<8x128xf32>
    %104 = arith.addf %102, %103 : vector<8x128xf32>
    %105 = math.tanh %104 : vector<8x128xf32>
    %106 = arith.mulf %101, %105 : vector<8x128xf32>
    %c8_34 = arith.constant 8 : index
    %c0_35 = arith.constant 0 : index
    %107 = vector.load %arg1[%c8_34, %c0_35] : memref<64x128xf32, #tpu.memory_space<vmem>>, vector<8x128xf32>
    %c48_36 = arith.constant 48 : index
    %c0_37 = arith.constant 0 : index
    %108 = vector.load %arg1[%c48_36, %c0_37] : memref<64x128xf32, #tpu.memory_space<vmem>>, vector<8x128xf32>
    %109 = arith.mulf %90, %107 : vector<8x128xf32>
    %110 = arith.mulf %106, %108 : vector<8x128xf32>
    %111 = arith.mulf %104, %108 : vector<8x128xf32>
    %c8_38 = arith.constant 8 : index
    %c0_39 = arith.constant 0 : index
    %112 = vector.load %arg6[%c8_38, %c0_39] : memref<128x128xf32, #tpu.memory_space<vmem>>, vector<8x128xf32>
    %113 = arith.mulf %109, %112 : vector<8x128xf32>
    %114 = arith.addf %60, %113 : vector<8x128xf32>
    %c48_40 = arith.constant 48 : index
    %c0_41 = arith.constant 0 : index
    %115 = vector.load %arg7[%c48_40, %c0_41] : memref<128x128xf32, #tpu.memory_space<vmem>>, vector<8x128xf32>
    %116 = arith.mulf %110, %115 : vector<8x128xf32>
    %117 = arith.addf %114, %116 : vector<8x128xf32>
    %c72 = arith.constant 72 : index
    %c0_42 = arith.constant 0 : index
    %118 = vector.load %arg6[%c72, %c0_42] : memref<128x128xf32, #tpu.memory_space<vmem>>, vector<8x128xf32>
    %119 = arith.mulf %109, %118 : vector<8x128xf32>
    %120 = arith.addf %66, %119 : vector<8x128xf32>
    %c112 = arith.constant 112 : index
    %c0_43 = arith.constant 0 : index
    %121 = vector.load %arg7[%c112, %c0_43] : memref<128x128xf32, #tpu.memory_space<vmem>>, vector<8x128xf32>
    %122 = arith.mulf %110, %121 : vector<8x128xf32>
    %123 = arith.addf %120, %122 : vector<8x128xf32>
    %c16 = arith.constant 16 : index
    %c0_44 = arith.constant 0 : index
    %124 = vector.load %arg10[%c16, %c0_44] : memref<64x1024xf32, #tpu.memory_space<vmem>>, vector<8x512xf32>
    %125 = arith.truncf %90 : vector<8x128xf32> to vector<8x128xbf16>
    %cst_45 = arith.constant dense<0.000000e+00> : vector<8x512xf32>
    %126 = tpu.matmul %125, %7, %cst_45 {dimension_numbers = #tpu.dot_dimension_numbers<[1], [0], [0], [1], [0, 0, 1, 1], [], []>} : vector<8x128xbf16>, vector<128x512xbf16>, vector<8x512xf32> -> vector<8x512xf32>
    %127 = arith.addf %124, %126 : vector<8x512xf32>
    %c40 = arith.constant 40 : index
    %c512_46 = arith.constant 512 : index
    %128 = vector.load %arg10[%c40, %c512_46] : memref<64x1024xf32, #tpu.memory_space<vmem>>, vector<8x512xf32>
    %129 = arith.truncf %110 : vector<8x128xf32> to vector<8x128xbf16>
    %cst_47 = arith.constant dense<0.000000e+00> : vector<8x512xf32>
    %130 = tpu.matmul %129, %8, %cst_47 {dimension_numbers = #tpu.dot_dimension_numbers<[1], [0], [0], [1], [0, 0, 1, 1], [], []>} : vector<8x128xbf16>, vector<128x512xbf16>, vector<8x512xf32> -> vector<8x512xf32>
    %131 = arith.addf %128, %130 : vector<8x512xf32>
    %132 = vector.extract_strided_slice %127 {offsets = [0, 0], sizes = [8, 384], strides = [1, 1]} : vector<8x512xf32> to vector<8x384xf32>
    %133 = arith.negf %132 : vector<8x384xf32>
    %134 = math.exp %133 : vector<8x384xf32>
    %cst_48 = arith.constant 1.000000e+00 : f32
    %135 = vector.broadcast %cst_48 : f32 to vector<8x384xf32>
    %136 = arith.addf %135, %134 : vector<8x384xf32>
    %137 = arith.divf %135, %136 : vector<8x384xf32>
    %138 = vector.extract_strided_slice %127 {offsets = [0, 384], sizes = [8, 128], strides = [1, 1]} : vector<8x512xf32> to vector<8x128xf32>
    %139 = math.tanh %138 : vector<8x128xf32>
    %140 = vector.extract_strided_slice %137 {offsets = [0, 0], sizes = [8, 128], strides = [1, 1]} : vector<8x384xf32> to vector<8x128xf32>
    %141 = vector.extract_strided_slice %137 {offsets = [0, 128], sizes = [8, 128], strides = [1, 1]} : vector<8x384xf32> to vector<8x128xf32>
    %142 = vector.extract_strided_slice %137 {offsets = [0, 256], sizes = [8, 128], strides = [1, 1]} : vector<8x384xf32> to vector<8x128xf32>
    %143 = arith.mulf %141, %88 : vector<8x128xf32>
    %144 = arith.mulf %140, %139 : vector<8x128xf32>
    %145 = arith.addf %143, %144 : vector<8x128xf32>
    %146 = math.tanh %145 : vector<8x128xf32>
    %147 = arith.mulf %142, %146 : vector<8x128xf32>
    %148 = vector.extract_strided_slice %131 {offsets = [0, 0], sizes = [8, 384], strides = [1, 1]} : vector<8x512xf32> to vector<8x384xf32>
    %149 = arith.negf %148 : vector<8x384xf32>
    %150 = math.exp %149 : vector<8x384xf32>
    %cst_49 = arith.constant 1.000000e+00 : f32
    %151 = vector.broadcast %cst_49 : f32 to vector<8x384xf32>
    %152 = arith.addf %151, %150 : vector<8x384xf32>
    %153 = arith.divf %151, %152 : vector<8x384xf32>
    %154 = vector.extract_strided_slice %131 {offsets = [0, 384], sizes = [8, 128], strides = [1, 1]} : vector<8x512xf32> to vector<8x128xf32>
    %155 = math.tanh %154 : vector<8x128xf32>
    %156 = vector.extract_strided_slice %153 {offsets = [0, 0], sizes = [8, 128], strides = [1, 1]} : vector<8x384xf32> to vector<8x128xf32>
    %157 = vector.extract_strided_slice %153 {offsets = [0, 128], sizes = [8, 128], strides = [1, 1]} : vector<8x384xf32> to vector<8x128xf32>
    %158 = vector.extract_strided_slice %153 {offsets = [0, 256], sizes = [8, 128], strides = [1, 1]} : vector<8x384xf32> to vector<8x128xf32>
    %159 = arith.mulf %157, %111 : vector<8x128xf32>
    %160 = arith.mulf %156, %155 : vector<8x128xf32>
    %161 = arith.addf %159, %160 : vector<8x128xf32>
    %162 = math.tanh %161 : vector<8x128xf32>
    %163 = arith.mulf %158, %162 : vector<8x128xf32>
    %c16_50 = arith.constant 16 : index
    %c0_51 = arith.constant 0 : index
    %164 = vector.load %arg1[%c16_50, %c0_51] : memref<64x128xf32, #tpu.memory_space<vmem>>, vector<8x128xf32>
    %c40_52 = arith.constant 40 : index
    %c0_53 = arith.constant 0 : index
    %165 = vector.load %arg1[%c40_52, %c0_53] : memref<64x128xf32, #tpu.memory_space<vmem>>, vector<8x128xf32>
    %166 = arith.mulf %147, %164 : vector<8x128xf32>
    %167 = arith.mulf %163, %165 : vector<8x128xf32>
    %168 = arith.mulf %161, %165 : vector<8x128xf32>
    %c16_54 = arith.constant 16 : index
    %c0_55 = arith.constant 0 : index
    %169 = vector.load %arg6[%c16_54, %c0_55] : memref<128x128xf32, #tpu.memory_space<vmem>>, vector<8x128xf32>
    %170 = arith.mulf %166, %169 : vector<8x128xf32>
    %171 = arith.addf %117, %170 : vector<8x128xf32>
    %c40_56 = arith.constant 40 : index
    %c0_57 = arith.constant 0 : index
    %172 = vector.load %arg7[%c40_56, %c0_57] : memref<128x128xf32, #tpu.memory_space<vmem>>, vector<8x128xf32>
    %173 = arith.mulf %167, %172 : vector<8x128xf32>
    %174 = arith.addf %171, %173 : vector<8x128xf32>
    %c80 = arith.constant 80 : index
    %c0_58 = arith.constant 0 : index
    %175 = vector.load %arg6[%c80, %c0_58] : memref<128x128xf32, #tpu.memory_space<vmem>>, vector<8x128xf32>
    %176 = arith.mulf %166, %175 : vector<8x128xf32>
    %177 = arith.addf %123, %176 : vector<8x128xf32>
    %c104 = arith.constant 104 : index
    %c0_59 = arith.constant 0 : index
    %178 = vector.load %arg7[%c104, %c0_59] : memref<128x128xf32, #tpu.memory_space<vmem>>, vector<8x128xf32>
    %179 = arith.mulf %167, %178 : vector<8x128xf32>
    %180 = arith.addf %177, %179 : vector<8x128xf32>
    %c24 = arith.constant 24 : index
    %c0_60 = arith.constant 0 : index
    %181 = vector.load %arg10[%c24, %c0_60] : memref<64x1024xf32, #tpu.memory_space<vmem>>, vector<8x512xf32>
    %182 = arith.truncf %147 : vector<8x128xf32> to vector<8x128xbf16>
    %cst_61 = arith.constant dense<0.000000e+00> : vector<8x512xf32>
    %183 = tpu.matmul %182, %7, %cst_61 {dimension_numbers = #tpu.dot_dimension_numbers<[1], [0], [0], [1], [0, 0, 1, 1], [], []>} : vector<8x128xbf16>, vector<128x512xbf16>, vector<8x512xf32> -> vector<8x512xf32>
    %184 = arith.addf %181, %183 : vector<8x512xf32>
    %c32 = arith.constant 32 : index
    %c512_62 = arith.constant 512 : index
    %185 = vector.load %arg10[%c32, %c512_62] : memref<64x1024xf32, #tpu.memory_space<vmem>>, vector<8x512xf32>
    %186 = arith.truncf %167 : vector<8x128xf32> to vector<8x128xbf16>
    %cst_63 = arith.constant dense<0.000000e+00> : vector<8x512xf32>
    %187 = tpu.matmul %186, %8, %cst_63 {dimension_numbers = #tpu.dot_dimension_numbers<[1], [0], [0], [1], [0, 0, 1, 1], [], []>} : vector<8x128xbf16>, vector<128x512xbf16>, vector<8x512xf32> -> vector<8x512xf32>
    %188 = arith.addf %185, %187 : vector<8x512xf32>
    %189 = vector.extract_strided_slice %184 {offsets = [0, 0], sizes = [8, 384], strides = [1, 1]} : vector<8x512xf32> to vector<8x384xf32>
    %190 = arith.negf %189 : vector<8x384xf32>
    %191 = math.exp %190 : vector<8x384xf32>
    %cst_64 = arith.constant 1.000000e+00 : f32
    %192 = vector.broadcast %cst_64 : f32 to vector<8x384xf32>
    %193 = arith.addf %192, %191 : vector<8x384xf32>
    %194 = arith.divf %192, %193 : vector<8x384xf32>
    %195 = vector.extract_strided_slice %184 {offsets = [0, 384], sizes = [8, 128], strides = [1, 1]} : vector<8x512xf32> to vector<8x128xf32>
    %196 = math.tanh %195 : vector<8x128xf32>
    %197 = vector.extract_strided_slice %194 {offsets = [0, 0], sizes = [8, 128], strides = [1, 1]} : vector<8x384xf32> to vector<8x128xf32>
    %198 = vector.extract_strided_slice %194 {offsets = [0, 128], sizes = [8, 128], strides = [1, 1]} : vector<8x384xf32> to vector<8x128xf32>
    %199 = vector.extract_strided_slice %194 {offsets = [0, 256], sizes = [8, 128], strides = [1, 1]} : vector<8x384xf32> to vector<8x128xf32>
    %200 = arith.mulf %198, %145 : vector<8x128xf32>
    %201 = arith.mulf %197, %196 : vector<8x128xf32>
    %202 = arith.addf %200, %201 : vector<8x128xf32>
    %203 = math.tanh %202 : vector<8x128xf32>
    %204 = arith.mulf %199, %203 : vector<8x128xf32>
    %205 = vector.extract_strided_slice %188 {offsets = [0, 0], sizes = [8, 384], strides = [1, 1]} : vector<8x512xf32> to vector<8x384xf32>
    %206 = arith.negf %205 : vector<8x384xf32>
    %207 = math.exp %206 : vector<8x384xf32>
    %cst_65 = arith.constant 1.000000e+00 : f32
    %208 = vector.broadcast %cst_65 : f32 to vector<8x384xf32>
    %209 = arith.addf %208, %207 : vector<8x384xf32>
    %210 = arith.divf %208, %209 : vector<8x384xf32>
    %211 = vector.extract_strided_slice %188 {offsets = [0, 384], sizes = [8, 128], strides = [1, 1]} : vector<8x512xf32> to vector<8x128xf32>
    %212 = math.tanh %211 : vector<8x128xf32>
    %213 = vector.extract_strided_slice %210 {offsets = [0, 0], sizes = [8, 128], strides = [1, 1]} : vector<8x384xf32> to vector<8x128xf32>
    %214 = vector.extract_strided_slice %210 {offsets = [0, 128], sizes = [8, 128], strides = [1, 1]} : vector<8x384xf32> to vector<8x128xf32>
    %215 = vector.extract_strided_slice %210 {offsets = [0, 256], sizes = [8, 128], strides = [1, 1]} : vector<8x384xf32> to vector<8x128xf32>
    %216 = arith.mulf %214, %168 : vector<8x128xf32>
    %217 = arith.mulf %213, %212 : vector<8x128xf32>
    %218 = arith.addf %216, %217 : vector<8x128xf32>
    %219 = math.tanh %218 : vector<8x128xf32>
    %220 = arith.mulf %215, %219 : vector<8x128xf32>
    %c24_66 = arith.constant 24 : index
    %c0_67 = arith.constant 0 : index
    %221 = vector.load %arg1[%c24_66, %c0_67] : memref<64x128xf32, #tpu.memory_space<vmem>>, vector<8x128xf32>
    %c32_68 = arith.constant 32 : index
    %c0_69 = arith.constant 0 : index
    %222 = vector.load %arg1[%c32_68, %c0_69] : memref<64x128xf32, #tpu.memory_space<vmem>>, vector<8x128xf32>
    %223 = arith.mulf %204, %221 : vector<8x128xf32>
    %224 = arith.mulf %220, %222 : vector<8x128xf32>
    %225 = arith.mulf %218, %222 : vector<8x128xf32>
    %c24_70 = arith.constant 24 : index
    %c0_71 = arith.constant 0 : index
    %226 = vector.load %arg6[%c24_70, %c0_71] : memref<128x128xf32, #tpu.memory_space<vmem>>, vector<8x128xf32>
    %227 = arith.mulf %223, %226 : vector<8x128xf32>
    %228 = arith.addf %174, %227 : vector<8x128xf32>
    %c32_72 = arith.constant 32 : index
    %c0_73 = arith.constant 0 : index
    %229 = vector.load %arg7[%c32_72, %c0_73] : memref<128x128xf32, #tpu.memory_space<vmem>>, vector<8x128xf32>
    %230 = arith.mulf %224, %229 : vector<8x128xf32>
    %231 = arith.addf %228, %230 : vector<8x128xf32>
    %c88 = arith.constant 88 : index
    %c0_74 = arith.constant 0 : index
    %232 = vector.load %arg6[%c88, %c0_74] : memref<128x128xf32, #tpu.memory_space<vmem>>, vector<8x128xf32>
    %233 = arith.mulf %223, %232 : vector<8x128xf32>
    %234 = arith.addf %180, %233 : vector<8x128xf32>
    %c96 = arith.constant 96 : index
    %c0_75 = arith.constant 0 : index
    %235 = vector.load %arg7[%c96, %c0_75] : memref<128x128xf32, #tpu.memory_space<vmem>>, vector<8x128xf32>
    %236 = arith.mulf %224, %235 : vector<8x128xf32>
    %237 = arith.addf %234, %236 : vector<8x128xf32>
    %c32_76 = arith.constant 32 : index
    %c0_77 = arith.constant 0 : index
    %238 = vector.load %arg10[%c32_76, %c0_77] : memref<64x1024xf32, #tpu.memory_space<vmem>>, vector<8x512xf32>
    %239 = arith.truncf %204 : vector<8x128xf32> to vector<8x128xbf16>
    %cst_78 = arith.constant dense<0.000000e+00> : vector<8x512xf32>
    %240 = tpu.matmul %239, %7, %cst_78 {dimension_numbers = #tpu.dot_dimension_numbers<[1], [0], [0], [1], [0, 0, 1, 1], [], []>} : vector<8x128xbf16>, vector<128x512xbf16>, vector<8x512xf32> -> vector<8x512xf32>
    %241 = arith.addf %238, %240 : vector<8x512xf32>
    %c24_79 = arith.constant 24 : index
    %c512_80 = arith.constant 512 : index
    %242 = vector.load %arg10[%c24_79, %c512_80] : memref<64x1024xf32, #tpu.memory_space<vmem>>, vector<8x512xf32>
    %243 = arith.truncf %224 : vector<8x128xf32> to vector<8x128xbf16>
    %cst_81 = arith.constant dense<0.000000e+00> : vector<8x512xf32>
    %244 = tpu.matmul %243, %8, %cst_81 {dimension_numbers = #tpu.dot_dimension_numbers<[1], [0], [0], [1], [0, 0, 1, 1], [], []>} : vector<8x128xbf16>, vector<128x512xbf16>, vector<8x512xf32> -> vector<8x512xf32>
    %245 = arith.addf %242, %244 : vector<8x512xf32>
    %246 = vector.extract_strided_slice %241 {offsets = [0, 0], sizes = [8, 384], strides = [1, 1]} : vector<8x512xf32> to vector<8x384xf32>
    %247 = arith.negf %246 : vector<8x384xf32>
    %248 = math.exp %247 : vector<8x384xf32>
    %cst_82 = arith.constant 1.000000e+00 : f32
    %249 = vector.broadcast %cst_82 : f32 to vector<8x384xf32>
    %250 = arith.addf %249, %248 : vector<8x384xf32>
    %251 = arith.divf %249, %250 : vector<8x384xf32>
    %252 = vector.extract_strided_slice %241 {offsets = [0, 384], sizes = [8, 128], strides = [1, 1]} : vector<8x512xf32> to vector<8x128xf32>
    %253 = math.tanh %252 : vector<8x128xf32>
    %254 = vector.extract_strided_slice %251 {offsets = [0, 0], sizes = [8, 128], strides = [1, 1]} : vector<8x384xf32> to vector<8x128xf32>
    %255 = vector.extract_strided_slice %251 {offsets = [0, 128], sizes = [8, 128], strides = [1, 1]} : vector<8x384xf32> to vector<8x128xf32>
    %256 = vector.extract_strided_slice %251 {offsets = [0, 256], sizes = [8, 128], strides = [1, 1]} : vector<8x384xf32> to vector<8x128xf32>
    %257 = arith.mulf %255, %202 : vector<8x128xf32>
    %258 = arith.mulf %254, %253 : vector<8x128xf32>
    %259 = arith.addf %257, %258 : vector<8x128xf32>
    %260 = math.tanh %259 : vector<8x128xf32>
    %261 = arith.mulf %256, %260 : vector<8x128xf32>
    %262 = vector.extract_strided_slice %245 {offsets = [0, 0], sizes = [8, 384], strides = [1, 1]} : vector<8x512xf32> to vector<8x384xf32>
    %263 = arith.negf %262 : vector<8x384xf32>
    %264 = math.exp %263 : vector<8x384xf32>
    %cst_83 = arith.constant 1.000000e+00 : f32
    %265 = vector.broadcast %cst_83 : f32 to vector<8x384xf32>
    %266 = arith.addf %265, %264 : vector<8x384xf32>
    %267 = arith.divf %265, %266 : vector<8x384xf32>
    %268 = vector.extract_strided_slice %245 {offsets = [0, 384], sizes = [8, 128], strides = [1, 1]} : vector<8x512xf32> to vector<8x128xf32>
    %269 = math.tanh %268 : vector<8x128xf32>
    %270 = vector.extract_strided_slice %267 {offsets = [0, 0], sizes = [8, 128], strides = [1, 1]} : vector<8x384xf32> to vector<8x128xf32>
    %271 = vector.extract_strided_slice %267 {offsets = [0, 128], sizes = [8, 128], strides = [1, 1]} : vector<8x384xf32> to vector<8x128xf32>
    %272 = vector.extract_strided_slice %267 {offsets = [0, 256], sizes = [8, 128], strides = [1, 1]} : vector<8x384xf32> to vector<8x128xf32>
    %273 = arith.mulf %271, %225 : vector<8x128xf32>
    %274 = arith.mulf %270, %269 : vector<8x128xf32>
    %275 = arith.addf %273, %274 : vector<8x128xf32>
    %276 = math.tanh %275 : vector<8x128xf32>
    %277 = arith.mulf %272, %276 : vector<8x128xf32>
    %c32_84 = arith.constant 32 : index
    %c0_85 = arith.constant 0 : index
    %278 = vector.load %arg1[%c32_84, %c0_85] : memref<64x128xf32, #tpu.memory_space<vmem>>, vector<8x128xf32>
    %c24_86 = arith.constant 24 : index
    %c0_87 = arith.constant 0 : index
    %279 = vector.load %arg1[%c24_86, %c0_87] : memref<64x128xf32, #tpu.memory_space<vmem>>, vector<8x128xf32>
    %280 = arith.mulf %261, %278 : vector<8x128xf32>
    %281 = arith.mulf %277, %279 : vector<8x128xf32>
    %282 = arith.mulf %275, %279 : vector<8x128xf32>
    %c32_88 = arith.constant 32 : index
    %c0_89 = arith.constant 0 : index
    %283 = vector.load %arg6[%c32_88, %c0_89] : memref<128x128xf32, #tpu.memory_space<vmem>>, vector<8x128xf32>
    %284 = arith.mulf %280, %283 : vector<8x128xf32>
    %285 = arith.addf %231, %284 : vector<8x128xf32>
    %c24_90 = arith.constant 24 : index
    %c0_91 = arith.constant 0 : index
    %286 = vector.load %arg7[%c24_90, %c0_91] : memref<128x128xf32, #tpu.memory_space<vmem>>, vector<8x128xf32>
    %287 = arith.mulf %281, %286 : vector<8x128xf32>
    %288 = arith.addf %285, %287 : vector<8x128xf32>
    %c96_92 = arith.constant 96 : index
    %c0_93 = arith.constant 0 : index
    %289 = vector.load %arg6[%c96_92, %c0_93] : memref<128x128xf32, #tpu.memory_space<vmem>>, vector<8x128xf32>
    %290 = arith.mulf %280, %289 : vector<8x128xf32>
    %291 = arith.addf %237, %290 : vector<8x128xf32>
    %c88_94 = arith.constant 88 : index
    %c0_95 = arith.constant 0 : index
    %292 = vector.load %arg7[%c88_94, %c0_95] : memref<128x128xf32, #tpu.memory_space<vmem>>, vector<8x128xf32>
    %293 = arith.mulf %281, %292 : vector<8x128xf32>
    %294 = arith.addf %291, %293 : vector<8x128xf32>
    %c40_96 = arith.constant 40 : index
    %c0_97 = arith.constant 0 : index
    %295 = vector.load %arg10[%c40_96, %c0_97] : memref<64x1024xf32, #tpu.memory_space<vmem>>, vector<8x512xf32>
    %296 = arith.truncf %261 : vector<8x128xf32> to vector<8x128xbf16>
    %cst_98 = arith.constant dense<0.000000e+00> : vector<8x512xf32>
    %297 = tpu.matmul %296, %7, %cst_98 {dimension_numbers = #tpu.dot_dimension_numbers<[1], [0], [0], [1], [0, 0, 1, 1], [], []>} : vector<8x128xbf16>, vector<128x512xbf16>, vector<8x512xf32> -> vector<8x512xf32>
    %298 = arith.addf %295, %297 : vector<8x512xf32>
    %c16_99 = arith.constant 16 : index
    %c512_100 = arith.constant 512 : index
    %299 = vector.load %arg10[%c16_99, %c512_100] : memref<64x1024xf32, #tpu.memory_space<vmem>>, vector<8x512xf32>
    %300 = arith.truncf %281 : vector<8x128xf32> to vector<8x128xbf16>
    %cst_101 = arith.constant dense<0.000000e+00> : vector<8x512xf32>
    %301 = tpu.matmul %300, %8, %cst_101 {dimension_numbers = #tpu.dot_dimension_numbers<[1], [0], [0], [1], [0, 0, 1, 1], [], []>} : vector<8x128xbf16>, vector<128x512xbf16>, vector<8x512xf32> -> vector<8x512xf32>
    %302 = arith.addf %299, %301 : vector<8x512xf32>
    %303 = vector.extract_strided_slice %298 {offsets = [0, 0], sizes = [8, 384], strides = [1, 1]} : vector<8x512xf32> to vector<8x384xf32>
    %304 = arith.negf %303 : vector<8x384xf32>
    %305 = math.exp %304 : vector<8x384xf32>
    %cst_102 = arith.constant 1.000000e+00 : f32
    %306 = vector.broadcast %cst_102 : f32 to vector<8x384xf32>
    %307 = arith.addf %306, %305 : vector<8x384xf32>
    %308 = arith.divf %306, %307 : vector<8x384xf32>
    %309 = vector.extract_strided_slice %298 {offsets = [0, 384], sizes = [8, 128], strides = [1, 1]} : vector<8x512xf32> to vector<8x128xf32>
    %310 = math.tanh %309 : vector<8x128xf32>
    %311 = vector.extract_strided_slice %308 {offsets = [0, 0], sizes = [8, 128], strides = [1, 1]} : vector<8x384xf32> to vector<8x128xf32>
    %312 = vector.extract_strided_slice %308 {offsets = [0, 128], sizes = [8, 128], strides = [1, 1]} : vector<8x384xf32> to vector<8x128xf32>
    %313 = vector.extract_strided_slice %308 {offsets = [0, 256], sizes = [8, 128], strides = [1, 1]} : vector<8x384xf32> to vector<8x128xf32>
    %314 = arith.mulf %312, %259 : vector<8x128xf32>
    %315 = arith.mulf %311, %310 : vector<8x128xf32>
    %316 = arith.addf %314, %315 : vector<8x128xf32>
    %317 = math.tanh %316 : vector<8x128xf32>
    %318 = arith.mulf %313, %317 : vector<8x128xf32>
    %319 = vector.extract_strided_slice %302 {offsets = [0, 0], sizes = [8, 384], strides = [1, 1]} : vector<8x512xf32> to vector<8x384xf32>
    %320 = arith.negf %319 : vector<8x384xf32>
    %321 = math.exp %320 : vector<8x384xf32>
    %cst_103 = arith.constant 1.000000e+00 : f32
    %322 = vector.broadcast %cst_103 : f32 to vector<8x384xf32>
    %323 = arith.addf %322, %321 : vector<8x384xf32>
    %324 = arith.divf %322, %323 : vector<8x384xf32>
    %325 = vector.extract_strided_slice %302 {offsets = [0, 384], sizes = [8, 128], strides = [1, 1]} : vector<8x512xf32> to vector<8x128xf32>
    %326 = math.tanh %325 : vector<8x128xf32>
    %327 = vector.extract_strided_slice %324 {offsets = [0, 0], sizes = [8, 128], strides = [1, 1]} : vector<8x384xf32> to vector<8x128xf32>
    %328 = vector.extract_strided_slice %324 {offsets = [0, 128], sizes = [8, 128], strides = [1, 1]} : vector<8x384xf32> to vector<8x128xf32>
    %329 = vector.extract_strided_slice %324 {offsets = [0, 256], sizes = [8, 128], strides = [1, 1]} : vector<8x384xf32> to vector<8x128xf32>
    %330 = arith.mulf %328, %282 : vector<8x128xf32>
    %331 = arith.mulf %327, %326 : vector<8x128xf32>
    %332 = arith.addf %330, %331 : vector<8x128xf32>
    %333 = math.tanh %332 : vector<8x128xf32>
    %334 = arith.mulf %329, %333 : vector<8x128xf32>
    %c40_104 = arith.constant 40 : index
    %c0_105 = arith.constant 0 : index
    %335 = vector.load %arg1[%c40_104, %c0_105] : memref<64x128xf32, #tpu.memory_space<vmem>>, vector<8x128xf32>
    %c16_106 = arith.constant 16 : index
    %c0_107 = arith.constant 0 : index
    %336 = vector.load %arg1[%c16_106, %c0_107] : memref<64x128xf32, #tpu.memory_space<vmem>>, vector<8x128xf32>
    %337 = arith.mulf %318, %335 : vector<8x128xf32>
    %338 = arith.mulf %334, %336 : vector<8x128xf32>
    %339 = arith.mulf %332, %336 : vector<8x128xf32>
    %c40_108 = arith.constant 40 : index
    %c0_109 = arith.constant 0 : index
    %340 = vector.load %arg6[%c40_108, %c0_109] : memref<128x128xf32, #tpu.memory_space<vmem>>, vector<8x128xf32>
    %341 = arith.mulf %337, %340 : vector<8x128xf32>
    %342 = arith.addf %288, %341 : vector<8x128xf32>
    %c16_110 = arith.constant 16 : index
    %c0_111 = arith.constant 0 : index
    %343 = vector.load %arg7[%c16_110, %c0_111] : memref<128x128xf32, #tpu.memory_space<vmem>>, vector<8x128xf32>
    %344 = arith.mulf %338, %343 : vector<8x128xf32>
    %345 = arith.addf %342, %344 : vector<8x128xf32>
    %c104_112 = arith.constant 104 : index
    %c0_113 = arith.constant 0 : index
    %346 = vector.load %arg6[%c104_112, %c0_113] : memref<128x128xf32, #tpu.memory_space<vmem>>, vector<8x128xf32>
    %347 = arith.mulf %337, %346 : vector<8x128xf32>
    %348 = arith.addf %294, %347 : vector<8x128xf32>
    %c80_114 = arith.constant 80 : index
    %c0_115 = arith.constant 0 : index
    %349 = vector.load %arg7[%c80_114, %c0_115] : memref<128x128xf32, #tpu.memory_space<vmem>>, vector<8x128xf32>
    %350 = arith.mulf %338, %349 : vector<8x128xf32>
    %351 = arith.addf %348, %350 : vector<8x128xf32>
    %c48_116 = arith.constant 48 : index
    %c0_117 = arith.constant 0 : index
    %352 = vector.load %arg10[%c48_116, %c0_117] : memref<64x1024xf32, #tpu.memory_space<vmem>>, vector<8x512xf32>
    %353 = arith.truncf %318 : vector<8x128xf32> to vector<8x128xbf16>
    %cst_118 = arith.constant dense<0.000000e+00> : vector<8x512xf32>
    %354 = tpu.matmul %353, %7, %cst_118 {dimension_numbers = #tpu.dot_dimension_numbers<[1], [0], [0], [1], [0, 0, 1, 1], [], []>} : vector<8x128xbf16>, vector<128x512xbf16>, vector<8x512xf32> -> vector<8x512xf32>
    %355 = arith.addf %352, %354 : vector<8x512xf32>
    %c8_119 = arith.constant 8 : index
    %c512_120 = arith.constant 512 : index
    %356 = vector.load %arg10[%c8_119, %c512_120] : memref<64x1024xf32, #tpu.memory_space<vmem>>, vector<8x512xf32>
    %357 = arith.truncf %338 : vector<8x128xf32> to vector<8x128xbf16>
    %cst_121 = arith.constant dense<0.000000e+00> : vector<8x512xf32>
    %358 = tpu.matmul %357, %8, %cst_121 {dimension_numbers = #tpu.dot_dimension_numbers<[1], [0], [0], [1], [0, 0, 1, 1], [], []>} : vector<8x128xbf16>, vector<128x512xbf16>, vector<8x512xf32> -> vector<8x512xf32>
    %359 = arith.addf %356, %358 : vector<8x512xf32>
    %360 = vector.extract_strided_slice %355 {offsets = [0, 0], sizes = [8, 384], strides = [1, 1]} : vector<8x512xf32> to vector<8x384xf32>
    %361 = arith.negf %360 : vector<8x384xf32>
    %362 = math.exp %361 : vector<8x384xf32>
    %cst_122 = arith.constant 1.000000e+00 : f32
    %363 = vector.broadcast %cst_122 : f32 to vector<8x384xf32>
    %364 = arith.addf %363, %362 : vector<8x384xf32>
    %365 = arith.divf %363, %364 : vector<8x384xf32>
    %366 = vector.extract_strided_slice %355 {offsets = [0, 384], sizes = [8, 128], strides = [1, 1]} : vector<8x512xf32> to vector<8x128xf32>
    %367 = math.tanh %366 : vector<8x128xf32>
    %368 = vector.extract_strided_slice %365 {offsets = [0, 0], sizes = [8, 128], strides = [1, 1]} : vector<8x384xf32> to vector<8x128xf32>
    %369 = vector.extract_strided_slice %365 {offsets = [0, 128], sizes = [8, 128], strides = [1, 1]} : vector<8x384xf32> to vector<8x128xf32>
    %370 = vector.extract_strided_slice %365 {offsets = [0, 256], sizes = [8, 128], strides = [1, 1]} : vector<8x384xf32> to vector<8x128xf32>
    %371 = arith.mulf %369, %316 : vector<8x128xf32>
    %372 = arith.mulf %368, %367 : vector<8x128xf32>
    %373 = arith.addf %371, %372 : vector<8x128xf32>
    %374 = math.tanh %373 : vector<8x128xf32>
    %375 = arith.mulf %370, %374 : vector<8x128xf32>
    %376 = vector.extract_strided_slice %359 {offsets = [0, 0], sizes = [8, 384], strides = [1, 1]} : vector<8x512xf32> to vector<8x384xf32>
    %377 = arith.negf %376 : vector<8x384xf32>
    %378 = math.exp %377 : vector<8x384xf32>
    %cst_123 = arith.constant 1.000000e+00 : f32
    %379 = vector.broadcast %cst_123 : f32 to vector<8x384xf32>
    %380 = arith.addf %379, %378 : vector<8x384xf32>
    %381 = arith.divf %379, %380 : vector<8x384xf32>
    %382 = vector.extract_strided_slice %359 {offsets = [0, 384], sizes = [8, 128], strides = [1, 1]} : vector<8x512xf32> to vector<8x128xf32>
    %383 = math.tanh %382 : vector<8x128xf32>
    %384 = vector.extract_strided_slice %381 {offsets = [0, 0], sizes = [8, 128], strides = [1, 1]} : vector<8x384xf32> to vector<8x128xf32>
    %385 = vector.extract_strided_slice %381 {offsets = [0, 128], sizes = [8, 128], strides = [1, 1]} : vector<8x384xf32> to vector<8x128xf32>
    %386 = vector.extract_strided_slice %381 {offsets = [0, 256], sizes = [8, 128], strides = [1, 1]} : vector<8x384xf32> to vector<8x128xf32>
    %387 = arith.mulf %385, %339 : vector<8x128xf32>
    %388 = arith.mulf %384, %383 : vector<8x128xf32>
    %389 = arith.addf %387, %388 : vector<8x128xf32>
    %390 = math.tanh %389 : vector<8x128xf32>
    %391 = arith.mulf %386, %390 : vector<8x128xf32>
    %c48_124 = arith.constant 48 : index
    %c0_125 = arith.constant 0 : index
    %392 = vector.load %arg1[%c48_124, %c0_125] : memref<64x128xf32, #tpu.memory_space<vmem>>, vector<8x128xf32>
    %c8_126 = arith.constant 8 : index
    %c0_127 = arith.constant 0 : index
    %393 = vector.load %arg1[%c8_126, %c0_127] : memref<64x128xf32, #tpu.memory_space<vmem>>, vector<8x128xf32>
    %394 = arith.mulf %375, %392 : vector<8x128xf32>
    %395 = arith.mulf %391, %393 : vector<8x128xf32>
    %396 = arith.mulf %389, %393 : vector<8x128xf32>
    %c48_128 = arith.constant 48 : index
    %c0_129 = arith.constant 0 : index
    %397 = vector.load %arg6[%c48_128, %c0_129] : memref<128x128xf32, #tpu.memory_space<vmem>>, vector<8x128xf32>
    %398 = arith.mulf %394, %397 : vector<8x128xf32>
    %399 = arith.addf %345, %398 : vector<8x128xf32>
    %c8_130 = arith.constant 8 : index
    %c0_131 = arith.constant 0 : index
    %400 = vector.load %arg7[%c8_130, %c0_131] : memref<128x128xf32, #tpu.memory_space<vmem>>, vector<8x128xf32>
    %401 = arith.mulf %395, %400 : vector<8x128xf32>
    %402 = arith.addf %399, %401 : vector<8x128xf32>
    %c112_132 = arith.constant 112 : index
    %c0_133 = arith.constant 0 : index
    %403 = vector.load %arg6[%c112_132, %c0_133] : memref<128x128xf32, #tpu.memory_space<vmem>>, vector<8x128xf32>
    %404 = arith.mulf %394, %403 : vector<8x128xf32>
    %405 = arith.addf %351, %404 : vector<8x128xf32>
    %c72_134 = arith.constant 72 : index
    %c0_135 = arith.constant 0 : index
    %406 = vector.load %arg7[%c72_134, %c0_135] : memref<128x128xf32, #tpu.memory_space<vmem>>, vector<8x128xf32>
    %407 = arith.mulf %395, %406 : vector<8x128xf32>
    %408 = arith.addf %405, %407 : vector<8x128xf32>
    %c56_136 = arith.constant 56 : index
    %c0_137 = arith.constant 0 : index
    %409 = vector.load %arg10[%c56_136, %c0_137] : memref<64x1024xf32, #tpu.memory_space<vmem>>, vector<8x512xf32>
    %410 = arith.truncf %375 : vector<8x128xf32> to vector<8x128xbf16>
    %cst_138 = arith.constant dense<0.000000e+00> : vector<8x512xf32>
    %411 = tpu.matmul %410, %7, %cst_138 {dimension_numbers = #tpu.dot_dimension_numbers<[1], [0], [0], [1], [0, 0, 1, 1], [], []>} : vector<8x128xbf16>, vector<128x512xbf16>, vector<8x512xf32> -> vector<8x512xf32>
    %412 = arith.addf %409, %411 : vector<8x512xf32>
    %c0_139 = arith.constant 0 : index
    %c512_140 = arith.constant 512 : index
    %413 = vector.load %arg10[%c0_139, %c512_140] : memref<64x1024xf32, #tpu.memory_space<vmem>>, vector<8x512xf32>
    %414 = arith.truncf %395 : vector<8x128xf32> to vector<8x128xbf16>
    %cst_141 = arith.constant dense<0.000000e+00> : vector<8x512xf32>
    %415 = tpu.matmul %414, %8, %cst_141 {dimension_numbers = #tpu.dot_dimension_numbers<[1], [0], [0], [1], [0, 0, 1, 1], [], []>} : vector<8x128xbf16>, vector<128x512xbf16>, vector<8x512xf32> -> vector<8x512xf32>
    %416 = arith.addf %413, %415 : vector<8x512xf32>
    %417 = vector.extract_strided_slice %412 {offsets = [0, 0], sizes = [8, 384], strides = [1, 1]} : vector<8x512xf32> to vector<8x384xf32>
    %418 = arith.negf %417 : vector<8x384xf32>
    %419 = math.exp %418 : vector<8x384xf32>
    %cst_142 = arith.constant 1.000000e+00 : f32
    %420 = vector.broadcast %cst_142 : f32 to vector<8x384xf32>
    %421 = arith.addf %420, %419 : vector<8x384xf32>
    %422 = arith.divf %420, %421 : vector<8x384xf32>
    %423 = vector.extract_strided_slice %412 {offsets = [0, 384], sizes = [8, 128], strides = [1, 1]} : vector<8x512xf32> to vector<8x128xf32>
    %424 = math.tanh %423 : vector<8x128xf32>
    %425 = vector.extract_strided_slice %422 {offsets = [0, 0], sizes = [8, 128], strides = [1, 1]} : vector<8x384xf32> to vector<8x128xf32>
    %426 = vector.extract_strided_slice %422 {offsets = [0, 128], sizes = [8, 128], strides = [1, 1]} : vector<8x384xf32> to vector<8x128xf32>
    %427 = vector.extract_strided_slice %422 {offsets = [0, 256], sizes = [8, 128], strides = [1, 1]} : vector<8x384xf32> to vector<8x128xf32>
    %428 = arith.mulf %426, %373 : vector<8x128xf32>
    %429 = arith.mulf %425, %424 : vector<8x128xf32>
    %430 = arith.addf %428, %429 : vector<8x128xf32>
    %431 = math.tanh %430 : vector<8x128xf32>
    %432 = arith.mulf %427, %431 : vector<8x128xf32>
    %433 = vector.extract_strided_slice %416 {offsets = [0, 0], sizes = [8, 384], strides = [1, 1]} : vector<8x512xf32> to vector<8x384xf32>
    %434 = arith.negf %433 : vector<8x384xf32>
    %435 = math.exp %434 : vector<8x384xf32>
    %cst_143 = arith.constant 1.000000e+00 : f32
    %436 = vector.broadcast %cst_143 : f32 to vector<8x384xf32>
    %437 = arith.addf %436, %435 : vector<8x384xf32>
    %438 = arith.divf %436, %437 : vector<8x384xf32>
    %439 = vector.extract_strided_slice %416 {offsets = [0, 384], sizes = [8, 128], strides = [1, 1]} : vector<8x512xf32> to vector<8x128xf32>
    %440 = math.tanh %439 : vector<8x128xf32>
    %441 = vector.extract_strided_slice %438 {offsets = [0, 0], sizes = [8, 128], strides = [1, 1]} : vector<8x384xf32> to vector<8x128xf32>
    %442 = vector.extract_strided_slice %438 {offsets = [0, 128], sizes = [8, 128], strides = [1, 1]} : vector<8x384xf32> to vector<8x128xf32>
    %443 = vector.extract_strided_slice %438 {offsets = [0, 256], sizes = [8, 128], strides = [1, 1]} : vector<8x384xf32> to vector<8x128xf32>
    %444 = arith.mulf %442, %396 : vector<8x128xf32>
    %445 = arith.mulf %441, %440 : vector<8x128xf32>
    %446 = arith.addf %444, %445 : vector<8x128xf32>
    %447 = math.tanh %446 : vector<8x128xf32>
    %448 = arith.mulf %443, %447 : vector<8x128xf32>
    %c56_144 = arith.constant 56 : index
    %c0_145 = arith.constant 0 : index
    %449 = vector.load %arg1[%c56_144, %c0_145] : memref<64x128xf32, #tpu.memory_space<vmem>>, vector<8x128xf32>
    %c0_146 = arith.constant 0 : index
    %c0_147 = arith.constant 0 : index
    %450 = vector.load %arg1[%c0_146, %c0_147] : memref<64x128xf32, #tpu.memory_space<vmem>>, vector<8x128xf32>
    %451 = arith.mulf %432, %449 : vector<8x128xf32>
    %452 = arith.mulf %448, %450 : vector<8x128xf32>
    %c56_148 = arith.constant 56 : index
    %c0_149 = arith.constant 0 : index
    %453 = vector.load %arg6[%c56_148, %c0_149] : memref<128x128xf32, #tpu.memory_space<vmem>>, vector<8x128xf32>
    %454 = arith.mulf %451, %453 : vector<8x128xf32>
    %455 = arith.addf %402, %454 : vector<8x128xf32>
    %c0_150 = arith.constant 0 : index
    %c0_151 = arith.constant 0 : index
    %456 = vector.load %arg7[%c0_150, %c0_151] : memref<128x128xf32, #tpu.memory_space<vmem>>, vector<8x128xf32>
    %457 = arith.mulf %452, %456 : vector<8x128xf32>
    %458 = arith.addf %455, %457 : vector<8x128xf32>
    %c120_152 = arith.constant 120 : index
    %c0_153 = arith.constant 0 : index
    %459 = vector.load %arg6[%c120_152, %c0_153] : memref<128x128xf32, #tpu.memory_space<vmem>>, vector<8x128xf32>
    %460 = arith.mulf %451, %459 : vector<8x128xf32>
    %461 = arith.addf %408, %460 : vector<8x128xf32>
    %c64_154 = arith.constant 64 : index
    %c0_155 = arith.constant 0 : index
    %462 = vector.load %arg7[%c64_154, %c0_155] : memref<128x128xf32, #tpu.memory_space<vmem>>, vector<8x128xf32>
    %463 = arith.mulf %452, %462 : vector<8x128xf32>
    %464 = arith.addf %461, %463 : vector<8x128xf32>
    %cst_156 = arith.constant dense<0.000000e+00> : vector<8xf32>
    %465 = vector.multi_reduction <add>, %458, %cst_156 [1] : vector<8x128xf32> to vector<8xf32>
    %466 = vector.shape_cast %465 : vector<8xf32> to vector<8x1xf32>
    %cst_157 = arith.constant dense<0.000000e+00> : vector<8xf32>
    %467 = vector.multi_reduction <add>, %464, %cst_157 [1] : vector<8x128xf32> to vector<8xf32>
    %468 = vector.shape_cast %467 : vector<8xf32> to vector<8x1xf32>
    %469 = tpu.concatenate %466, %468 in 1 : vector<8x1xf32>, vector<8x1xf32> -> vector<8x2xf32>
    %c0_158 = arith.constant 0 : index
    %c0_159 = arith.constant 0 : index
    %470 = vector.load %arg8[%c0_158, %c0_159] : memref<1x2xf32, #tpu.memory_space<vmem>>, vector<1x2xf32>
    %471 = vector.broadcast %470 : vector<1x2xf32> to vector<8x2xf32>
    %472 = arith.addf %469, %471 : vector<8x2xf32>
    %c0_160 = arith.constant 0 : index
    %c0_161 = arith.constant 0 : index
    %473 = vector.load %arg9[%c0_160, %c0_161] : memref<8x2xf32, #tpu.memory_space<vmem>>, vector<8x2xf32>
    tpu.vector_store %arg9[%c0_160, %c0_161], %472 {strides = array<i32>} : memref<8x2xf32, #tpu.memory_space<vmem>>, vector<8x2xf32>,
    return
  }
}

</mosaic_0001>

<llo_original>
// kernel: tpu_custom_call.1
$region0: #{tpu_custom_call.1}
  #allocation0 [shape = 'u32[]', space=smem, size = 0x4, offset = 0x4, fixed_abs, tag = 'smem constant byte address 0x4 - core index']
  #allocation1 [shape = 'u32[72,128]{1,0:T(1,128)}', space=vmem, size = 0x9000, scoped, tag = 'internal scratch']
  #allocation2 [shape = 'f32[64,1024]{1,0:T(8,128)}', space=vmem, size = 0x40000, scoped, tag = 'scratch operand']
  %s0 = inlined_call_operand.vmem [shape: bf16[64,32], index: 0, kind: input, shape index: {}]
  %s1 = inlined_call_operand.hbm [shape: f32[64,128], index: 1, kind: input, shape index: {}]
  %s2 = inlined_call_operand.hbm [shape: bf16[32,1024], index: 2, kind: input, shape index: {}]
  %s3 = inlined_call_operand.vmem [shape: f32[1,1024], index: 3, kind: input, shape index: {}]
  %s4 = inlined_call_operand.hbm [shape: bf16[128,512], index: 4, kind: input, shape index: {}]
  %s5 = inlined_call_operand.hbm [shape: bf16[128,512], index: 5, kind: input, shape index: {}]
  %s6 = inlined_call_operand.hbm [shape: f32[128,128], index: 6, kind: input, shape index: {}]
  %s7 = inlined_call_operand.hbm [shape: f32[128,128], index: 7, kind: input, shape index: {}]
  %s8 = inlined_call_operand.vmem [shape: f32[1,2], index: 8, kind: input, shape index: {}]
  %s9 = inlined_call_operand.vmem [shape: f32[8,2], index: 9, kind: output, shape index: {}]
  %s10 = sld [smem:[#allocation0]]
  $region70: #{tpu_custom_call.1} parent=0
    _
  %s12 = ssub.s32 1, %s10
  %s13 = scalar_select 0, %s12, %s10
  $region1: #{tpu_custom_call.1} parent=0
    #allocation3 [shape = 'u8[32768]{0}', space=vmem, size = 0x8000, scoped, tag = 'input window, operand 1, single buffered']
    #allocation4 [shape = 's32[1]{0}', space=sflag, size = 0x4, scoped, tag = 'scoped memory for tpu_custom_call.1']
    #allocation5 [shape = 'u8[65536]{0}', space=vmem, size = 0x10000, scoped, tag = 'input window, operand 2, single buffered']
    #allocation6 [shape = 's32[1]{0}', space=sflag, size = 0x4, scoped, tag = 'scoped memory for tpu_custom_call.1']
    #allocation7 [shape = 'u8[131072]{0}', space=vmem, size = 0x20000, scoped, tag = 'input window, operand 4, single buffered']
    #allocation8 [shape = 'u8[131072]{0}', space=vmem, size = 0x20000, scoped, tag = 'input window, operand 5, single buffered']
    #allocation9 [shape = 's32[1]{0}', space=sflag, size = 0x4, scoped, tag = 'scoped memory for tpu_custom_call.1']
    #allocation10 [shape = 'u8[65536]{0}', space=vmem, size = 0x10000, scoped, tag = 'input window, operand 6, single buffered']
    #allocation11 [shape = 'u8[65536]{0}', space=vmem, size = 0x10000, scoped, tag = 'input window, operand 7, single buffered']
    #allocation12 [shape = 's32[1]{0}', space=sflag, size = 0x4, scoped, tag = 'scoped memory for tpu_custom_call.1']
    %14 = vsyncpa [#allocation4], 0
    %15 = vsyncpa [#allocation6], 0
    %16 = vsyncpa [#allocation9], 0
    %17 = vsyncpa [#allocation12], 0
    // Predicated region
    $region2: #{tpu_custom_call.1} parent=1 // pred_check
      _
    $region3: #{tpu_custom_call.1} parent=1 // pred_check_branch
      %19 = sbr.rel (0) target = $region5
    $region4: #{tpu_custom_call.1} parent=1 // pred_region
      _
    $region5: #{tpu_custom_call.1} parent=1 // pred_fallthru
      _
    // Predicated region
    $region6: #{tpu_custom_call.1} parent=1 // pred_check
      _
    $region7: #{tpu_custom_call.1} parent=1 // pred_check_branch
      %21 = sbr.rel (0) target = $region9
    $region8: #{tpu_custom_call.1} parent=1 // pred_region
      %23 = vsyncadd [#allocation4], 0
      %s24 = sshll.u32 %s1, 4
      %s25 = int_to_ptr.hbm [resolvable:$true] %s24
      %s26 = sshll.u32 [#allocation3], 4
      %s27 = int_to_ptr.vmem [resolvable:$true] %s26
      %32 = dma.hbm_to_vmem [thread:$0]  %s25, 1024, %s27, [#allocation4], 128, 128, 8
    $region9: #{tpu_custom_call.1} parent=1 // pred_fallthru
      _
    // Predicated region
    $region10: #{tpu_custom_call.1} parent=1 // pred_check
      _
    $region11: #{tpu_custom_call.1} parent=1 // pred_check_branch
      %34 = sbr.rel (0) target = $region13
    $region12: #{tpu_custom_call.1} parent=1 // pred_region
      %36 = vsyncadd [#allocation6], 0
      %s37 = sshll.u32 %s2, 4
      %s38 = int_to_ptr.hbm [resolvable:$true] %s37
      %s39 = sshll.u32 [#allocation5], 4
      %s40 = int_to_ptr.vmem [resolvable:$true] %s39
      %45 = dma.hbm_to_vmem [thread:$0]  %s38, 2048, %s40, [#allocation6], 512, 512, 32
    $region13: #{tpu_custom_call.1} parent=1 // pred_fallthru
      _
    // Predicated region
    $region14: #{tpu_custom_call.1} parent=1 // pred_check
      _
    $region15: #{tpu_custom_call.1} parent=1 // pred_check_branch
      %47 = sbr.rel (0) target = $region17
    $region16: #{tpu_custom_call.1} parent=1 // pred_region
      _
    $region17: #{tpu_custom_call.1} parent=1 // pred_fallthru
      _
    // Predicated region
    $region18: #{tpu_custom_call.1} parent=1 // pred_check
      _
    $region19: #{tpu_custom_call.1} parent=1 // pred_check_branch
      %49 = sbr.rel (0) target = $region21
    $region20: #{tpu_custom_call.1} parent=1 // pred_region
      %51 = vsyncadd [#allocation6], 0
      %s52 = sshll.u32 %s4, 4
      %s53 = int_to_ptr.hbm [resolvable:$true] %s52
      %s54 = sshll.u32 [#allocation7], 4
      %s55 = int_to_ptr.vmem [resolvable:$true] %s54
      %60 = dma.hbm_to_vmem [thread:$0]  %s53, 4096, %s55, [#allocation6], 256, 256, 16
    $region21: #{tpu_custom_call.1} parent=1 // pred_fallthru
      _
    // Predicated region
    $region22: #{tpu_custom_call.1} parent=1 // pred_check
      _
    $region23: #{tpu_custom_call.1} parent=1 // pred_check_branch
      %62 = sbr.rel (0) target = $region25
    $region24: #{tpu_custom_call.1} parent=1 // pred_region
      %64 = vsyncadd [#allocation9], 0
      %s65 = sshll.u32 %s5, 4
      %s66 = int_to_ptr.hbm [resolvable:$true] %s65
      %s67 = sshll.u32 [#allocation8], 4
      %s68 = int_to_ptr.vmem [resolvable:$true] %s67
      %73 = dma.hbm_to_vmem [thread:$0]  %s66, 4096, %s68, [#allocation9], 256, 256, 16
    $region25: #{tpu_custom_call.1} parent=1 // pred_fallthru
      _
    // Predicated region
    $region26: #{tpu_custom_call.1} parent=1 // pred_check
      _
    $region27: #{tpu_custom_call.1} parent=1 // pred_check_branch
      %75 = sbr.rel (0) target = $region29
    $region28: #{tpu_custom_call.1} parent=1 // pred_region
      %77 = vsyncadd [#allocation9], 0
      %s78 = sshll.u32 %s6, 4
      %s79 = int_to_ptr.hbm [resolvable:$true] %s78
      %s80 = sshll.u32 [#allocation10], 4
      %s81 = int_to_ptr.vmem [resolvable:$true] %s80
      %86 = dma.hbm_to_vmem [thread:$0]  %s79, 2048, %s81, [#allocation9], 128, 128, 8
    $region29: #{tpu_custom_call.1} parent=1 // pred_fallthru
      _
    // Predicated region
    $region30: #{tpu_custom_call.1} parent=1 // pred_check
      _
    $region31: #{tpu_custom_call.1} parent=1 // pred_check_branch
      %88 = sbr.rel (0) target = $region33
    $region32: #{tpu_custom_call.1} parent=1 // pred_region
      %90 = vsyncadd [#allocation12], 0
      %s91 = sshll.u32 %s7, 4
      %s92 = int_to_ptr.hbm [resolvable:$true] %s91
      %s93 = sshll.u32 [#allocation11], 4
      %s94 = int_to_ptr.vmem [resolvable:$true] %s93
      %99 = dma.hbm_to_vmem [thread:$0]  %s92, 2048, %s94, [#allocation12], 128, 128, 8
    $region33: #{tpu_custom_call.1} parent=1 // pred_fallthru
      _
    // Predicated region
    $region34: #{tpu_custom_call.1} parent=1 // pred_check
      _
    $region35: #{tpu_custom_call.1} parent=1 // pred_check_branch
      %101 = sbr.rel (0) target = $region37
    $region36: #{tpu_custom_call.1} parent=1 // pred_region
      _
    $region37: #{tpu_custom_call.1} parent=1 // pred_fallthru
      _
    // Predicated region
    $region38: #{tpu_custom_call.1} parent=1 // pred_check
      _
    $region39: #{tpu_custom_call.1} parent=1 // pred_check_branch
      %103 = sbr.rel (0) target = $region41
    $region40: #{tpu_custom_call.1} parent=1 // pred_region
      %105 = dma.done [#allocation4], 1024
    $region41: #{tpu_custom_call.1} parent=1 // pred_fallthru
      _
    // Predicated region
    $region42: #{tpu_custom_call.1} parent=1 // pred_check
      _
    $region43: #{tpu_custom_call.1} parent=1 // pred_check_branch
      %107 = sbr.rel (0) target = $region45
    $region44: #{tpu_custom_call.1} parent=1 // pred_region
      %109 = dma.done [#allocation6], 2048
    $region45: #{tpu_custom_call.1} parent=1 // pred_fallthru
      _
    // Predicated region
    $region46: #{tpu_custom_call.1} parent=1 // pred_check
      _
    $region47: #{tpu_custom_call.1} parent=1 // pred_check_branch
      %111 = sbr.rel (0) target = $region49
    $region48: #{tpu_custom_call.1} parent=1 // pred_region
      %113 = dma.done [#allocation6], 4096
    $region49: #{tpu_custom_call.1} parent=1 // pred_fallthru
      _
    // Predicated region
    $region50: #{tpu_custom_call.1} parent=1 // pred_check
      _
    $region51: #{tpu_custom_call.1} parent=1 // pred_check_branch
      %115 = sbr.rel (0) target = $region53
    $region52: #{tpu_custom_call.1} parent=1 // pred_region
      %117 = dma.done [#allocation9], 4096
    $region53: #{tpu_custom_call.1} parent=1 // pred_fallthru
      _
    // Predicated region
    $region54: #{tpu_custom_call.1} parent=1 // pred_check
      _
    $region55: #{tpu_custom_call.1} parent=1 // pred_check_branch
      %119 = sbr.rel (0) target = $region57
    $region56: #{tpu_custom_call.1} parent=1 // pred_region
      %121 = dma.done [#allocation9], 2048
    $region57: #{tpu_custom_call.1} parent=1 // pred_fallthru
      _
    // Predicated region
    $region58: #{tpu_custom_call.1} parent=1 // pred_check
      _
    $region59: #{tpu_custom_call.1} parent=1 // pred_check_branch
      %123 = sbr.rel (0) target = $region61
    $region60: #{tpu_custom_call.1} parent=1 // pred_region
      %125 = dma.done [#allocation12], 2048
    $region61: #{tpu_custom_call.1} parent=1 // pred_fallthru
      _
    %v127 = vld [vmem:[%s0] sm:$0xf]
    %v128 = vld [vmem:[%s0 + $0x4] sm:$0xf]
    %v129 = vld [vmem:[%s0 + $0x8] sm:$0xf]
    %v130 = vld [vmem:[%s0 + $0xc] sm:$0xf]
    %v131 = vld [vmem:[%s0 + $0x10] sm:$0xf]
    %v132 = vld [vmem:[%s0 + $0x14] sm:$0xf]
    %v133 = vld [vmem:[%s0 + $0x18] sm:$0xf]
    %v134 = vld [vmem:[%s0 + $0x1c] sm:$0xf]
    %v135 = vld [vmem:[#allocation5] sm:$0xff]
    %v136 = vld [vmem:[#allocation5 + $0x8] sm:$0xff]
    %v137 = vld [vmem:[#allocation5 + $0x10] sm:$0xff]
    %v138 = vld [vmem:[#allocation5 + $0x18] sm:$0xff]
    %v139 = vld [vmem:[#allocation5 + $0x20] sm:$0xff]
    %v140 = vld [vmem:[#allocation5 + $0x28] sm:$0xff]
    %v141 = vld [vmem:[#allocation5 + $0x30] sm:$0xff]
    %v142 = vld [vmem:[#allocation5 + $0x38] sm:$0xff]
    %v143 = vld [vmem:[#allocation5 + $0x40] sm:$0xff]
    %v144 = vld [vmem:[#allocation5 + $0x48] sm:$0xff]
    %v145 = vld [vmem:[#allocation5 + $0x50] sm:$0xff]
    %v146 = vld [vmem:[#allocation5 + $0x58] sm:$0xff]
    %v147 = vld [vmem:[#allocation5 + $0x60] sm:$0xff]
    %v148 = vld [vmem:[#allocation5 + $0x68] sm:$0xff]
    %v149 = vld [vmem:[#allocation5 + $0x70] sm:$0xff]
    %v150 = vld [vmem:[#allocation5 + $0x78] sm:$0xff]
    %v151 = vld [vmem:[%s3] sm:$0xff]
    %v153 = vperm.slane %v151, 0
    %v154 = vperm.slane %v151, 1
    %v155 = vperm.slane %v151, 2
    %v156 = vperm.slane %v151, 3
    %v157 = vperm.slane %v151, 4
    %v158 = vperm.slane %v151, 5
    %v159 = vperm.slane %v151, 6
    %v160 = vperm.slane %v151, 7
    %v177 = vunpack.c.l.b16 %v127
    %v178 = vunpack.c.l.b16 %v128
    %v179 = vunpack.c.l.b16 %v129
    %v180 = vunpack.c.l.b16 %v130
    %v181 = vunpack.c.l.b16 %v131
    %v182 = vunpack.c.l.b16 %v132
    %v183 = vunpack.c.l.b16 %v133
    %v184 = vunpack.c.l.b16 %v134
    %v185 = vpack.c.b16 %v178, %v177
    %v186 = vpack.c.b16 %v180, %v179
    %v187 = vpack.c.b16 %v182, %v181
    %v188 = vpack.c.b16 %v184, %v183
    %v205 = vunpack.c.l.b16 %v135
    %v206 = vunpack.c.h.b16 %v135
    %v207 = vunpack.c.l.b16 %v136
    %v208 = vunpack.c.h.b16 %v136
    %v209 = vunpack.c.l.b16 %v137
    %v210 = vunpack.c.h.b16 %v137
    %v211 = vunpack.c.l.b16 %v138
    %v212 = vunpack.c.h.b16 %v138
    %v213 = vunpack.c.l.b16 %v139
    %v214 = vunpack.c.h.b16 %v139
    %v215 = vunpack.c.l.b16 %v140
    %v216 = vunpack.c.h.b16 %v140
    %v217 = vunpack.c.l.b16 %v141
    %v218 = vunpack.c.h.b16 %v141
    %v219 = vunpack.c.l.b16 %v142
    %v220 = vunpack.c.h.b16 %v142
    %v221 = vunpack.c.l.b16 %v143
    %v222 = vunpack.c.h.b16 %v143
    %v223 = vunpack.c.l.b16 %v144
    %v224 = vunpack.c.h.b16 %v144
    %v225 = vunpack.c.l.b16 %v145
    %v226 = vunpack.c.h.b16 %v145
    %v227 = vunpack.c.l.b16 %v146
    %v228 = vunpack.c.h.b16 %v146
    %v229 = vunpack.c.l.b16 %v147
    %v230 = vunpack.c.h.b16 %v147
    %v231 = vunpack.c.l.b16 %v148
    %v232 = vunpack.c.h.b16 %v148
    %v233 = vunpack.c.l.b16 %v149
    %v234 = vunpack.c.h.b16 %v149
    %v235 = vunpack.c.l.b16 %v150
    %v236 = vunpack.c.h.b16 %v150
    %v237 = vpack.c.b16 %v213, %v205
    %v238 = vpack.c.b16 %v214, %v206
    %v239 = vpack.c.b16 %v215, %v207
    %v240 = vpack.c.b16 %v216, %v208
    %v241 = vpack.c.b16 %v217, %v209
    %v242 = vpack.c.b16 %v218, %v210
    %v243 = vpack.c.b16 %v219, %v211
    %v244 = vpack.c.b16 %v220, %v212
    %v245 = vpack.c.b16 %v229, %v221
    %v246 = vpack.c.b16 %v230, %v222
    %v247 = vpack.c.b16 %v231, %v223
    %v248 = vpack.c.b16 %v232, %v224
    %v249 = vpack.c.b16 %v233, %v225
    %v250 = vpack.c.b16 %v234, %v226
    %v251 = vpack.c.b16 %v235, %v227
    %v252 = vpack.c.b16 %v236, %v228
    %vm269 = vcmask 261120
    %v271 = vsel %vm269, %v185, 0
    %v274 = vsel %vm269, %v186, 0
    %v277 = vsel %vm269, %v187, 0
    %v280 = vsel %vm269, %v188, 0
    %282 = vmatpush.bf16.msra.mxu0 0
    %283 = vmatpush.bf16.msra.mxu0 0
    %284 = vmatpush.bf16.msra.mxu0 0
    %285 = vmatpush.bf16.msra.mxu0 0
    %286 = vmatpush.bf16.msra.mxu0 0
    %287 = vmatpush.bf16.msra.mxu0 0
    %288 = vmatpush.bf16.msra.mxu0 %v245
    %289 = vmatpush.bf16.msra.mxu0 %v237
    %290 = vmatmul.bf16.gmra.mxu0 %v271
    %v291 = vpop.f32.mrf.mxu0
    %v292 = vadd.f32 %v153, %v291
    %v293 = vpop.f32.mrf.mxu0
    %v294 = vadd.f32 %v153, %v293
    %295 = vmatmul.bf16.gmra.mxu0 %v274
    %v296 = vpop.f32.mrf.mxu0
    %v297 = vadd.f32 %v153, %v296
    %v298 = vpop.f32.mrf.mxu0
    %v299 = vadd.f32 %v153, %v298
    %300 = vmatmul.bf16.gmra.mxu0 %v277
    %v301 = vpop.f32.mrf.mxu0
    %v302 = vadd.f32 %v153, %v301
    %v303 = vpop.f32.mrf.mxu0
    %v304 = vadd.f32 %v153, %v303
    %305 = vmatmul.bf16.gmra.mxu0 %v280
    %v306 = vpop.f32.mrf.mxu0
    %v307 = vadd.f32 %v153, %v306
    %v308 = vpop.f32.mrf.mxu0
    %v309 = vadd.f32 %v153, %v308
    %310 = vdwg.mxu0
    %311 = vmatpush.bf16.msra.mxu0 0
    %312 = vmatpush.bf16.msra.mxu0 0
    %313 = vmatpush.bf16.msra.mxu0 0
    %314 = vmatpush.bf16.msra.mxu0 0
    %315 = vmatpush.bf16.msra.mxu0 0
    %316 = vmatpush.bf16.msra.mxu0 0
    %317 = vmatpush.bf16.msra.mxu0 %v246
    %318 = vmatpush.bf16.msra.mxu0 %v238
    %319 = vmatmul.bf16.gmra.mxu0 %v271
    %v320 = vpop.f32.mrf.mxu0
    %v321 = vadd.f32 %v154, %v320
    %v322 = vpop.f32.mrf.mxu0
    %v323 = vadd.f32 %v154, %v322
    %324 = vmatmul.bf16.gmra.mxu0 %v274
    %v325 = vpop.f32.mrf.mxu0
    %v326 = vadd.f32 %v154, %v325
    %v327 = vpop.f32.mrf.mxu0
    %v328 = vadd.f32 %v154, %v327
    %329 = vmatmul.bf16.gmra.mxu0 %v277
    %v330 = vpop.f32.mrf.mxu0
    %v331 = vadd.f32 %v154, %v330
    %v332 = vpop.f32.mrf.mxu0
    %v333 = vadd.f32 %v154, %v332
    %334 = vmatmul.bf16.gmra.mxu0 %v280
    %v335 = vpop.f32.mrf.mxu0
    %v336 = vadd.f32 %v154, %v335
    %v337 = vpop.f32.mrf.mxu0
    %v338 = vadd.f32 %v154, %v337
    %339 = vdwg.mxu0
    %340 = vmatpush.bf16.msra.mxu0 0
    %341 = vmatpush.bf16.msra.mxu0 0
    %342 = vmatpush.bf16.msra.mxu0 0
    %343 = vmatpush.bf16.msra.mxu0 0
    %344 = vmatpush.bf16.msra.mxu0 0
    %345 = vmatpush.bf16.msra.mxu0 0
    %346 = vmatpush.bf16.msra.mxu0 %v247
    %347 = vmatpush.bf16.msra.mxu0 %v239
    %348 = vmatmul.bf16.gmra.mxu0 %v271
    %v349 = vpop.f32.mrf.mxu0
    %v350 = vadd.f32 %v155, %v349
    %v351 = vpop.f32.mrf.mxu0
    %v352 = vadd.f32 %v155, %v351
    %353 = vmatmul.bf16.gmra.mxu0 %v274
    %v354 = vpop.f32.mrf.mxu0
    %v355 = vadd.f32 %v155, %v354
    %v356 = vpop.f32.mrf.mxu0
    %v357 = vadd.f32 %v155, %v356
    %358 = vmatmul.bf16.gmra.mxu0 %v277
    %v359 = vpop.f32.mrf.mxu0
    %v360 = vadd.f32 %v155, %v359
    %v361 = vpop.f32.mrf.mxu0
    %v362 = vadd.f32 %v155, %v361
    %363 = vmatmul.bf16.gmra.mxu0 %v280
    %v364 = vpop.f32.mrf.mxu0
    %v365 = vadd.f32 %v155, %v364
    %v366 = vpop.f32.mrf.mxu0
    %v367 = vadd.f32 %v155, %v366
    %368 = vdwg.mxu0
    %369 = vmatpush.bf16.msra.mxu0 0
    %370 = vmatpush.bf16.msra.mxu0 0
    %371 = vmatpush.bf16.msra.mxu0 0
    %372 = vmatpush.bf16.msra.mxu0 0
    %373 = vmatpush.bf16.msra.mxu0 0
    %374 = vmatpush.bf16.msra.mxu0 0
    %375 = vmatpush.bf16.msra.mxu0 %v248
    %376 = vmatpush.bf16.msra.mxu0 %v240
    %377 = vmatmul.bf16.gmra.mxu0 %v271
    %v378 = vpop.f32.mrf.mxu0
    %v379 = vadd.f32 %v156, %v378
    %v380 = vpop.f32.mrf.mxu0
    %v381 = vadd.f32 %v156, %v380
    %382 = vmatmul.bf16.gmra.mxu0 %v274
    %v383 = vpop.f32.mrf.mxu0
    %v384 = vadd.f32 %v156, %v383
    %v385 = vpop.f32.mrf.mxu0
    %v386 = vadd.f32 %v156, %v385
    %387 = vmatmul.bf16.gmra.mxu0 %v277
    %v388 = vpop.f32.mrf.mxu0
    %v389 = vadd.f32 %v156, %v388
    %v390 = vpop.f32.mrf.mxu0
    %v391 = vadd.f32 %v156, %v390
    %392 = vmatmul.bf16.gmra.mxu0 %v280
    %v393 = vpop.f32.mrf.mxu0
    %v394 = vadd.f32 %v156, %v393
    %v395 = vpop.f32.mrf.mxu0
    %v396 = vadd.f32 %v156, %v395
    %397 = vdwg.mxu0
    %398 = vmatpush.bf16.msra.mxu0 0
    %399 = vmatpush.bf16.msra.mxu0 0
    %400 = vmatpush.bf16.msra.mxu0 0
    %401 = vmatpush.bf16.msra.mxu0 0
    %402 = vmatpush.bf16.msra.mxu0 0
    %403 = vmatpush.bf16.msra.mxu0 0
    %404 = vmatpush.bf16.msra.mxu0 %v249
    %405 = vmatpush.bf16.msra.mxu0 %v241
    %406 = vmatmul.bf16.gmra.mxu0 %v271
    %v407 = vpop.f32.mrf.mxu0
    %v408 = vadd.f32 %v157, %v407
    %v409 = vpop.f32.mrf.mxu0
    %v410 = vadd.f32 %v157, %v409
    %411 = vmatmul.bf16.gmra.mxu0 %v274
    %v412 = vpop.f32.mrf.mxu0
    %v413 = vadd.f32 %v157, %v412
    %v414 = vpop.f32.mrf.mxu0
    %v415 = vadd.f32 %v157, %v414
    %416 = vmatmul.bf16.gmra.mxu0 %v277
    %v417 = vpop.f32.mrf.mxu0
    %v418 = vadd.f32 %v157, %v417
    %v419 = vpop.f32.mrf.mxu0
    %v420 = vadd.f32 %v157, %v419
    %421 = vmatmul.bf16.gmra.mxu0 %v280
    %v422 = vpop.f32.mrf.mxu0
    %v423 = vadd.f32 %v157, %v422
    %v424 = vpop.f32.mrf.mxu0
    %v425 = vadd.f32 %v157, %v424
    %426 = vdwg.mxu0
    %427 = vmatpush.bf16.msra.mxu0 0
    %428 = vmatpush.bf16.msra.mxu0 0
    %429 = vmatpush.bf16.msra.mxu0 0
    %430 = vmatpush.bf16.msra.mxu0 0
    %431 = vmatpush.bf16.msra.mxu0 0
    %432 = vmatpush.bf16.msra.mxu0 0
    %433 = vmatpush.bf16.msra.mxu0 %v250
    %434 = vmatpush.bf16.msra.mxu0 %v242
    %435 = vmatmul.bf16.gmra.mxu0 %v271
    %v436 = vpop.f32.mrf.mxu0
    %v437 = vadd.f32 %v158, %v436
    %v438 = vpop.f32.mrf.mxu0
    %v439 = vadd.f32 %v158, %v438
    %440 = vmatmul.bf16.gmra.mxu0 %v274
    %v441 = vpop.f32.mrf.mxu0
    %v442 = vadd.f32 %v158, %v441
    %v443 = vpop.f32.mrf.mxu0
    %v444 = vadd.f32 %v158, %v443
    %445 = vmatmul.bf16.gmra.mxu0 %v277
    %v446 = vpop.f32.mrf.mxu0
    %v447 = vadd.f32 %v158, %v446
    %v448 = vpop.f32.mrf.mxu0
    %v449 = vadd.f32 %v158, %v448
    %450 = vmatmul.bf16.gmra.mxu0 %v280
    %v451 = vpop.f32.mrf.mxu0
    %v452 = vadd.f32 %v158, %v451
    %v453 = vpop.f32.mrf.mxu0
    %v454 = vadd.f32 %v158, %v453
    %455 = vdwg.mxu0
    %456 = vmatpush.bf16.msra.mxu0 0
    %457 = vmatpush.bf16.msra.mxu0 0
    %458 = vmatpush.bf16.msra.mxu0 0
    %459 = vmatpush.bf16.msra.mxu0 0
    %460 = vmatpush.bf16.msra.mxu0 0
    %461 = vmatpush.bf16.msra.mxu0 0
    %462 = vmatpush.bf16.msra.mxu0 %v251
    %463 = vmatpush.bf16.msra.mxu0 %v243
    %464 = vmatmul.bf16.gmra.mxu0 %v271
    %v465 = vpop.f32.mrf.mxu0
    %v466 = vadd.f32 %v159, %v465
    %v467 = vpop.f32.mrf.mxu0
    %v468 = vadd.f32 %v159, %v467
    %469 = vmatmul.bf16.gmra.mxu0 %v274
    %v470 = vpop.f32.mrf.mxu0
    %v471 = vadd.f32 %v159, %v470
    %v472 = vpop.f32.mrf.mxu0
    %v473 = vadd.f32 %v159, %v472
    %474 = vmatmul.bf16.gmra.mxu0 %v277
    %v475 = vpop.f32.mrf.mxu0
    %v476 = vadd.f32 %v159, %v475
    %v477 = vpop.f32.mrf.mxu0
    %v478 = vadd.f32 %v159, %v477
    %479 = vmatmul.bf16.gmra.mxu0 %v280
    %v480 = vpop.f32.mrf.mxu0
    %v481 = vadd.f32 %v159, %v480
    %v482 = vpop.f32.mrf.mxu0
    %v483 = vadd.f32 %v159, %v482
    %484 = vdwg.mxu0
    %485 = vmatpush.bf16.msra.mxu0 0
    %486 = vmatpush.bf16.msra.mxu0 0
    %487 = vmatpush.bf16.msra.mxu0 0
    %488 = vmatpush.bf16.msra.mxu0 0
    %489 = vmatpush.bf16.msra.mxu0 0
    %490 = vmatpush.bf16.msra.mxu0 0
    %491 = vmatpush.bf16.msra.mxu0 %v252
    %492 = vmatpush.bf16.msra.mxu0 %v244
    %493 = vmatmul.bf16.gmra.mxu0 %v271
    %v494 = vpop.f32.mrf.mxu0
    %v495 = vadd.f32 %v160, %v494
    %v496 = vpop.f32.mrf.mxu0
    %v497 = vadd.f32 %v160, %v496
    %498 = vmatmul.bf16.gmra.mxu0 %v274
    %v499 = vpop.f32.mrf.mxu0
    %v500 = vadd.f32 %v160, %v499
    %v501 = vpop.f32.mrf.mxu0
    %v502 = vadd.f32 %v160, %v501
    %503 = vmatmul.bf16.gmra.mxu0 %v277
    %v504 = vpop.f32.mrf.mxu0
    %v505 = vadd.f32 %v160, %v504
    %v506 = vpop.f32.mrf.mxu0
    %v507 = vadd.f32 %v160, %v506
    %508 = vmatmul.bf16.gmra.mxu0 %v280
    %v509 = vpop.f32.mrf.mxu0
    %v510 = vadd.f32 %v160, %v509
    %v511 = vpop.f32.mrf.mxu0
    %v512 = vadd.f32 %v160, %v511
    %513 = vdwg.mxu0
    %514 = vst [vmem:[#allocation2] sm:$0xff] %v292
    %515 = vst [vmem:[#allocation2 + $0x8] sm:$0xff] %v321
    %516 = vst [vmem:[#allocation2 + $0x10] sm:$0xff] %v350
    %517 = vst [vmem:[#allocation2 + $0x18] sm:$0xff] %v379
    %518 = vst [vmem:[#allocation2 + $0x20] sm:$0xff] %v408
    %519 = vst [vmem:[#allocation2 + $0x28] sm:$0xff] %v437
    %520 = vst [vmem:[#allocation2 + $0x30] sm:$0xff] %v466
    %521 = vst [vmem:[#allocation2 + $0x38] sm:$0xff] %v495
    %522 = vst [vmem:[#allocation2 + $0x40] sm:$0xff] %v294
    %523 = vst [vmem:[#allocation2 + $0x48] sm:$0xff] %v323
    %524 = vst [vmem:[#allocation2 + $0x50] sm:$0xff] %v352
    %525 = vst [vmem:[#allocation2 + $0x58] sm:$0xff] %v381
    %526 = vst [vmem:[#allocation2 + $0x60] sm:$0xff] %v410
    %527 = vst [vmem:[#allocation2 + $0x68] sm:$0xff] %v439
    %528 = vst [vmem:[#allocation2 + $0x70] sm:$0xff] %v468
    %529 = vst [vmem:[#allocation2 + $0x78] sm:$0xff] %v497
    %530 = vst [vmem:[#allocation2 + $0x80] sm:$0xff] %v297
    %531 = vst [vmem:[#allocation2 + $0x88] sm:$0xff] %v326
    %532 = vst [vmem:[#allocation2 + $0x90] sm:$0xff] %v355
    %533 = vst [vmem:[#allocation2 + $0x98] sm:$0xff] %v384
    %534 = vst [vmem:[#allocation2 + $0xa0] sm:$0xff] %v413
    %535 = vst [vmem:[#allocation2 + $0xa8] sm:$0xff] %v442
    %536 = vst [vmem:[#allocation2 + $0xb0] sm:$0xff] %v471
    %537 = vst [vmem:[#allocation2 + $0xb8] sm:$0xff] %v500
    %538 = vst [vmem:[#allocation2 + $0xc0] sm:$0xff] %v299
    %539 = vst [vmem:[#allocation2 + $0xc8] sm:$0xff] %v328
    %540 = vst [vmem:[#allocation2 + $0xd0] sm:$0xff] %v357
    %541 = vst [vmem:[#allocation2 + $0xd8] sm:$0xff] %v386
    %542 = vst [vmem:[#allocation2 + $0xe0] sm:$0xff] %v415
    %543 = vst [vmem:[#allocation2 + $0xe8] sm:$0xff] %v444
    %544 = vst [vmem:[#allocation2 + $0xf0] sm:$0xff] %v473
    %545 = vst [vmem:[#allocation2 + $0xf8] sm:$0xff] %v502
    %546 = vst [vmem:[#allocation2 + $0x100] sm:$0xff] %v302
    %547 = vst [vmem:[#allocation2 + $0x108] sm:$0xff] %v331
    %548 = vst [vmem:[#allocation2 + $0x110] sm:$0xff] %v360
    %549 = vst [vmem:[#allocation2 + $0x118] sm:$0xff] %v389
    %550 = vst [vmem:[#allocation2 + $0x120] sm:$0xff] %v418
    %551 = vst [vmem:[#allocation2 + $0x128] sm:$0xff] %v447
    %552 = vst [vmem:[#allocation2 + $0x130] sm:$0xff] %v476
    %553 = vst [vmem:[#allocation2 + $0x138] sm:$0xff] %v505
    %554 = vst [vmem:[#allocation2 + $0x140] sm:$0xff] %v304
    %555 = vst [vmem:[#allocation2 + $0x148] sm:$0xff] %v333
    %556 = vst [vmem:[#allocation2 + $0x150] sm:$0xff] %v362
    %557 = vst [vmem:[#allocation2 + $0x158] sm:$0xff] %v391
    %558 = vst [vmem:[#allocation2 + $0x160] sm:$0xff] %v420
    %559 = vst [vmem:[#allocation2 + $0x168] sm:$0xff] %v449
    %560 = vst [vmem:[#allocation2 + $0x170] sm:$0xff] %v478
    %561 = vst [vmem:[#allocation2 + $0x178] sm:$0xff] %v507
    %562 = vst [vmem:[#allocation2 + $0x180] sm:$0xff] %v307
    %563 = vst [vmem:[#allocation2 + $0x188] sm:$0xff] %v336
    %564 = vst [vmem:[#allocation2 + $0x190] sm:$0xff] %v365
    %565 = vst [vmem:[#allocation2 + $0x198] sm:$0xff] %v394
    %566 = vst [vmem:[#allocation2 + $0x1a0] sm:$0xff] %v423
    %567 = vst [vmem:[#allocation2 + $0x1a8] sm:$0xff] %v452
    %568 = vst [vmem:[#allocation2 + $0x1b0] sm:$0xff] %v481
    %569 = vst [vmem:[#allocation2 + $0x1b8] sm:$0xff] %v510
    %570 = vst [vmem:[#allocation2 + $0x1c0] sm:$0xff] %v309
    %571 = vst [vmem:[#allocation2 + $0x1c8] sm:$0xff] %v338
    %572 = vst [vmem:[#allocation2 + $0x1d0] sm:$0xff] %v367
    %573 = vst [vmem:[#allocation2 + $0x1d8] sm:$0xff] %v396
    %574 = vst [vmem:[#allocation2 + $0x1e0] sm:$0xff] %v425
    %575 = vst [vmem:[#allocation2 + $0x1e8] sm:$0xff] %v454
    %576 = vst [vmem:[#allocation2 + $0x1f0] sm:$0xff] %v483
    %577 = vst [vmem:[#allocation2 + $0x1f8] sm:$0xff] %v512
    %v578 = vld [vmem:[#allocation7] sm:$0xff]
    %v579 = vld [vmem:[#allocation7 + $0x8] sm:$0xff]
    %v580 = vld [vmem:[#allocation7 + $0x10] sm:$0xff]
    %v581 = vld [vmem:[#allocation7 + $0x18] sm:$0xff]
    %v582 = vld [vmem:[#allocation7 + $0x20] sm:$0xff]
    %v583 = vld [vmem:[#allocation7 + $0x28] sm:$0xff]
    %v584 = vld [vmem:[#allocation7 + $0x30] sm:$0xff]
    %v585 = vld [vmem:[#allocation7 + $0x38] sm:$0xff]
    %v586 = vld [vmem:[#allocation7 + $0x40] sm:$0xff]
    %v587 = vld [vmem:[#allocation7 + $0x48] sm:$0xff]
    %v588 = vld [vmem:[#allocation7 + $0x50] sm:$0xff]
    %v589 = vld [vmem:[#allocation7 + $0x58] sm:$0xff]
    %v590 = vld [vmem:[#allocation7 + $0x60] sm:$0xff]
    %v591 = vld [vmem:[#allocation7 + $0x68] sm:$0xff]
    %v592 = vld [vmem:[#allocation7 + $0x70] sm:$0xff]
    %v593 = vld [vmem:[#allocation7 + $0x78] sm:$0xff]
    %v594 = vld [vmem:[#allocation7 + $0x80] sm:$0xff]
    %v595 = vld [vmem:[#allocation7 + $0x88] sm:$0xff]
    %v596 = vld [vmem:[#allocation7 + $0x90] sm:$0xff]
    %v597 = vld [vmem:[#allocation7 + $0x98] sm:$0xff]
    %v598 = vld [vmem:[#allocation7 + $0xa0] sm:$0xff]
    %v599 = vld [vmem:[#allocation7 + $0xa8] sm:$0xff]
    %v600 = vld [vmem:[#allocation7 + $0xb0] sm:$0xff]
    %v601 = vld [vmem:[#allocation7 + $0xb8] sm:$0xff]
    %v602 = vld [vmem:[#allocation7 + $0xc0] sm:$0xff]
    %v603 = vld [vmem:[#allocation7 + $0xc8] sm:$0xff]
    %v604 = vld [vmem:[#allocation7 + $0xd0] sm:$0xff]
    %v605 = vld [vmem:[#allocation7 + $0xd8] sm:$0xff]
    %v606 = vld [vmem:[#allocation7 + $0xe0] sm:$0xff]
    %v607 = vld [vmem:[#allocation7 + $0xe8] sm:$0xff]
    %v608 = vld [vmem:[#allocation7 + $0xf0] sm:$0xff]
    %v609 = vld [vmem:[#allocation7 + $0xf8] sm:$0xff]
    %v610 = vld [vmem:[#allocation8] sm:$0xff]
    %v611 = vld [vmem:[#allocation8 + $0x8] sm:$0xff]
    %v612 = vld [vmem:[#allocation8 + $0x10] sm:$0xff]
    %v613 = vld [vmem:[#allocation8 + $0x18] sm:$0xff]
    %v614 = vld [vmem:[#allocation8 + $0x20] sm:$0xff]
    %v615 = vld [vmem:[#allocation8 + $0x28] sm:$0xff]
    %v616 = vld [vmem:[#allocation8 + $0x30] sm:$0xff]
    %v617 = vld [vmem:[#allocation8 + $0x38] sm:$0xff]
    %v618 = vld [vmem:[#allocation8 + $0x40] sm:$0xff]
    %v619 = vld [vmem:[#allocation8 + $0x48] sm:$0xff]
    %v620 = vld [vmem:[#allocation8 + $0x50] sm:$0xff]
    %v621 = vld [vmem:[#allocation8 + $0x58] sm:$0xff]
    %v622 = vld [vmem:[#allocation8 + $0x60] sm:$0xff]
    %v623 = vld [vmem:[#allocation8 + $0x68] sm:$0xff]
    %v624 = vld [vmem:[#allocation8 + $0x70] sm:$0xff]
    %v625 = vld [vmem:[#allocation8 + $0x78] sm:$0xff]
    %v626 = vld [vmem:[#allocation8 + $0x80] sm:$0xff]
    %v627 = vld [vmem:[#allocation8 + $0x88] sm:$0xff]
    %v628 = vld [vmem:[#allocation8 + $0x90] sm:$0xff]
    %v629 = vld [vmem:[#allocation8 + $0x98] sm:$0xff]
    %v630 = vld [vmem:[#allocation8 + $0xa0] sm:$0xff]
    %v631 = vld [vmem:[#allocation8 + $0xa8] sm:$0xff]
    %v632 = vld [vmem:[#allocation8 + $0xb0] sm:$0xff]
    %v633 = vld [vmem:[#allocation8 + $0xb8] sm:$0xff]
    %v634 = vld [vmem:[#allocation8 + $0xc0] sm:$0xff]
    %v635 = vld [vmem:[#allocation8 + $0xc8] sm:$0xff]
    %v636 = vld [vmem:[#allocation8 + $0xd0] sm:$0xff]
    %v637 = vld [vmem:[#allocation8 + $0xd8] sm:$0xff]
    %v638 = vld [vmem:[#allocation8 + $0xe0] sm:$0xff]
    %v639 = vld [vmem:[#allocation8 + $0xe8] sm:$0xff]
    %v640 = vld [vmem:[#allocation8 + $0xf0] sm:$0xff]
    %v641 = vld [vmem:[#allocation8 + $0xf8] sm:$0xff]
    %v642 = vld [vmem:[#allocation2] sm:$0xff]
    %v643 = vld [vmem:[#allocation2 + $0x8] sm:$0xff]
    %v644 = vld [vmem:[#allocation2 + $0x10] sm:$0xff]
    %v645 = vld [vmem:[#allocation2 + $0x18] sm:$0xff]
    %v678 = vunpack.c.l.b16 %v578
    %v679 = vunpack.c.h.b16 %v578
    %v680 = vunpack.c.l.b16 %v579
    %v681 = vunpack.c.h.b16 %v579
    %v682 = vunpack.c.l.b16 %v580
    %v683 = vunpack.c.h.b16 %v580
    %v684 = vunpack.c.l.b16 %v581
    %v685 = vunpack.c.h.b16 %v581
    %v686 = vunpack.c.l.b16 %v582
    %v687 = vunpack.c.h.b16 %v582
    %v688 = vunpack.c.l.b16 %v583
    %v689 = vunpack.c.h.b16 %v583
    %v690 = vunpack.c.l.b16 %v584
    %v691 = vunpack.c.h.b16 %v584
    %v692 = vunpack.c.l.b16 %v585
    %v693 = vunpack.c.h.b16 %v585
    %v694 = vunpack.c.l.b16 %v586
    %v695 = vunpack.c.h.b16 %v586
    %v696 = vunpack.c.l.b16 %v587
    %v697 = vunpack.c.h.b16 %v587
    %v698 = vunpack.c.l.b16 %v588
    %v699 = vunpack.c.h.b16 %v588
    %v700 = vunpack.c.l.b16 %v589
    %v701 = vunpack.c.h.b16 %v589
    %v702 = vunpack.c.l.b16 %v590
    %v703 = vunpack.c.h.b16 %v590
    %v704 = vunpack.c.l.b16 %v591
    %v705 = vunpack.c.h.b16 %v591
    %v706 = vunpack.c.l.b16 %v592
    %v707 = vunpack.c.h.b16 %v592
    %v708 = vunpack.c.l.b16 %v593
    %v709 = vunpack.c.h.b16 %v593
    %v710 = vunpack.c.l.b16 %v594
    %v711 = vunpack.c.h.b16 %v594
    %v712 = vunpack.c.l.b16 %v595
    %v713 = vunpack.c.h.b16 %v595
    %v714 = vunpack.c.l.b16 %v596
    %v715 = vunpack.c.h.b16 %v596
    %v716 = vunpack.c.l.b16 %v597
    %v717 = vunpack.c.h.b16 %v597
    %v718 = vunpack.c.l.b16 %v598
    %v719 = vunpack.c.h.b16 %v598
    %v720 = vunpack.c.l.b16 %v599
    %v721 = vunpack.c.h.b16 %v599
    %v722 = vunpack.c.l.b16 %v600
    %v723 = vunpack.c.h.b16 %v600
    %v724 = vunpack.c.l.b16 %v601
    %v725 = vunpack.c.h.b16 %v601
    %v726 = vunpack.c.l.b16 %v602
    %v727 = vunpack.c.h.b16 %v602
    %v728 = vunpack.c.l.b16 %v603
    %v729 = vunpack.c.h.b16 %v603
    %v730 = vunpack.c.l.b16 %v604
    %v731 = vunpack.c.h.b16 %v604
    %v732 = vunpack.c.l.b16 %v605
    %v733 = vunpack.c.h.b16 %v605
    %v734 = vunpack.c.l.b16 %v606
    %v735 = vunpack.c.h.b16 %v606
    %v736 = vunpack.c.l.b16 %v607
    %v737 = vunpack.c.h.b16 %v607
    %v738 = vunpack.c.l.b16 %v608
    %v739 = vunpack.c.h.b16 %v608
    %v740 = vunpack.c.l.b16 %v609
    %v741 = vunpack.c.h.b16 %v609
    %v742 = vpack.c.b16 %v682, %v678
    %v743 = vpack.c.b16 %v683, %v679
    %v744 = vpack.c.b16 %v684, %v680
    %v745 = vpack.c.b16 %v685, %v681
    %v746 = vpack.c.b16 %v690, %v686
    %v747 = vpack.c.b16 %v691, %v687
    %v748 = vpack.c.b16 %v692, %v688
    %v749 = vpack.c.b16 %v693, %v689
    %v750 = vpack.c.b16 %v698, %v694
    %v751 = vpack.c.b16 %v699, %v695
    %v752 = vpack.c.b16 %v700, %v696
    %v753 = vpack.c.b16 %v701, %v697
    %v754 = vpack.c.b16 %v706, %v702
    %v755 = vpack.c.b16 %v707, %v703
    %v756 = vpack.c.b16 %v708, %v704
    %v757 = vpack.c.b16 %v709, %v705
    %v758 = vpack.c.b16 %v714, %v710
    %v759 = vpack.c.b16 %v715, %v711
    %v760 = vpack.c.b16 %v716, %v712
    %v761 = vpack.c.b16 %v717, %v713
    %v762 = vpack.c.b16 %v722, %v718
    %v763 = vpack.c.b16 %v723, %v719
    %v764 = vpack.c.b16 %v724, %v720
    %v765 = vpack.c.b16 %v725, %v721
    %v766 = vpack.c.b16 %v730, %v726
    %v767 = vpack.c.b16 %v731, %v727
    %v768 = vpack.c.b16 %v732, %v728
    %v769 = vpack.c.b16 %v733, %v729
    %v770 = vpack.c.b16 %v738, %v734
    %v771 = vpack.c.b16 %v739, %v735
    %v772 = vpack.c.b16 %v740, %v736
    %v773 = vpack.c.b16 %v741, %v737
    %806 = vmatpush.bf16.msra.mxu0 %v770
    %807 = vmatpush.bf16.msra.mxu0 %v766
    %808 = vmatpush.bf16.msra.mxu0 %v762
    %809 = vmatpush.bf16.msra.mxu0 %v758
    %810 = vmatpush.bf16.msra.mxu0 %v754
    %811 = vmatpush.bf16.msra.mxu0 %v750
    %812 = vmatpush.bf16.msra.mxu0 %v746
    %813 = vmatpush.bf16.msra.mxu0 %v742
    %814 = vmatmul.bf16.gmra.mxu0 0
    %v815 = vpop.f32.mrf.mxu0
    %v816 = vadd.f32 0.0, %v815
    %v817 = vpop.f32.mrf.mxu0
    %818 = vdwg.mxu0
    %819 = vmatpush.bf16.msra.mxu0 %v771
    %820 = vmatpush.bf16.msra.mxu0 %v767
    %821 = vmatpush.bf16.msra.mxu0 %v763
    %822 = vmatpush.bf16.msra.mxu0 %v759
    %823 = vmatpush.bf16.msra.mxu0 %v755
    %824 = vmatpush.bf16.msra.mxu0 %v751
    %825 = vmatpush.bf16.msra.mxu0 %v747
    %826 = vmatpush.bf16.msra.mxu0 %v743
    %827 = vmatmul.bf16.gmra.mxu0 0
    %v828 = vpop.f32.mrf.mxu0
    %v829 = vadd.f32 0.0, %v828
    %v830 = vpop.f32.mrf.mxu0
    %831 = vdwg.mxu0
    %832 = vmatpush.bf16.msra.mxu0 %v772
    %833 = vmatpush.bf16.msra.mxu0 %v768
    %834 = vmatpush.bf16.msra.mxu0 %v764
    %835 = vmatpush.bf16.msra.mxu0 %v760
    %836 = vmatpush.bf16.msra.mxu0 %v756
    %837 = vmatpush.bf16.msra.mxu0 %v752
    %838 = vmatpush.bf16.msra.mxu0 %v748
    %839 = vmatpush.bf16.msra.mxu0 %v744
    %840 = vmatmul.bf16.gmra.mxu0 0
    %v841 = vpop.f32.mrf.mxu0
    %v842 = vadd.f32 0.0, %v841
    %v843 = vpop.f32.mrf.mxu0
    %844 = vdwg.mxu0
    %845 = vmatpush.bf16.msra.mxu0 %v773
    %846 = vmatpush.bf16.msra.mxu0 %v769
    %847 = vmatpush.bf16.msra.mxu0 %v765
    %848 = vmatpush.bf16.msra.mxu0 %v761
    %849 = vmatpush.bf16.msra.mxu0 %v757
    %850 = vmatpush.bf16.msra.mxu0 %v753
    %851 = vmatpush.bf16.msra.mxu0 %v749
    %852 = vmatpush.bf16.msra.mxu0 %v745
    %853 = vmatmul.bf16.gmra.mxu0 0
    %v854 = vpop.f32.mrf.mxu0
    %v855 = vadd.f32 0.0, %v854
    %v856 = vpop.f32.mrf.mxu0
    %857 = vdwg.mxu0
    %v858 = vadd.f32 %v642, %v816
    %v859 = vadd.f32 %v643, %v829
    %v860 = vadd.f32 %v644, %v842
    %v861 = vadd.f32 %v645, %v855
    %v862 = vld [vmem:[#allocation2 + $0x1e0] sm:$0xff]
    %v863 = vld [vmem:[#allocation2 + $0x1e8] sm:$0xff]
    %v864 = vld [vmem:[#allocation2 + $0x1f0] sm:$0xff]
    %v865 = vld [vmem:[#allocation2 + $0x1f8] sm:$0xff]
    %v898 = vunpack.c.l.b16 %v610
    %v899 = vunpack.c.h.b16 %v610
    %v900 = vunpack.c.l.b16 %v611
    %v901 = vunpack.c.h.b16 %v611
    %v902 = vunpack.c.l.b16 %v612
    %v903 = vunpack.c.h.b16 %v612
    %v904 = vunpack.c.l.b16 %v613
    %v905 = vunpack.c.h.b16 %v613
    %v906 = vunpack.c.l.b16 %v614
    %v907 = vunpack.c.h.b16 %v614
    %v908 = vunpack.c.l.b16 %v615
    %v909 = vunpack.c.h.b16 %v615
    %v910 = vunpack.c.l.b16 %v616
    %v911 = vunpack.c.h.b16 %v616
    %v912 = vunpack.c.l.b16 %v617
    %v913 = vunpack.c.h.b16 %v617
    %v914 = vunpack.c.l.b16 %v618
    %v915 = vunpack.c.h.b16 %v618
    %v916 = vunpack.c.l.b16 %v619
    %v917 = vunpack.c.h.b16 %v619
    %v918 = vunpack.c.l.b16 %v620
    %v919 = vunpack.c.h.b16 %v620
    %v920 = vunpack.c.l.b16 %v621
    %v921 = vunpack.c.h.b16 %v621
    %v922 = vunpack.c.l.b16 %v622
    %v923 = vunpack.c.h.b16 %v622
    %v924 = vunpack.c.l.b16 %v623
    %v925 = vunpack.c.h.b16 %v623
    %v926 = vunpack.c.l.b16 %v624
    %v927 = vunpack.c.h.b16 %v624
    %v928 = vunpack.c.l.b16 %v625
    %v929 = vunpack.c.h.b16 %v625
    %v930 = vunpack.c.l.b16 %v626
    %v931 = vunpack.c.h.b16 %v626
    %v932 = vunpack.c.l.b16 %v627
    %v933 = vunpack.c.h.b16 %v627
    %v934 = vunpack.c.l.b16 %v628
    %v935 = vunpack.c.h.b16 %v628
    %v936 = vunpack.c.l.b16 %v629
    %v937 = vunpack.c.h.b16 %v629
    %v938 = vunpack.c.l.b16 %v630
    %v939 = vunpack.c.h.b16 %v630
    %v940 = vunpack.c.l.b16 %v631
    %v941 = vunpack.c.h.b16 %v631
    %v942 = vunpack.c.l.b16 %v632
    %v943 = vunpack.c.h.b16 %v632
    %v944 = vunpack.c.l.b16 %v633
    %v945 = vunpack.c.h.b16 %v633
    %v946 = vunpack.c.l.b16 %v634
    %v947 = vunpack.c.h.b16 %v634
    %v948 = vunpack.c.l.b16 %v635
    %v949 = vunpack.c.h.b16 %v635
    %v950 = vunpack.c.l.b16 %v636
    %v951 = vunpack.c.h.b16 %v636
    %v952 = vunpack.c.l.b16 %v637
    %v953 = vunpack.c.h.b16 %v637
    %v954 = vunpack.c.l.b16 %v638
    %v955 = vunpack.c.h.b16 %v638
    %v956 = vunpack.c.l.b16 %v639
    %v957 = vunpack.c.h.b16 %v639
    %v958 = vunpack.c.l.b16 %v640
    %v959 = vunpack.c.h.b16 %v640
    %v960 = vunpack.c.l.b16 %v641
    %v961 = vunpack.c.h.b16 %v641
    %v962 = vpack.c.b16 %v902, %v898
    %v963 = vpack.c.b16 %v903, %v899
    %v964 = vpack.c.b16 %v904, %v900
    %v965 = vpack.c.b16 %v905, %v901
    %v966 = vpack.c.b16 %v910, %v906
    %v967 = vpack.c.b16 %v911, %v907
    %v968 = vpack.c.b16 %v912, %v908
    %v969 = vpack.c.b16 %v913, %v909
    %v970 = vpack.c.b16 %v918, %v914
    %v971 = vpack.c.b16 %v919, %v915
    %v972 = vpack.c.b16 %v920, %v916
    %v973 = vpack.c.b16 %v921, %v917
    %v974 = vpack.c.b16 %v926, %v922
    %v975 = vpack.c.b16 %v927, %v923
    %v976 = vpack.c.b16 %v928, %v924
    %v977 = vpack.c.b16 %v929, %v925
    %v978 = vpack.c.b16 %v934, %v930
    %v979 = vpack.c.b16 %v935, %v931
    %v980 = vpack.c.b16 %v936, %v932
    %v981 = vpack.c.b16 %v937, %v933
    %v982 = vpack.c.b16 %v942, %v938
    %v983 = vpack.c.b16 %v943, %v939
    %v984 = vpack.c.b16 %v944, %v940
    %v985 = vpack.c.b16 %v945, %v941
    %v986 = vpack.c.b16 %v950, %v946
    %v987 = vpack.c.b16 %v951, %v947
    %v988 = vpack.c.b16 %v952, %v948
    %v989 = vpack.c.b16 %v953, %v949
    %v990 = vpack.c.b16 %v958, %v954
    %v991 = vpack.c.b16 %v959, %v955
    %v992 = vpack.c.b16 %v960, %v956
    %v993 = vpack.c.b16 %v961, %v957
    %1026 = vmatpush.bf16.msra.mxu0 %v990
    %1027 = vmatpush.bf16.msra.mxu0 %v986
    %1028 = vmatpush.bf16.msra.mxu0 %v982
    %1029 = vmatpush.bf16.msra.mxu0 %v978
    %1030 = vmatpush.bf16.msra.mxu0 %v974
    %1031 = vmatpush.bf16.msra.mxu0 %v970
    %1032 = vmatpush.bf16.msra.mxu0 %v966
    %1033 = vmatpush.bf16.msra.mxu0 %v962
    %1034 = vmatmul.bf16.gmra.mxu0 0
    %v1035 = vpop.f32.mrf.mxu0
    %v1036 = vadd.f32 0.0, %v1035
    %v1037 = vpop.f32.mrf.mxu0
    %1038 = vdwg.mxu0
    %1039 = vmatpush.bf16.msra.mxu0 %v991
    %1040 = vmatpush.bf16.msra.mxu0 %v987
    %1041 = vmatpush.bf16.msra.mxu0 %v983
    %1042 = vmatpush.bf16.msra.mxu0 %v979
    %1043 = vmatpush.bf16.msra.mxu0 %v975
    %1044 = vmatpush.bf16.msra.mxu0 %v971
    %1045 = vmatpush.bf16.msra.mxu0 %v967
    %1046 = vmatpush.bf16.msra.mxu0 %v963
    %1047 = vmatmul.bf16.gmra.mxu0 0
    %v1048 = vpop.f32.mrf.mxu0
    %v1049 = vadd.f32 0.0, %v1048
    %v1050 = vpop.f32.mrf.mxu0
    %1051 = vdwg.mxu0
    %1052 = vmatpush.bf16.msra.mxu0 %v992
    %1053 = vmatpush.bf16.msra.mxu0 %v988
    %1054 = vmatpush.bf16.msra.mxu0 %v984
    %1055 = vmatpush.bf16.msra.mxu0 %v980
    %1056 = vmatpush.bf16.msra.mxu0 %v976
    %1057 = vmatpush.bf16.msra.mxu0 %v972
    %1058 = vmatpush.bf16.msra.mxu0 %v968
    %1059 = vmatpush.bf16.msra.mxu0 %v964
    %1060 = vmatmul.bf16.gmra.mxu0 0
    %v1061 = vpop.f32.mrf.mxu0
    %v1062 = vadd.f32 0.0, %v1061
    %v1063 = vpop.f32.mrf.mxu0
    %1064 = vdwg.mxu0
    %1065 = vmatpush.bf16.msra.mxu0 %v993
    %1066 = vmatpush.bf16.msra.mxu0 %v989
    %1067 = vmatpush.bf16.msra.mxu0 %v985
    %1068 = vmatpush.bf16.msra.mxu0 %v981
    %1069 = vmatpush.bf16.msra.mxu0 %v977
    %1070 = vmatpush.bf16.msra.mxu0 %v973
    %1071 = vmatpush.bf16.msra.mxu0 %v969
    %1072 = vmatpush.bf16.msra.mxu0 %v965
    %1073 = vmatmul.bf16.gmra.mxu0 0
    %v1074 = vpop.f32.mrf.mxu0
    %v1075 = vadd.f32 0.0, %v1074
    %v1076 = vpop.f32.mrf.mxu0
    %1077 = vdwg.mxu0
    %v1078 = vadd.f32 %v862, %v1036
    %v1079 = vadd.f32 %v863, %v1049
    %v1080 = vadd.f32 %v864, %v1062
    %v1081 = vadd.f32 %v865, %v1075
    %v1082 = vxor.u32 %v858, 2147483648
    %v1083 = vxor.u32 %v859, 2147483648
    %v1084 = vxor.u32 %v860, 2147483648
    %v1085 = vmul.f32 %v1082, 1.442695
    %v1086 = vpow.pop %v1085
    %v1087 = vmul.f32 %v1083, 1.442695
    %v1088 = vpow.pop %v1087
    %v1089 = vmul.f32 %v1084, 1.442695
    %v1090 = vpow.pop %v1089
    %v1091 = vadd.f32 %v1086, 1.0
    %v1092 = vadd.f32 %v1088, 1.0
    %v1093 = vadd.f32 %v1090, 1.0
    %v1094 = vrcp.pop %v1091
    %v1095 = vmul.f32 %v1091, %v1094
    %v1096 = vsub.f32 1.0, %v1095
    %v1097 = vmul.f32 %v1094, %v1096
    %v1098 = vadd.f32 %v1094, %v1097
    %vm1099 = vweird.f32 %v1091
    %vm1100 = vweird.f32 %v1094
    %vm1101 = vmor %vm1099, %vm1100
    %v1102 = vsel %vm1101, %v1094, %v1098
    %v1103 = vand.u32 2147483647, %v1091
    %vm1104 = vcmp.eq.f32.partialorder %v1103, 8.507059e+37
    %v1105 = vand.u32 %v1091, 2147483648
    %v1106 = vor.u32 1.1754944e-38, %v1105
    %v1107 = vsel %vm1104, %v1106, %v1102
    %v1108 = vmul.f32 1.0, %v1107
    %v1109 = vrcp.pop %v1092
    %v1110 = vmul.f32 %v1092, %v1109
    %v1111 = vsub.f32 1.0, %v1110
    %v1112 = vmul.f32 %v1109, %v1111
    %v1113 = vadd.f32 %v1109, %v1112
    %vm1114 = vweird.f32 %v1092
    %vm1115 = vweird.f32 %v1109
    %vm1116 = vmor %vm1114, %vm1115
    %v1117 = vsel %vm1116, %v1109, %v1113
    %v1118 = vand.u32 2147483647, %v1092
    %vm1119 = vcmp.eq.f32.partialorder %v1118, 8.507059e+37
    %v1120 = vand.u32 %v1092, 2147483648
    %v1121 = vor.u32 1.1754944e-38, %v1120
    %v1122 = vsel %vm1119, %v1121, %v1117
    %v1123 = vmul.f32 1.0, %v1122
    %v1124 = vrcp.pop %v1093
    %v1125 = vmul.f32 %v1093, %v1124
    %v1126 = vsub.f32 1.0, %v1125
    %v1127 = vmul.f32 %v1124, %v1126
    %v1128 = vadd.f32 %v1124, %v1127
    %vm1129 = vweird.f32 %v1093
    %vm1130 = vweird.f32 %v1124
    %vm1131 = vmor %vm1129, %vm1130
    %v1132 = vsel %vm1131, %v1124, %v1128
    %v1133 = vand.u32 2147483647, %v1093
    %vm1134 = vcmp.eq.f32.partialorder %v1133, 8.507059e+37
    %v1135 = vand.u32 %v1093, 2147483648
    %v1136 = vor.u32 1.1754944e-38, %v1135
    %v1137 = vsel %vm1134, %v1136, %v1132
    %v1138 = vmul.f32 1.0, %v1137
    %v1139 = vtanh.pop %v861
    %v1140 = vmul.f32 %v1123, 0.0
    %v1141 = vmul.f32 %v1108, %v1139
    %v1142 = vadd.f32 %v1140, %v1141
    %v1143 = vtanh.pop %v1142
    %v1144 = vmul.f32 %v1138, %v1143
    %v1145 = vxor.u32 %v1078, 2147483648
    %v1146 = vxor.u32 %v1079, 2147483648
    %v1147 = vxor.u32 %v1080, 2147483648
    %v1148 = vmul.f32 %v1145, 1.442695
    %v1149 = vpow.pop %v1148
    %v1150 = vmul.f32 %v1146, 1.442695
    %v1151 = vpow.pop %v1150
    %v1152 = vmul.f32 %v1147, 1.442695
    %v1153 = vpow.pop %v1152
    %v1154 = vadd.f32 %v1149, 1.0
    %v1155 = vadd.f32 %v1151, 1.0
    %v1156 = vadd.f32 %v1153, 1.0
    %v1157 = vrcp.pop %v1154
    %v1158 = vmul.f32 %v1154, %v1157
    %v1159 = vsub.f32 1.0, %v1158
    %v1160 = vmul.f32 %v1157, %v1159
    %v1161 = vadd.f32 %v1157, %v1160
    %vm1162 = vweird.f32 %v1154
    %vm1163 = vweird.f32 %v1157
    %vm1164 = vmor %vm1162, %vm1163
    %v1165 = vsel %vm1164, %v1157, %v1161
    %v1166 = vand.u32 2147483647, %v1154
    %vm1167 = vcmp.eq.f32.partialorder %v1166, 8.507059e+37
    %v1168 = vand.u32 %v1154, 2147483648
    %v1169 = vor.u32 1.1754944e-38, %v1168
    %v1170 = vsel %vm1167, %v1169, %v1165
    %v1171 = vmul.f32 1.0, %v1170
    %v1172 = vrcp.pop %v1155
    %v1173 = vmul.f32 %v1155, %v1172
    %v1174 = vsub.f32 1.0, %v1173
    %v1175 = vmul.f32 %v1172, %v1174
    %v1176 = vadd.f32 %v1172, %v1175
    %vm1177 = vweird.f32 %v1155
    %vm1178 = vweird.f32 %v1172
    %vm1179 = vmor %vm1177, %vm1178
    %v1180 = vsel %vm1179, %v1172, %v1176
    %v1181 = vand.u32 2147483647, %v1155
    %vm1182 = vcmp.eq.f32.partialorder %v1181, 8.507059e+37
    %v1183 = vand.u32 %v1155, 2147483648
    %v1184 = vor.u32 1.1754944e-38, %v1183
    %v1185 = vsel %vm1182, %v1184, %v1180
    %v1186 = vmul.f32 1.0, %v1185
    %v1187 = vrcp.pop %v1156
    %v1188 = vmul.f32 %v1156, %v1187
    %v1189 = vsub.f32 1.0, %v1188
    %v1190 = vmul.f32 %v1187, %v1189
    %v1191 = vadd.f32 %v1187, %v1190
    %vm1192 = vweird.f32 %v1156
    %vm1193 = vweird.f32 %v1187
    %vm1194 = vmor %vm1192, %vm1193
    %v1195 = vsel %vm1194, %v1187, %v1191
    %v1196 = vand.u32 2147483647, %v1156
    %vm1197 = vcmp.eq.f32.partialorder %v1196, 8.507059e+37
    %v1198 = vand.u32 %v1156, 2147483648
    %v1199 = vor.u32 1.1754944e-38, %v1198
    %v1200 = vsel %vm1197, %v1199, %v1195
    %v1201 = vmul.f32 1.0, %v1200
    %v1202 = vtanh.pop %v1081
    %v1203 = vmul.f32 %v1186, 0.0
    %v1204 = vmul.f32 %v1171, %v1202
    %v1205 = vadd.f32 %v1203, %v1204
    %v1206 = vtanh.pop %v1205
    %v1207 = vmul.f32 %v1201, %v1206
    %v1208 = vld [vmem:[#allocation3] sm:$0xff]
    %v1209 = vld [vmem:[#allocation3 + $0x38] sm:$0xff]
    %v1210 = vmul.f32 %v1144, %v1208
    %v1211 = vmul.f32 %v1207, %v1209
    %v1212 = vmul.f32 %v1205, %v1209
    %v1213 = vld [vmem:[#allocation10] sm:$0xff]
    %v1214 = vmul.f32 %v1210, %v1213
    %v1215 = vadd.f32 %v1214, 0.0
    %v1216 = vld [vmem:[#allocation11 + $0x38] sm:$0xff]
    %v1217 = vmul.f32 %v1211, %v1216
    %v1218 = vadd.f32 %v1215, %v1217
    %v1219 = vld [vmem:[#allocation10 + $0x40] sm:$0xff]
    %v1220 = vmul.f32 %v1210, %v1219
    %v1221 = vadd.f32 %v1220, 0.0
    %v1222 = vld [vmem:[#allocation11 + $0x78] sm:$0xff]
    %v1223 = vmul.f32 %v1211, %v1222
    %v1224 = vadd.f32 %v1221, %v1223
    %v1225 = vld [vmem:[#allocation2 + $0x40] sm:$0xff]
    %v1226 = vld [vmem:[#allocation2 + $0x48] sm:$0xff]
    %v1227 = vld [vmem:[#allocation2 + $0x50] sm:$0xff]
    %v1228 = vld [vmem:[#allocation2 + $0x58] sm:$0xff]
    %v1229 = vpack.c.bf16 %v1144, %v1144
    %1230 = vmatpush.bf16.msra.mxu0 %v770
    %1231 = vmatpush.bf16.msra.mxu0 %v766
    %1232 = vmatpush.bf16.msra.mxu0 %v762
    %1233 = vmatpush.bf16.msra.mxu0 %v758
    %1234 = vmatpush.bf16.msra.mxu0 %v754
    %1235 = vmatpush.bf16.msra.mxu0 %v750
    %1236 = vmatpush.bf16.msra.mxu0 %v746
    %1237 = vmatpush.bf16.msra.mxu0 %v742
    %1238 = vmatmul.bf16.gmra.mxu0 %v1229
    %v1239 = vpop.f32.mrf.mxu0
    %v1240 = vadd.f32 0.0, %v1239
    %v1241 = vpop.f32.mrf.mxu0
    %1242 = vdwg.mxu0
    %1243 = vmatpush.bf16.msra.mxu0 %v771
    %1244 = vmatpush.bf16.msra.mxu0 %v767
    %1245 = vmatpush.bf16.msra.mxu0 %v763
    %1246 = vmatpush.bf16.msra.mxu0 %v759
    %1247 = vmatpush.bf16.msra.mxu0 %v755
    %1248 = vmatpush.bf16.msra.mxu0 %v751
    %1249 = vmatpush.bf16.msra.mxu0 %v747
    %1250 = vmatpush.bf16.msra.mxu0 %v743
    %1251 = vmatmul.bf16.gmra.mxu0 %v1229
    %v1252 = vpop.f32.mrf.mxu0
    %v1253 = vadd.f32 0.0, %v1252
    %v1254 = vpop.f32.mrf.mxu0
    %1255 = vdwg.mxu0
    %1256 = vmatpush.bf16.msra.mxu0 %v772
    %1257 = vmatpush.bf16.msra.mxu0 %v768
    %1258 = vmatpush.bf16.msra.mxu0 %v764
    %1259 = vmatpush.bf16.msra.mxu0 %v760
    %1260 = vmatpush.bf16.msra.mxu0 %v756
    %1261 = vmatpush.bf16.msra.mxu0 %v752
    %1262 = vmatpush.bf16.msra.mxu0 %v748
    %1263 = vmatpush.bf16.msra.mxu0 %v744
    %1264 = vmatmul.bf16.gmra.mxu0 %v1229
    %v1265 = vpop.f32.mrf.mxu0
    %v1266 = vadd.f32 0.0, %v1265
    %v1267 = vpop.f32.mrf.mxu0
    %1268 = vdwg.mxu0
    %1269 = vmatpush.bf16.msra.mxu0 %v773
    %1270 = vmatpush.bf16.msra.mxu0 %v769
    %1271 = vmatpush.bf16.msra.mxu0 %v765
    %1272 = vmatpush.bf16.msra.mxu0 %v761
    %1273 = vmatpush.bf16.msra.mxu0 %v757
    %1274 = vmatpush.bf16.msra.mxu0 %v753
    %1275 = vmatpush.bf16.msra.mxu0 %v749
    %1276 = vmatpush.bf16.msra.mxu0 %v745
    %1277 = vmatmul.bf16.gmra.mxu0 %v1229
    %v1278 = vpop.f32.mrf.mxu0
    %v1279 = vadd.f32 0.0, %v1278
    %v1280 = vpop.f32.mrf.mxu0
    %1281 = vdwg.mxu0
    %v1282 = vadd.f32 %v1225, %v1240
    %v1283 = vadd.f32 %v1226, %v1253
    %v1284 = vadd.f32 %v1227, %v1266
    %v1285 = vadd.f32 %v1228, %v1279
    %v1286 = vld [vmem:[#allocation2 + $0x1a0] sm:$0xff]
    %v1287 = vld [vmem:[#allocation2 + $0x1a8] sm:$0xff]
    %v1288 = vld [vmem:[#allocation2 + $0x1b0] sm:$0xff]
    %v1289 = vld [vmem:[#allocation2 + $0x1b8] sm:$0xff]
    %v1290 = vpack.c.bf16 %v1211, %v1211
    %1291 = vmatpush.bf16.msra.mxu0 %v990
    %1292 = vmatpush.bf16.msra.mxu0 %v986
    %1293 = vmatpush.bf16.msra.mxu0 %v982
    %1294 = vmatpush.bf16.msra.mxu0 %v978
    %1295 = vmatpush.bf16.msra.mxu0 %v974
    %1296 = vmatpush.bf16.msra.mxu0 %v970
    %1297 = vmatpush.bf16.msra.mxu0 %v966
    %1298 = vmatpush.bf16.msra.mxu0 %v962
    %1299 = vmatmul.bf16.gmra.mxu0 %v1290
    %v1300 = vpop.f32.mrf.mxu0
    %v1301 = vadd.f32 0.0, %v1300
    %v1302 = vpop.f32.mrf.mxu0
    %1303 = vdwg.mxu0
    %1304 = vmatpush.bf16.msra.mxu0 %v991
    %1305 = vmatpush.bf16.msra.mxu0 %v987
    %1306 = vmatpush.bf16.msra.mxu0 %v983
    %1307 = vmatpush.bf16.msra.mxu0 %v979
    %1308 = vmatpush.bf16.msra.mxu0 %v975
    %1309 = vmatpush.bf16.msra.mxu0 %v971
    %1310 = vmatpush.bf16.msra.mxu0 %v967
    %1311 = vmatpush.bf16.msra.mxu0 %v963
    %1312 = vmatmul.bf16.gmra.mxu0 %v1290
    %v1313 = vpop.f32.mrf.mxu0
    %v1314 = vadd.f32 0.0, %v1313
    %v1315 = vpop.f32.mrf.mxu0
    %1316 = vdwg.mxu0
    %1317 = vmatpush.bf16.msra.mxu0 %v992
    %1318 = vmatpush.bf16.msra.mxu0 %v988
    %1319 = vmatpush.bf16.msra.mxu0 %v984
    %1320 = vmatpush.bf16.msra.mxu0 %v980
    %1321 = vmatpush.bf16.msra.mxu0 %v976
    %1322 = vmatpush.bf16.msra.mxu0 %v972
    %1323 = vmatpush.bf16.msra.mxu0 %v968
    %1324 = vmatpush.bf16.msra.mxu0 %v964
    %1325 = vmatmul.bf16.gmra.mxu0 %v1290
    %v1326 = vpop.f32.mrf.mxu0
    %v1327 = vadd.f32 0.0, %v1326
    %v1328 = vpop.f32.mrf.mxu0
    %1329 = vdwg.mxu0
    %1330 = vmatpush.bf16.msra.mxu0 %v993
    %1331 = vmatpush.bf16.msra.mxu0 %v989
    %1332 = vmatpush.bf16.msra.mxu0 %v985
    %1333 = vmatpush.bf16.msra.mxu0 %v981
    %1334 = vmatpush.bf16.msra.mxu0 %v977
    %1335 = vmatpush.bf16.msra.mxu0 %v973
    %1336 = vmatpush.bf16.msra.mxu0 %v969
    %1337 = vmatpush.bf16.msra.mxu0 %v965
    %1338 = vmatmul.bf16.gmra.mxu0 %v1290
    %v1339 = vpop.f32.mrf.mxu0
    %v1340 = vadd.f32 0.0, %v1339
    %v1341 = vpop.f32.mrf.mxu0
    %1342 = vdwg.mxu0
    %v1343 = vadd.f32 %v1286, %v1301
    %v1344 = vadd.f32 %v1287, %v1314
    %v1345 = vadd.f32 %v1288, %v1327
    %v1346 = vadd.f32 %v1289, %v1340
    %v1347 = vxor.u32 %v1282, 2147483648
    %v1348 = vxor.u32 %v1283, 2147483648
    %v1349 = vxor.u32 %v1284, 2147483648
    %v1350 = vmul.f32 %v1347, 1.442695
    %v1351 = vpow.pop %v1350
    %v1352 = vmul.f32 %v1348, 1.442695
    %v1353 = vpow.pop %v1352
    %v1354 = vmul.f32 %v1349, 1.442695
    %v1355 = vpow.pop %v1354
    %v1356 = vadd.f32 %v1351, 1.0
    %v1357 = vadd.f32 %v1353, 1.0
    %v1358 = vadd.f32 %v1355, 1.0
    %v1359 = vrcp.pop %v1356
    %v1360 = vmul.f32 %v1356, %v1359
    %v1361 = vsub.f32 1.0, %v1360
    %v1362 = vmul.f32 %v1359, %v1361
    %v1363 = vadd.f32 %v1359, %v1362
    %vm1364 = vweird.f32 %v1356
    %vm1365 = vweird.f32 %v1359
    %vm1366 = vmor %vm1364, %vm1365
    %v1367 = vsel %vm1366, %v1359, %v1363
    %v1368 = vand.u32 2147483647, %v1356
    %vm1369 = vcmp.eq.f32.partialorder %v1368, 8.507059e+37
    %v1370 = vand.u32 %v1356, 2147483648
    %v1371 = vor.u32 1.1754944e-38, %v1370
    %v1372 = vsel %vm1369, %v1371, %v1367
    %v1373 = vmul.f32 1.0, %v1372
    %v1374 = vrcp.pop %v1357
    %v1375 = vmul.f32 %v1357, %v1374
    %v1376 = vsub.f32 1.0, %v1375
    %v1377 = vmul.f32 %v1374, %v1376
    %v1378 = vadd.f32 %v1374, %v1377
    %vm1379 = vweird.f32 %v1357
    %vm1380 = vweird.f32 %v1374
    %vm1381 = vmor %vm1379, %vm1380
    %v1382 = vsel %vm1381, %v1374, %v1378
    %v1383 = vand.u32 2147483647, %v1357
    %vm1384 = vcmp.eq.f32.partialorder %v1383, 8.507059e+37
    %v1385 = vand.u32 %v1357, 2147483648
    %v1386 = vor.u32 1.1754944e-38, %v1385
    %v1387 = vsel %vm1384, %v1386, %v1382
    %v1388 = vmul.f32 1.0, %v1387
    %v1389 = vrcp.pop %v1358
    %v1390 = vmul.f32 %v1358, %v1389
    %v1391 = vsub.f32 1.0, %v1390
    %v1392 = vmul.f32 %v1389, %v1391
    %v1393 = vadd.f32 %v1389, %v1392
    %vm1394 = vweird.f32 %v1358
    %vm1395 = vweird.f32 %v1389
    %vm1396 = vmor %vm1394, %vm1395
    %v1397 = vsel %vm1396, %v1389, %v1393
    %v1398 = vand.u32 2147483647, %v1358
    %vm1399 = vcmp.eq.f32.partialorder %v1398, 8.507059e+37
    %v1400 = vand.u32 %v1358, 2147483648
    %v1401 = vor.u32 1.1754944e-38, %v1400
    %v1402 = vsel %vm1399, %v1401, %v1397
    %v1403 = vmul.f32 1.0, %v1402
    %v1404 = vtanh.pop %v1285
    %v1405 = vmul.f32 %v1388, %v1142
    %v1406 = vmul.f32 %v1373, %v1404
    %v1407 = vadd.f32 %v1405, %v1406
    %v1408 = vtanh.pop %v1407
    %v1409 = vmul.f32 %v1403, %v1408
    %v1410 = vxor.u32 %v1343, 2147483648
    %v1411 = vxor.u32 %v1344, 2147483648
    %v1412 = vxor.u32 %v1345, 2147483648
    %v1413 = vmul.f32 %v1410, 1.442695
    %v1414 = vpow.pop %v1413
    %v1415 = vmul.f32 %v1411, 1.442695
    %v1416 = vpow.pop %v1415
    %v1417 = vmul.f32 %v1412, 1.442695
    %v1418 = vpow.pop %v1417
    %v1419 = vadd.f32 %v1414, 1.0
    %v1420 = vadd.f32 %v1416, 1.0
    %v1421 = vadd.f32 %v1418, 1.0
    %v1422 = vrcp.pop %v1419
    %v1423 = vmul.f32 %v1419, %v1422
    %v1424 = vsub.f32 1.0, %v1423
    %v1425 = vmul.f32 %v1422, %v1424
    %v1426 = vadd.f32 %v1422, %v1425
    %vm1427 = vweird.f32 %v1419
    %vm1428 = vweird.f32 %v1422
    %vm1429 = vmor %vm1427, %vm1428
    %v1430 = vsel %vm1429, %v1422, %v1426
    %v1431 = vand.u32 2147483647, %v1419
    %vm1432 = vcmp.eq.f32.partialorder %v1431, 8.507059e+37
    %v1433 = vand.u32 %v1419, 2147483648
    %v1434 = vor.u32 1.1754944e-38, %v1433
    %v1435 = vsel %vm1432, %v1434, %v1430
    %v1436 = vmul.f32 1.0, %v1435
    %v1437 = vrcp.pop %v1420
    %v1438 = vmul.f32 %v1420, %v1437
    %v1439 = vsub.f32 1.0, %v1438
    %v1440 = vmul.f32 %v1437, %v1439
    %v1441 = vadd.f32 %v1437, %v1440
    %vm1442 = vweird.f32 %v1420
    %vm1443 = vweird.f32 %v1437
    %vm1444 = vmor %vm1442, %vm1443
    %v1445 = vsel %vm1444, %v1437, %v1441
    %v1446 = vand.u32 2147483647, %v1420
    %vm1447 = vcmp.eq.f32.partialorder %v1446, 8.507059e+37
    %v1448 = vand.u32 %v1420, 2147483648
    %v1449 = vor.u32 1.1754944e-38, %v1448
    %v1450 = vsel %vm1447, %v1449, %v1445
    %v1451 = vmul.f32 1.0, %v1450
    %v1452 = vrcp.pop %v1421
    %v1453 = vmul.f32 %v1421, %v1452
    %v1454 = vsub.f32 1.0, %v1453
    %v1455 = vmul.f32 %v1452, %v1454
    %v1456 = vadd.f32 %v1452, %v1455
    %vm1457 = vweird.f32 %v1421
    %vm1458 = vweird.f32 %v1452
    %vm1459 = vmor %vm1457, %vm1458
    %v1460 = vsel %vm1459, %v1452, %v1456
    %v1461 = vand.u32 2147483647, %v1421
    %vm1462 = vcmp.eq.f32.partialorder %v1461, 8.507059e+37
    %v1463 = vand.u32 %v1421, 2147483648
    %v1464 = vor.u32 1.1754944e-38, %v1463
    %v1465 = vsel %vm1462, %v1464, %v1460
    %v1466 = vmul.f32 1.0, %v1465
    %v1467 = vtanh.pop %v1346
    %v1468 = vmul.f32 %v1451, %v1212
    %v1469 = vmul.f32 %v1436, %v1467
    %v1470 = vadd.f32 %v1468, %v1469
    %v1471 = vtanh.pop %v1470
    %v1472 = vmul.f32 %v1466, %v1471
    %v1473 = vld [vmem:[#allocation3 + $0x8] sm:$0xff]
    %v1474 = vld [vmem:[#allocation3 + $0x30] sm:$0xff]
    %v1475 = vmul.f32 %v1409, %v1473
    %v1476 = vmul.f32 %v1472, %v1474
    %v1477 = vmul.f32 %v1470, %v1474
    %v1478 = vld [vmem:[#allocation10 + $0x8] sm:$0xff]
    %v1479 = vmul.f32 %v1475, %v1478
    %v1480 = vadd.f32 %v1218, %v1479
    %v1481 = vld [vmem:[#allocation11 + $0x30] sm:$0xff]
    %v1482 = vmul.f32 %v1476, %v1481
    %v1483 = vadd.f32 %v1480, %v1482
    %v1484 = vld [vmem:[#allocation10 + $0x48] sm:$0xff]
    %v1485 = vmul.f32 %v1475, %v1484
    %v1486 = vadd.f32 %v1224, %v1485
    %v1487 = vld [vmem:[#allocation11 + $0x70] sm:$0xff]
    %v1488 = vmul.f32 %v1476, %v1487
    %v1489 = vadd.f32 %v1486, %v1488
    %v1490 = vld [vmem:[#allocation2 + $0x80] sm:$0xff]
    %v1491 = vld [vmem:[#allocation2 + $0x88] sm:$0xff]
    %v1492 = vld [vmem:[#allocation2 + $0x90] sm:$0xff]
    %v1493 = vld [vmem:[#allocation2 + $0x98] sm:$0xff]
    %v1494 = vpack.c.bf16 %v1409, %v1409
    %1495 = vmatpush.bf16.msra.mxu0 %v770
    %1496 = vmatpush.bf16.msra.mxu0 %v766
    %1497 = vmatpush.bf16.msra.mxu0 %v762
    %1498 = vmatpush.bf16.msra.mxu0 %v758
    %1499 = vmatpush.bf16.msra.mxu0 %v754
    %1500 = vmatpush.bf16.msra.mxu0 %v750
    %1501 = vmatpush.bf16.msra.mxu0 %v746
    %1502 = vmatpush.bf16.msra.mxu0 %v742
    %1503 = vmatmul.bf16.gmra.mxu0 %v1494
    %v1504 = vpop.f32.mrf.mxu0
    %v1505 = vadd.f32 0.0, %v1504
    %v1506 = vpop.f32.mrf.mxu0
    %1507 = vdwg.mxu0
    %1508 = vmatpush.bf16.msra.mxu0 %v771
    %1509 = vmatpush.bf16.msra.mxu0 %v767
    %1510 = vmatpush.bf16.msra.mxu0 %v763
    %1511 = vmatpush.bf16.msra.mxu0 %v759
    %1512 = vmatpush.bf16.msra.mxu0 %v755
    %1513 = vmatpush.bf16.msra.mxu0 %v751
    %1514 = vmatpush.bf16.msra.mxu0 %v747
    %1515 = vmatpush.bf16.msra.mxu0 %v743
    %1516 = vmatmul.bf16.gmra.mxu0 %v1494
    %v1517 = vpop.f32.mrf.mxu0
    %v1518 = vadd.f32 0.0, %v1517
    %v1519 = vpop.f32.mrf.mxu0
    %1520 = vdwg.mxu0
    %1521 = vmatpush.bf16.msra.mxu0 %v772
    %1522 = vmatpush.bf16.msra.mxu0 %v768
    %1523 = vmatpush.bf16.msra.mxu0 %v764
    %1524 = vmatpush.bf16.msra.mxu0 %v760
    %1525 = vmatpush.bf16.msra.mxu0 %v756
    %1526 = vmatpush.bf16.msra.mxu0 %v752
    %1527 = vmatpush.bf16.msra.mxu0 %v748
    %1528 = vmatpush.bf16.msra.mxu0 %v744
    %1529 = vmatmul.bf16.gmra.mxu0 %v1494
    %v1530 = vpop.f32.mrf.mxu0
    %v1531 = vadd.f32 0.0, %v1530
    %v1532 = vpop.f32.mrf.mxu0
    %1533 = vdwg.mxu0
    %1534 = vmatpush.bf16.msra.mxu0 %v773
    %1535 = vmatpush.bf16.msra.mxu0 %v769
    %1536 = vmatpush.bf16.msra.mxu0 %v765
    %1537 = vmatpush.bf16.msra.mxu0 %v761
    %1538 = vmatpush.bf16.msra.mxu0 %v757
    %1539 = vmatpush.bf16.msra.mxu0 %v753
    %1540 = vmatpush.bf16.msra.mxu0 %v749
    %1541 = vmatpush.bf16.msra.mxu0 %v745
    %1542 = vmatmul.bf16.gmra.mxu0 %v1494
    %v1543 = vpop.f32.mrf.mxu0
    %v1544 = vadd.f32 0.0, %v1543
    %v1545 = vpop.f32.mrf.mxu0
    %1546 = vdwg.mxu0
    %v1547 = vadd.f32 %v1490, %v1505
    %v1548 = vadd.f32 %v1491, %v1518
    %v1549 = vadd.f32 %v1492, %v1531
    %v1550 = vadd.f32 %v1493, %v1544
    %v1551 = vld [vmem:[#allocation2 + $0x160] sm:$0xff]
    %v1552 = vld [vmem:[#allocation2 + $0x168] sm:$0xff]
    %v1553 = vld [vmem:[#allocation2 + $0x170] sm:$0xff]
    %v1554 = vld [vmem:[#allocation2 + $0x178] sm:$0xff]
    %v1555 = vpack.c.bf16 %v1476, %v1476
    %1556 = vmatpush.bf16.msra.mxu0 %v990
    %1557 = vmatpush.bf16.msra.mxu0 %v986
    %1558 = vmatpush.bf16.msra.mxu0 %v982
    %1559 = vmatpush.bf16.msra.mxu0 %v978
    %1560 = vmatpush.bf16.msra.mxu0 %v974
    %1561 = vmatpush.bf16.msra.mxu0 %v970
    %1562 = vmatpush.bf16.msra.mxu0 %v966
    %1563 = vmatpush.bf16.msra.mxu0 %v962
    %1564 = vmatmul.bf16.gmra.mxu0 %v1555
    %v1565 = vpop.f32.mrf.mxu0
    %v1566 = vadd.f32 0.0, %v1565
    %v1567 = vpop.f32.mrf.mxu0
    %1568 = vdwg.mxu0
    %1569 = vmatpush.bf16.msra.mxu0 %v991
    %1570 = vmatpush.bf16.msra.mxu0 %v987
    %1571 = vmatpush.bf16.msra.mxu0 %v983
    %1572 = vmatpush.bf16.msra.mxu0 %v979
    %1573 = vmatpush.bf16.msra.mxu0 %v975
    %1574 = vmatpush.bf16.msra.mxu0 %v971
    %1575 = vmatpush.bf16.msra.mxu0 %v967
    %1576 = vmatpush.bf16.msra.mxu0 %v963
    %1577 = vmatmul.bf16.gmra.mxu0 %v1555
    %v1578 = vpop.f32.mrf.mxu0
    %v1579 = vadd.f32 0.0, %v1578
    %v1580 = vpop.f32.mrf.mxu0
    %1581 = vdwg.mxu0
    %1582 = vmatpush.bf16.msra.mxu0 %v992
    %1583 = vmatpush.bf16.msra.mxu0 %v988
    %1584 = vmatpush.bf16.msra.mxu0 %v984
    %1585 = vmatpush.bf16.msra.mxu0 %v980
    %1586 = vmatpush.bf16.msra.mxu0 %v976
    %1587 = vmatpush.bf16.msra.mxu0 %v972
    %1588 = vmatpush.bf16.msra.mxu0 %v968
    %1589 = vmatpush.bf16.msra.mxu0 %v964
    %1590 = vmatmul.bf16.gmra.mxu0 %v1555
    %v1591 = vpop.f32.mrf.mxu0
    %v1592 = vadd.f32 0.0, %v1591
    %v1593 = vpop.f32.mrf.mxu0
    %1594 = vdwg.mxu0
    %1595 = vmatpush.bf16.msra.mxu0 %v993
    %1596 = vmatpush.bf16.msra.mxu0 %v989
    %1597 = vmatpush.bf16.msra.mxu0 %v985
    %1598 = vmatpush.bf16.msra.mxu0 %v981
    %1599 = vmatpush.bf16.msra.mxu0 %v977
    %1600 = vmatpush.bf16.msra.mxu0 %v973
    %1601 = vmatpush.bf16.msra.mxu0 %v969
    %1602 = vmatpush.bf16.msra.mxu0 %v965
    %1603 = vmatmul.bf16.gmra.mxu0 %v1555
    %v1604 = vpop.f32.mrf.mxu0
    %v1605 = vadd.f32 0.0, %v1604
    %v1606 = vpop.f32.mrf.mxu0
    %1607 = vdwg.mxu0
    %v1608 = vadd.f32 %v1551, %v1566
    %v1609 = vadd.f32 %v1552, %v1579
    %v1610 = vadd.f32 %v1553, %v1592
    %v1611 = vadd.f32 %v1554, %v1605
    %v1612 = vxor.u32 %v1547, 2147483648
    %v1613 = vxor.u32 %v1548, 2147483648
    %v1614 = vxor.u32 %v1549, 2147483648
    %v1615 = vmul.f32 %v1612, 1.442695
    %v1616 = vpow.pop %v1615
    %v1617 = vmul.f32 %v1613, 1.442695
    %v1618 = vpow.pop %v1617
    %v1619 = vmul.f32 %v1614, 1.442695
    %v1620 = vpow.pop %v1619
    %v1621 = vadd.f32 %v1616, 1.0
    %v1622 = vadd.f32 %v1618, 1.0
    %v1623 = vadd.f32 %v1620, 1.0
    %v1624 = vrcp.pop %v1621
    %v1625 = vmul.f32 %v1621, %v1624
    %v1626 = vsub.f32 1.0, %v1625
    %v1627 = vmul.f32 %v1624, %v1626
    %v1628 = vadd.f32 %v1624, %v1627
    %vm1629 = vweird.f32 %v1621
    %vm1630 = vweird.f32 %v1624
    %vm1631 = vmor %vm1629, %vm1630
    %v1632 = vsel %vm1631, %v1624, %v1628
    %v1633 = vand.u32 2147483647, %v1621
    %vm1634 = vcmp.eq.f32.partialorder %v1633, 8.507059e+37
    %v1635 = vand.u32 %v1621, 2147483648
    %v1636 = vor.u32 1.1754944e-38, %v1635
    %v1637 = vsel %vm1634, %v1636, %v1632
    %v1638 = vmul.f32 1.0, %v1637
    %v1639 = vrcp.pop %v1622
    %v1640 = vmul.f32 %v1622, %v1639
    %v1641 = vsub.f32 1.0, %v1640
    %v1642 = vmul.f32 %v1639, %v1641
    %v1643 = vadd.f32 %v1639, %v1642
    %vm1644 = vweird.f32 %v1622
    %vm1645 = vweird.f32 %v1639
    %vm1646 = vmor %vm1644, %vm1645
    %v1647 = vsel %vm1646, %v1639, %v1643
    %v1648 = vand.u32 2147483647, %v1622
    %vm1649 = vcmp.eq.f32.partialorder %v1648, 8.507059e+37
    %v1650 = vand.u32 %v1622, 2147483648
    %v1651 = vor.u32 1.1754944e-38, %v1650
    %v1652 = vsel %vm1649, %v1651, %v1647
    %v1653 = vmul.f32 1.0, %v1652
    %v1654 = vrcp.pop %v1623
    %v1655 = vmul.f32 %v1623, %v1654
    %v1656 = vsub.f32 1.0, %v1655
    %v1657 = vmul.f32 %v1654, %v1656
    %v1658 = vadd.f32 %v1654, %v1657
    %vm1659 = vweird.f32 %v1623
    %vm1660 = vweird.f32 %v1654
    %vm1661 = vmor %vm1659, %vm1660
    %v1662 = vsel %vm1661, %v1654, %v1658
    %v1663 = vand.u32 2147483647, %v1623
    %vm1664 = vcmp.eq.f32.partialorder %v1663, 8.507059e+37
    %v1665 = vand.u32 %v1623, 2147483648
    %v1666 = vor.u32 1.1754944e-38, %v1665
    %v1667 = vsel %vm1664, %v1666, %v1662
    %v1668 = vmul.f32 1.0, %v1667
    %v1669 = vtanh.pop %v1550
    %v1670 = vmul.f32 %v1653, %v1407
    %v1671 = vmul.f32 %v1638, %v1669
    %v1672 = vadd.f32 %v1670, %v1671
    %v1673 = vtanh.pop %v1672
    %v1674 = vmul.f32 %v1668, %v1673
    %v1675 = vxor.u32 %v1608, 2147483648
    %v1676 = vxor.u32 %v1609, 2147483648
    %v1677 = vxor.u32 %v1610, 2147483648
    %v1678 = vmul.f32 %v1675, 1.442695
    %v1679 = vpow.pop %v1678
    %v1680 = vmul.f32 %v1676, 1.442695
    %v1681 = vpow.pop %v1680
    %v1682 = vmul.f32 %v1677, 1.442695
    %v1683 = vpow.pop %v1682
    %v1684 = vadd.f32 %v1679, 1.0
    %v1685 = vadd.f32 %v1681, 1.0
    %v1686 = vadd.f32 %v1683, 1.0
    %v1687 = vrcp.pop %v1684
    %v1688 = vmul.f32 %v1684, %v1687
    %v1689 = vsub.f32 1.0, %v1688
    %v1690 = vmul.f32 %v1687, %v1689
    %v1691 = vadd.f32 %v1687, %v1690
    %vm1692 = vweird.f32 %v1684
    %vm1693 = vweird.f32 %v1687
    %vm1694 = vmor %vm1692, %vm1693
    %v1695 = vsel %vm1694, %v1687, %v1691
    %v1696 = vand.u32 2147483647, %v1684
    %vm1697 = vcmp.eq.f32.partialorder %v1696, 8.507059e+37
    %v1698 = vand.u32 %v1684, 2147483648
    %v1699 = vor.u32 1.1754944e-38, %v1698
    %v1700 = vsel %vm1697, %v1699, %v1695
    %v1701 = vmul.f32 1.0, %v1700
    %v1702 = vrcp.pop %v1685
    %v1703 = vmul.f32 %v1685, %v1702
    %v1704 = vsub.f32 1.0, %v1703
    %v1705 = vmul.f32 %v1702, %v1704
    %v1706 = vadd.f32 %v1702, %v1705
    %vm1707 = vweird.f32 %v1685
    %vm1708 = vweird.f32 %v1702
    %vm1709 = vmor %vm1707, %vm1708
    %v1710 = vsel %vm1709, %v1702, %v1706
    %v1711 = vand.u32 2147483647, %v1685
    %vm1712 = vcmp.eq.f32.partialorder %v1711, 8.507059e+37
    %v1713 = vand.u32 %v1685, 2147483648
    %v1714 = vor.u32 1.1754944e-38, %v1713
    %v1715 = vsel %vm1712, %v1714, %v1710
    %v1716 = vmul.f32 1.0, %v1715
    %v1717 = vrcp.pop %v1686
    %v1718 = vmul.f32 %v1686, %v1717
    %v1719 = vsub.f32 1.0, %v1718
    %v1720 = vmul.f32 %v1717, %v1719
    %v1721 = vadd.f32 %v1717, %v1720
    %vm1722 = vweird.f32 %v1686
    %vm1723 = vweird.f32 %v1717
    %vm1724 = vmor %vm1722, %vm1723
    %v1725 = vsel %vm1724, %v1717, %v1721
    %v1726 = vand.u32 2147483647, %v1686
    %vm1727 = vcmp.eq.f32.partialorder %v1726, 8.507059e+37
    %v1728 = vand.u32 %v1686, 2147483648
    %v1729 = vor.u32 1.1754944e-38, %v1728
    %v1730 = vsel %vm1727, %v1729, %v1725
    %v1731 = vmul.f32 1.0, %v1730
    %v1732 = vtanh.pop %v1611
    %v1733 = vmul.f32 %v1716, %v1477
    %v1734 = vmul.f32 %v1701, %v1732
    %v1735 = vadd.f32 %v1733, %v1734
    %v1736 = vtanh.pop %v1735
    %v1737 = vmul.f32 %v1731, %v1736
    %v1738 = vld [vmem:[#allocation3 + $0x10] sm:$0xff]
    %v1739 = vld [vmem:[#allocation3 + $0x28] sm:$0xff]
    %v1740 = vmul.f32 %v1674, %v1738
    %v1741 = vmul.f32 %v1737, %v1739
    %v1742 = vmul.f32 %v1735, %v1739
    %v1743 = vld [vmem:[#allocation10 + $0x10] sm:$0xff]
    %v1744 = vmul.f32 %v1740, %v1743
    %v1745 = vadd.f32 %v1483, %v1744
    %v1746 = vld [vmem:[#allocation11 + $0x28] sm:$0xff]
    %v1747 = vmul.f32 %v1741, %v1746
    %v1748 = vadd.f32 %v1745, %v1747
    %v1749 = vld [vmem:[#allocation10 + $0x50] sm:$0xff]
    %v1750 = vmul.f32 %v1740, %v1749
    %v1751 = vadd.f32 %v1489, %v1750
    %v1752 = vld [vmem:[#allocation11 + $0x68] sm:$0xff]
    %v1753 = vmul.f32 %v1741, %v1752
    %v1754 = vadd.f32 %v1751, %v1753
    %v1755 = vld [vmem:[#allocation2 + $0xc0] sm:$0xff]
    %v1756 = vld [vmem:[#allocation2 + $0xc8] sm:$0xff]
    %v1757 = vld [vmem:[#allocation2 + $0xd0] sm:$0xff]
    %v1758 = vld [vmem:[#allocation2 + $0xd8] sm:$0xff]
    %v1759 = vpack.c.bf16 %v1674, %v1674
    %1760 = vmatpush.bf16.msra.mxu0 %v770
    %1761 = vmatpush.bf16.msra.mxu0 %v766
    %1762 = vmatpush.bf16.msra.mxu0 %v762
    %1763 = vmatpush.bf16.msra.mxu0 %v758
    %1764 = vmatpush.bf16.msra.mxu0 %v754
    %1765 = vmatpush.bf16.msra.mxu0 %v750
    %1766 = vmatpush.bf16.msra.mxu0 %v746
    %1767 = vmatpush.bf16.msra.mxu0 %v742
    %1768 = vmatmul.bf16.gmra.mxu0 %v1759
    %v1769 = vpop.f32.mrf.mxu0
    %v1770 = vadd.f32 0.0, %v1769
    %v1771 = vpop.f32.mrf.mxu0
    %1772 = vdwg.mxu0
    %1773 = vmatpush.bf16.msra.mxu0 %v771
    %1774 = vmatpush.bf16.msra.mxu0 %v767
    %1775 = vmatpush.bf16.msra.mxu0 %v763
    %1776 = vmatpush.bf16.msra.mxu0 %v759
    %1777 = vmatpush.bf16.msra.mxu0 %v755
    %1778 = vmatpush.bf16.msra.mxu0 %v751
    %1779 = vmatpush.bf16.msra.mxu0 %v747
    %1780 = vmatpush.bf16.msra.mxu0 %v743
    %1781 = vmatmul.bf16.gmra.mxu0 %v1759
    %v1782 = vpop.f32.mrf.mxu0
    %v1783 = vadd.f32 0.0, %v1782
    %v1784 = vpop.f32.mrf.mxu0
    %1785 = vdwg.mxu0
    %1786 = vmatpush.bf16.msra.mxu0 %v772
    %1787 = vmatpush.bf16.msra.mxu0 %v768
    %1788 = vmatpush.bf16.msra.mxu0 %v764
    %1789 = vmatpush.bf16.msra.mxu0 %v760
    %1790 = vmatpush.bf16.msra.mxu0 %v756
    %1791 = vmatpush.bf16.msra.mxu0 %v752
    %1792 = vmatpush.bf16.msra.mxu0 %v748
    %1793 = vmatpush.bf16.msra.mxu0 %v744
    %1794 = vmatmul.bf16.gmra.mxu0 %v1759
    %v1795 = vpop.f32.mrf.mxu0
    %v1796 = vadd.f32 0.0, %v1795
    %v1797 = vpop.f32.mrf.mxu0
    %1798 = vdwg.mxu0
    %1799 = vmatpush.bf16.msra.mxu0 %v773
    %1800 = vmatpush.bf16.msra.mxu0 %v769
    %1801 = vmatpush.bf16.msra.mxu0 %v765
    %1802 = vmatpush.bf16.msra.mxu0 %v761
    %1803 = vmatpush.bf16.msra.mxu0 %v757
    %1804 = vmatpush.bf16.msra.mxu0 %v753
    %1805 = vmatpush.bf16.msra.mxu0 %v749
    %1806 = vmatpush.bf16.msra.mxu0 %v745
    %1807 = vmatmul.bf16.gmra.mxu0 %v1759
    %v1808 = vpop.f32.mrf.mxu0
    %v1809 = vadd.f32 0.0, %v1808
    %v1810 = vpop.f32.mrf.mxu0
    %1811 = vdwg.mxu0
    %v1812 = vadd.f32 %v1755, %v1770
    %v1813 = vadd.f32 %v1756, %v1783
    %v1814 = vadd.f32 %v1757, %v1796
    %v1815 = vadd.f32 %v1758, %v1809
    %v1816 = vld [vmem:[#allocation2 + $0x120] sm:$0xff]
    %v1817 = vld [vmem:[#allocation2 + $0x128] sm:$0xff]
    %v1818 = vld [vmem:[#allocation2 + $0x130] sm:$0xff]
    %v1819 = vld [vmem:[#allocation2 + $0x138] sm:$0xff]
    %v1820 = vpack.c.bf16 %v1741, %v1741
    %1821 = vmatpush.bf16.msra.mxu0 %v990
    %1822 = vmatpush.bf16.msra.mxu0 %v986
    %1823 = vmatpush.bf16.msra.mxu0 %v982
    %1824 = vmatpush.bf16.msra.mxu0 %v978
    %1825 = vmatpush.bf16.msra.mxu0 %v974
    %1826 = vmatpush.bf16.msra.mxu0 %v970
    %1827 = vmatpush.bf16.msra.mxu0 %v966
    %1828 = vmatpush.bf16.msra.mxu0 %v962
    %1829 = vmatmul.bf16.gmra.mxu0 %v1820
    %v1830 = vpop.f32.mrf.mxu0
    %v1831 = vadd.f32 0.0, %v1830
    %v1832 = vpop.f32.mrf.mxu0
    %1833 = vdwg.mxu0
    %1834 = vmatpush.bf16.msra.mxu0 %v991
    %1835 = vmatpush.bf16.msra.mxu0 %v987
    %1836 = vmatpush.bf16.msra.mxu0 %v983
    %1837 = vmatpush.bf16.msra.mxu0 %v979
    %1838 = vmatpush.bf16.msra.mxu0 %v975
    %1839 = vmatpush.bf16.msra.mxu0 %v971
    %1840 = vmatpush.bf16.msra.mxu0 %v967
    %1841 = vmatpush.bf16.msra.mxu0 %v963
    %1842 = vmatmul.bf16.gmra.mxu0 %v1820
    %v1843 = vpop.f32.mrf.mxu0
    %v1844 = vadd.f32 0.0, %v1843
    %v1845 = vpop.f32.mrf.mxu0
    %1846 = vdwg.mxu0
    %1847 = vmatpush.bf16.msra.mxu0 %v992
    %1848 = vmatpush.bf16.msra.mxu0 %v988
    %1849 = vmatpush.bf16.msra.mxu0 %v984
    %1850 = vmatpush.bf16.msra.mxu0 %v980
    %1851 = vmatpush.bf16.msra.mxu0 %v976
    %1852 = vmatpush.bf16.msra.mxu0 %v972
    %1853 = vmatpush.bf16.msra.mxu0 %v968
    %1854 = vmatpush.bf16.msra.mxu0 %v964
    %1855 = vmatmul.bf16.gmra.mxu0 %v1820
    %v1856 = vpop.f32.mrf.mxu0
    %v1857 = vadd.f32 0.0, %v1856
    %v1858 = vpop.f32.mrf.mxu0
    %1859 = vdwg.mxu0
    %1860 = vmatpush.bf16.msra.mxu0 %v993
    %1861 = vmatpush.bf16.msra.mxu0 %v989
    %1862 = vmatpush.bf16.msra.mxu0 %v985
    %1863 = vmatpush.bf16.msra.mxu0 %v981
    %1864 = vmatpush.bf16.msra.mxu0 %v977
    %1865 = vmatpush.bf16.msra.mxu0 %v973
    %1866 = vmatpush.bf16.msra.mxu0 %v969
    %1867 = vmatpush.bf16.msra.mxu0 %v965
    %1868 = vmatmul.bf16.gmra.mxu0 %v1820
    %v1869 = vpop.f32.mrf.mxu0
    %v1870 = vadd.f32 0.0, %v1869
    %v1871 = vpop.f32.mrf.mxu0
    %1872 = vdwg.mxu0
    %v1873 = vadd.f32 %v1816, %v1831
    %v1874 = vadd.f32 %v1817, %v1844
    %v1875 = vadd.f32 %v1818, %v1857
    %v1876 = vadd.f32 %v1819, %v1870
    %v1877 = vxor.u32 %v1812, 2147483648
    %v1878 = vxor.u32 %v1813, 2147483648
    %v1879 = vxor.u32 %v1814, 2147483648
    %v1880 = vmul.f32 %v1877, 1.442695
    %v1881 = vpow.pop %v1880
    %v1882 = vmul.f32 %v1878, 1.442695
    %v1883 = vpow.pop %v1882
    %v1884 = vmul.f32 %v1879, 1.442695
    %v1885 = vpow.pop %v1884
    %v1886 = vadd.f32 %v1881, 1.0
    %v1887 = vadd.f32 %v1883, 1.0
    %v1888 = vadd.f32 %v1885, 1.0
    %v1889 = vrcp.pop %v1886
    %v1890 = vmul.f32 %v1886, %v1889
    %v1891 = vsub.f32 1.0, %v1890
    %v1892 = vmul.f32 %v1889, %v1891
    %v1893 = vadd.f32 %v1889, %v1892
    %vm1894 = vweird.f32 %v1886
    %vm1895 = vweird.f32 %v1889
    %vm1896 = vmor %vm1894, %vm1895
    %v1897 = vsel %vm1896, %v1889, %v1893
    %v1898 = vand.u32 2147483647, %v1886
    %vm1899 = vcmp.eq.f32.partialorder %v1898, 8.507059e+37
    %v1900 = vand.u32 %v1886, 2147483648
    %v1901 = vor.u32 1.1754944e-38, %v1900
    %v1902 = vsel %vm1899, %v1901, %v1897
    %v1903 = vmul.f32 1.0, %v1902
    %v1904 = vrcp.pop %v1887
    %v1905 = vmul.f32 %v1887, %v1904
    %v1906 = vsub.f32 1.0, %v1905
    %v1907 = vmul.f32 %v1904, %v1906
    %v1908 = vadd.f32 %v1904, %v1907
    %vm1909 = vweird.f32 %v1887
    %vm1910 = vweird.f32 %v1904
    %vm1911 = vmor %vm1909, %vm1910
    %v1912 = vsel %vm1911, %v1904, %v1908
    %v1913 = vand.u32 2147483647, %v1887
    %vm1914 = vcmp.eq.f32.partialorder %v1913, 8.507059e+37
    %v1915 = vand.u32 %v1887, 2147483648
    %v1916 = vor.u32 1.1754944e-38, %v1915
    %v1917 = vsel %vm1914, %v1916, %v1912
    %v1918 = vmul.f32 1.0, %v1917
    %v1919 = vrcp.pop %v1888
    %v1920 = vmul.f32 %v1888, %v1919
    %v1921 = vsub.f32 1.0, %v1920
    %v1922 = vmul.f32 %v1919, %v1921
    %v1923 = vadd.f32 %v1919, %v1922
    %vm1924 = vweird.f32 %v1888
    %vm1925 = vweird.f32 %v1919
    %vm1926 = vmor %vm1924, %vm1925
    %v1927 = vsel %vm1926, %v1919, %v1923
    %v1928 = vand.u32 2147483647, %v1888
    %vm1929 = vcmp.eq.f32.partialorder %v1928, 8.507059e+37
    %v1930 = vand.u32 %v1888, 2147483648
    %v1931 = vor.u32 1.1754944e-38, %v1930
    %v1932 = vsel %vm1929, %v1931, %v1927
    %v1933 = vmul.f32 1.0, %v1932
    %v1934 = vtanh.pop %v1815
    %v1935 = vmul.f32 %v1918, %v1672
    %v1936 = vmul.f32 %v1903, %v1934
    %v1937 = vadd.f32 %v1935, %v1936
    %v1938 = vtanh.pop %v1937
    %v1939 = vmul.f32 %v1933, %v1938
    %v1940 = vxor.u32 %v1873, 2147483648
    %v1941 = vxor.u32 %v1874, 2147483648
    %v1942 = vxor.u32 %v1875, 2147483648
    %v1943 = vmul.f32 %v1940, 1.442695
    %v1944 = vpow.pop %v1943
    %v1945 = vmul.f32 %v1941, 1.442695
    %v1946 = vpow.pop %v1945
    %v1947 = vmul.f32 %v1942, 1.442695
    %v1948 = vpow.pop %v1947
    %v1949 = vadd.f32 %v1944, 1.0
    %v1950 = vadd.f32 %v1946, 1.0
    %v1951 = vadd.f32 %v1948, 1.0
    %v1952 = vrcp.pop %v1949
    %v1953 = vmul.f32 %v1949, %v1952
    %v1954 = vsub.f32 1.0, %v1953
    %v1955 = vmul.f32 %v1952, %v1954
    %v1956 = vadd.f32 %v1952, %v1955
    %vm1957 = vweird.f32 %v1949
    %vm1958 = vweird.f32 %v1952
    %vm1959 = vmor %vm1957, %vm1958
    %v1960 = vsel %vm1959, %v1952, %v1956
    %v1961 = vand.u32 2147483647, %v1949
    %vm1962 = vcmp.eq.f32.partialorder %v1961, 8.507059e+37
    %v1963 = vand.u32 %v1949, 2147483648
    %v1964 = vor.u32 1.1754944e-38, %v1963
    %v1965 = vsel %vm1962, %v1964, %v1960
    %v1966 = vmul.f32 1.0, %v1965
    %v1967 = vrcp.pop %v1950
    %v1968 = vmul.f32 %v1950, %v1967
    %v1969 = vsub.f32 1.0, %v1968
    %v1970 = vmul.f32 %v1967, %v1969
    %v1971 = vadd.f32 %v1967, %v1970
    %vm1972 = vweird.f32 %v1950
    %vm1973 = vweird.f32 %v1967
    %vm1974 = vmor %vm1972, %vm1973
    %v1975 = vsel %vm1974, %v1967, %v1971
    %v1976 = vand.u32 2147483647, %v1950
    %vm1977 = vcmp.eq.f32.partialorder %v1976, 8.507059e+37
    %v1978 = vand.u32 %v1950, 2147483648
    %v1979 = vor.u32 1.1754944e-38, %v1978
    %v1980 = vsel %vm1977, %v1979, %v1975
    %v1981 = vmul.f32 1.0, %v1980
    %v1982 = vrcp.pop %v1951
    %v1983 = vmul.f32 %v1951, %v1982
    %v1984 = vsub.f32 1.0, %v1983
    %v1985 = vmul.f32 %v1982, %v1984
    %v1986 = vadd.f32 %v1982, %v1985
    %vm1987 = vweird.f32 %v1951
    %vm1988 = vweird.f32 %v1982
    %vm1989 = vmor %vm1987, %vm1988
    %v1990 = vsel %vm1989, %v1982, %v1986
    %v1991 = vand.u32 2147483647, %v1951
    %vm1992 = vcmp.eq.f32.partialorder %v1991, 8.507059e+37
    %v1993 = vand.u32 %v1951, 2147483648
    %v1994 = vor.u32 1.1754944e-38, %v1993
    %v1995 = vsel %vm1992, %v1994, %v1990
    %v1996 = vmul.f32 1.0, %v1995
    %v1997 = vtanh.pop %v1876
    %v1998 = vmul.f32 %v1981, %v1742
    %v1999 = vmul.f32 %v1966, %v1997
    %v2000 = vadd.f32 %v1998, %v1999
    %v2001 = vtanh.pop %v2000
    %v2002 = vmul.f32 %v1996, %v2001
    %v2003 = vld [vmem:[#allocation3 + $0x18] sm:$0xff]
    %v2004 = vld [vmem:[#allocation3 + $0x20] sm:$0xff]
    %v2005 = vmul.f32 %v1939, %v2003
    %v2006 = vmul.f32 %v2002, %v2004
    %v2007 = vmul.f32 %v2000, %v2004
    %v2008 = vld [vmem:[#allocation10 + $0x18] sm:$0xff]
    %v2009 = vmul.f32 %v2005, %v2008
    %v2010 = vadd.f32 %v1748, %v2009
    %v2011 = vld [vmem:[#allocation11 + $0x20] sm:$0xff]
    %v2012 = vmul.f32 %v2006, %v2011
    %v2013 = vadd.f32 %v2010, %v2012
    %v2014 = vld [vmem:[#allocation10 + $0x58] sm:$0xff]
    %v2015 = vmul.f32 %v2005, %v2014
    %v2016 = vadd.f32 %v1754, %v2015
    %v2017 = vld [vmem:[#allocation11 + $0x60] sm:$0xff]
    %v2018 = vmul.f32 %v2006, %v2017
    %v2019 = vadd.f32 %v2016, %v2018
    %v2020 = vld [vmem:[#allocation2 + $0x100] sm:$0xff]
    %v2021 = vld [vmem:[#allocation2 + $0x108] sm:$0xff]
    %v2022 = vld [vmem:[#allocation2 + $0x110] sm:$0xff]
    %v2023 = vld [vmem:[#allocation2 + $0x118] sm:$0xff]
    %v2024 = vpack.c.bf16 %v1939, %v1939
    %2025 = vmatpush.bf16.msra.mxu0 %v770
    %2026 = vmatpush.bf16.msra.mxu0 %v766
    %2027 = vmatpush.bf16.msra.mxu0 %v762
    %2028 = vmatpush.bf16.msra.mxu0 %v758
    %2029 = vmatpush.bf16.msra.mxu0 %v754
    %2030 = vmatpush.bf16.msra.mxu0 %v750
    %2031 = vmatpush.bf16.msra.mxu0 %v746
    %2032 = vmatpush.bf16.msra.mxu0 %v742
    %2033 = vmatmul.bf16.gmra.mxu0 %v2024
    %v2034 = vpop.f32.mrf.mxu0
    %v2035 = vadd.f32 0.0, %v2034
    %v2036 = vpop.f32.mrf.mxu0
    %2037 = vdwg.mxu0
    %2038 = vmatpush.bf16.msra.mxu0 %v771
    %2039 = vmatpush.bf16.msra.mxu0 %v767
    %2040 = vmatpush.bf16.msra.mxu0 %v763
    %2041 = vmatpush.bf16.msra.mxu0 %v759
    %2042 = vmatpush.bf16.msra.mxu0 %v755
    %2043 = vmatpush.bf16.msra.mxu0 %v751
    %2044 = vmatpush.bf16.msra.mxu0 %v747
    %2045 = vmatpush.bf16.msra.mxu0 %v743
    %2046 = vmatmul.bf16.gmra.mxu0 %v2024
    %v2047 = vpop.f32.mrf.mxu0
    %v2048 = vadd.f32 0.0, %v2047
    %v2049 = vpop.f32.mrf.mxu0
    %2050 = vdwg.mxu0
    %2051 = vmatpush.bf16.msra.mxu0 %v772
    %2052 = vmatpush.bf16.msra.mxu0 %v768
    %2053 = vmatpush.bf16.msra.mxu0 %v764
    %2054 = vmatpush.bf16.msra.mxu0 %v760
    %2055 = vmatpush.bf16.msra.mxu0 %v756
    %2056 = vmatpush.bf16.msra.mxu0 %v752
    %2057 = vmatpush.bf16.msra.mxu0 %v748
    %2058 = vmatpush.bf16.msra.mxu0 %v744
    %2059 = vmatmul.bf16.gmra.mxu0 %v2024
    %v2060 = vpop.f32.mrf.mxu0
    %v2061 = vadd.f32 0.0, %v2060
    %v2062 = vpop.f32.mrf.mxu0
    %2063 = vdwg.mxu0
    %2064 = vmatpush.bf16.msra.mxu0 %v773
    %2065 = vmatpush.bf16.msra.mxu0 %v769
    %2066 = vmatpush.bf16.msra.mxu0 %v765
    %2067 = vmatpush.bf16.msra.mxu0 %v761
    %2068 = vmatpush.bf16.msra.mxu0 %v757
    %2069 = vmatpush.bf16.msra.mxu0 %v753
    %2070 = vmatpush.bf16.msra.mxu0 %v749
    %2071 = vmatpush.bf16.msra.mxu0 %v745
    %2072 = vmatmul.bf16.gmra.mxu0 %v2024
    %v2073 = vpop.f32.mrf.mxu0
    %v2074 = vadd.f32 0.0, %v2073
    %v2075 = vpop.f32.mrf.mxu0
    %2076 = vdwg.mxu0
    %v2077 = vadd.f32 %v2020, %v2035
    %v2078 = vadd.f32 %v2021, %v2048
    %v2079 = vadd.f32 %v2022, %v2061
    %v2080 = vadd.f32 %v2023, %v2074
    %v2081 = vld [vmem:[#allocation2 + $0xe0] sm:$0xff]
    %v2082 = vld [vmem:[#allocation2 + $0xe8] sm:$0xff]
    %v2083 = vld [vmem:[#allocation2 + $0xf0] sm:$0xff]
    %v2084 = vld [vmem:[#allocation2 + $0xf8] sm:$0xff]
    %v2085 = vpack.c.bf16 %v2006, %v2006
    %2086 = vmatpush.bf16.msra.mxu0 %v990
    %2087 = vmatpush.bf16.msra.mxu0 %v986
    %2088 = vmatpush.bf16.msra.mxu0 %v982
    %2089 = vmatpush.bf16.msra.mxu0 %v978
    %2090 = vmatpush.bf16.msra.mxu0 %v974
    %2091 = vmatpush.bf16.msra.mxu0 %v970
    %2092 = vmatpush.bf16.msra.mxu0 %v966
    %2093 = vmatpush.bf16.msra.mxu0 %v962
    %2094 = vmatmul.bf16.gmra.mxu0 %v2085
    %v2095 = vpop.f32.mrf.mxu0
    %v2096 = vadd.f32 0.0, %v2095
    %v2097 = vpop.f32.mrf.mxu0
    %2098 = vdwg.mxu0
    %2099 = vmatpush.bf16.msra.mxu0 %v991
    %2100 = vmatpush.bf16.msra.mxu0 %v987
    %2101 = vmatpush.bf16.msra.mxu0 %v983
    %2102 = vmatpush.bf16.msra.mxu0 %v979
    %2103 = vmatpush.bf16.msra.mxu0 %v975
    %2104 = vmatpush.bf16.msra.mxu0 %v971
    %2105 = vmatpush.bf16.msra.mxu0 %v967
    %2106 = vmatpush.bf16.msra.mxu0 %v963
    %2107 = vmatmul.bf16.gmra.mxu0 %v2085
    %v2108 = vpop.f32.mrf.mxu0
    %v2109 = vadd.f32 0.0, %v2108
    %v2110 = vpop.f32.mrf.mxu0
    %2111 = vdwg.mxu0
    %2112 = vmatpush.bf16.msra.mxu0 %v992
    %2113 = vmatpush.bf16.msra.mxu0 %v988
    %2114 = vmatpush.bf16.msra.mxu0 %v984
    %2115 = vmatpush.bf16.msra.mxu0 %v980
    %2116 = vmatpush.bf16.msra.mxu0 %v976
    %2117 = vmatpush.bf16.msra.mxu0 %v972
    %2118 = vmatpush.bf16.msra.mxu0 %v968
    %2119 = vmatpush.bf16.msra.mxu0 %v964
    %2120 = vmatmul.bf16.gmra.mxu0 %v2085
    %v2121 = vpop.f32.mrf.mxu0
    %v2122 = vadd.f32 0.0, %v2121
    %v2123 = vpop.f32.mrf.mxu0
    %2124 = vdwg.mxu0
    %2125 = vmatpush.bf16.msra.mxu0 %v993
    %2126 = vmatpush.bf16.msra.mxu0 %v989
    %2127 = vmatpush.bf16.msra.mxu0 %v985
    %2128 = vmatpush.bf16.msra.mxu0 %v981
    %2129 = vmatpush.bf16.msra.mxu0 %v977
    %2130 = vmatpush.bf16.msra.mxu0 %v973
    %2131 = vmatpush.bf16.msra.mxu0 %v969
    %2132 = vmatpush.bf16.msra.mxu0 %v965
    %2133 = vmatmul.bf16.gmra.mxu0 %v2085
    %v2134 = vpop.f32.mrf.mxu0
    %v2135 = vadd.f32 0.0, %v2134
    %v2136 = vpop.f32.mrf.mxu0
    %2137 = vdwg.mxu0
    %v2138 = vadd.f32 %v2081, %v2096
    %v2139 = vadd.f32 %v2082, %v2109
    %v2140 = vadd.f32 %v2083, %v2122
    %v2141 = vadd.f32 %v2084, %v2135
    %v2142 = vxor.u32 %v2077, 2147483648
    %v2143 = vxor.u32 %v2078, 2147483648
    %v2144 = vxor.u32 %v2079, 2147483648
    %v2145 = vmul.f32 %v2142, 1.442695
    %v2146 = vpow.pop %v2145
    %v2147 = vmul.f32 %v2143, 1.442695
    %v2148 = vpow.pop %v2147
    %v2149 = vmul.f32 %v2144, 1.442695
    %v2150 = vpow.pop %v2149
    %v2151 = vadd.f32 %v2146, 1.0
    %v2152 = vadd.f32 %v2148, 1.0
    %v2153 = vadd.f32 %v2150, 1.0
    %v2154 = vrcp.pop %v2151
    %v2155 = vmul.f32 %v2151, %v2154
    %v2156 = vsub.f32 1.0, %v2155
    %v2157 = vmul.f32 %v2154, %v2156
    %v2158 = vadd.f32 %v2154, %v2157
    %vm2159 = vweird.f32 %v2151
    %vm2160 = vweird.f32 %v2154
    %vm2161 = vmor %vm2159, %vm2160
    %v2162 = vsel %vm2161, %v2154, %v2158
    %v2163 = vand.u32 2147483647, %v2151
    %vm2164 = vcmp.eq.f32.partialorder %v2163, 8.507059e+37
    %v2165 = vand.u32 %v2151, 2147483648
    %v2166 = vor.u32 1.1754944e-38, %v2165
    %v2167 = vsel %vm2164, %v2166, %v2162
    %v2168 = vmul.f32 1.0, %v2167
    %v2169 = vrcp.pop %v2152
    %v2170 = vmul.f32 %v2152, %v2169
    %v2171 = vsub.f32 1.0, %v2170
    %v2172 = vmul.f32 %v2169, %v2171
    %v2173 = vadd.f32 %v2169, %v2172
    %vm2174 = vweird.f32 %v2152
    %vm2175 = vweird.f32 %v2169
    %vm2176 = vmor %vm2174, %vm2175
    %v2177 = vsel %vm2176, %v2169, %v2173
    %v2178 = vand.u32 2147483647, %v2152
    %vm2179 = vcmp.eq.f32.partialorder %v2178, 8.507059e+37
    %v2180 = vand.u32 %v2152, 2147483648
    %v2181 = vor.u32 1.1754944e-38, %v2180
    %v2182 = vsel %vm2179, %v2181, %v2177
    %v2183 = vmul.f32 1.0, %v2182
    %v2184 = vrcp.pop %v2153
    %v2185 = vmul.f32 %v2153, %v2184
    %v2186 = vsub.f32 1.0, %v2185
    %v2187 = vmul.f32 %v2184, %v2186
    %v2188 = vadd.f32 %v2184, %v2187
    %vm2189 = vweird.f32 %v2153
    %vm2190 = vweird.f32 %v2184
    %vm2191 = vmor %vm2189, %vm2190
    %v2192 = vsel %vm2191, %v2184, %v2188
    %v2193 = vand.u32 2147483647, %v2153
    %vm2194 = vcmp.eq.f32.partialorder %v2193, 8.507059e+37
    %v2195 = vand.u32 %v2153, 2147483648
    %v2196 = vor.u32 1.1754944e-38, %v2195
    %v2197 = vsel %vm2194, %v2196, %v2192
    %v2198 = vmul.f32 1.0, %v2197
    %v2199 = vtanh.pop %v2080
    %v2200 = vmul.f32 %v2183, %v1937
    %v2201 = vmul.f32 %v2168, %v2199
    %v2202 = vadd.f32 %v2200, %v2201
    %v2203 = vtanh.pop %v2202
    %v2204 = vmul.f32 %v2198, %v2203
    %v2205 = vxor.u32 %v2138, 2147483648
    %v2206 = vxor.u32 %v2139, 2147483648
    %v2207 = vxor.u32 %v2140, 2147483648
    %v2208 = vmul.f32 %v2205, 1.442695
    %v2209 = vpow.pop %v2208
    %v2210 = vmul.f32 %v2206, 1.442695
    %v2211 = vpow.pop %v2210
    %v2212 = vmul.f32 %v2207, 1.442695
    %v2213 = vpow.pop %v2212
    %v2214 = vadd.f32 %v2209, 1.0
    %v2215 = vadd.f32 %v2211, 1.0
    %v2216 = vadd.f32 %v2213, 1.0
    %v2217 = vrcp.pop %v2214
    %v2218 = vmul.f32 %v2214, %v2217
    %v2219 = vsub.f32 1.0, %v2218
    %v2220 = vmul.f32 %v2217, %v2219
    %v2221 = vadd.f32 %v2217, %v2220
    %vm2222 = vweird.f32 %v2214
    %vm2223 = vweird.f32 %v2217
    %vm2224 = vmor %vm2222, %vm2223
    %v2225 = vsel %vm2224, %v2217, %v2221
    %v2226 = vand.u32 2147483647, %v2214
    %vm2227 = vcmp.eq.f32.partialorder %v2226, 8.507059e+37
    %v2228 = vand.u32 %v2214, 2147483648
    %v2229 = vor.u32 1.1754944e-38, %v2228
    %v2230 = vsel %vm2227, %v2229, %v2225
    %v2231 = vmul.f32 1.0, %v2230
    %v2232 = vrcp.pop %v2215
    %v2233 = vmul.f32 %v2215, %v2232
    %v2234 = vsub.f32 1.0, %v2233
    %v2235 = vmul.f32 %v2232, %v2234
    %v2236 = vadd.f32 %v2232, %v2235
    %vm2237 = vweird.f32 %v2215
    %vm2238 = vweird.f32 %v2232
    %vm2239 = vmor %vm2237, %vm2238
    %v2240 = vsel %vm2239, %v2232, %v2236
    %v2241 = vand.u32 2147483647, %v2215
    %vm2242 = vcmp.eq.f32.partialorder %v2241, 8.507059e+37
    %v2243 = vand.u32 %v2215, 2147483648
    %v2244 = vor.u32 1.1754944e-38, %v2243
    %v2245 = vsel %vm2242, %v2244, %v2240
    %v2246 = vmul.f32 1.0, %v2245
    %v2247 = vrcp.pop %v2216
    %v2248 = vmul.f32 %v2216, %v2247
    %v2249 = vsub.f32 1.0, %v2248
    %v2250 = vmul.f32 %v2247, %v2249
    %v2251 = vadd.f32 %v2247, %v2250
    %vm2252 = vweird.f32 %v2216
    %vm2253 = vweird.f32 %v2247
    %vm2254 = vmor %vm2252, %vm2253
    %v2255 = vsel %vm2254, %v2247, %v2251
    %v2256 = vand.u32 2147483647, %v2216
    %vm2257 = vcmp.eq.f32.partialorder %v2256, 8.507059e+37
    %v2258 = vand.u32 %v2216, 2147483648
    %v2259 = vor.u32 1.1754944e-38, %v2258
    %v2260 = vsel %vm2257, %v2259, %v2255
    %v2261 = vmul.f32 1.0, %v2260
    %v2262 = vtanh.pop %v2141
    %v2263 = vmul.f32 %v2246, %v2007
    %v2264 = vmul.f32 %v2231, %v2262
    %v2265 = vadd.f32 %v2263, %v2264
    %v2266 = vtanh.pop %v2265
    %v2267 = vmul.f32 %v2261, %v2266
    %v2268 = vmul.f32 %v2204, %v2004
    %v2269 = vmul.f32 %v2267, %v2003
    %v2270 = vmul.f32 %v2265, %v2003
    %v2271 = vld [vmem:[#allocation10 + $0x20] sm:$0xff]
    %v2272 = vmul.f32 %v2268, %v2271
    %v2273 = vadd.f32 %v2013, %v2272
    %v2274 = vld [vmem:[#allocation11 + $0x18] sm:$0xff]
    %v2275 = vmul.f32 %v2269, %v2274
    %v2276 = vadd.f32 %v2273, %v2275
    %v2277 = vld [vmem:[#allocation10 + $0x60] sm:$0xff]
    %v2278 = vmul.f32 %v2268, %v2277
    %v2279 = vadd.f32 %v2019, %v2278
    %v2280 = vld [vmem:[#allocation11 + $0x58] sm:$0xff]
    %v2281 = vmul.f32 %v2269, %v2280
    %v2282 = vadd.f32 %v2279, %v2281
    %v2283 = vld [vmem:[#allocation2 + $0x140] sm:$0xff]
    %v2284 = vld [vmem:[#allocation2 + $0x148] sm:$0xff]
    %v2285 = vld [vmem:[#allocation2 + $0x150] sm:$0xff]
    %v2286 = vld [vmem:[#allocation2 + $0x158] sm:$0xff]
    %v2287 = vpack.c.bf16 %v2204, %v2204
    %2288 = vmatpush.bf16.msra.mxu0 %v770
    %2289 = vmatpush.bf16.msra.mxu0 %v766
    %2290 = vmatpush.bf16.msra.mxu0 %v762
    %2291 = vmatpush.bf16.msra.mxu0 %v758
    %2292 = vmatpush.bf16.msra.mxu0 %v754
    %2293 = vmatpush.bf16.msra.mxu0 %v750
    %2294 = vmatpush.bf16.msra.mxu0 %v746
    %2295 = vmatpush.bf16.msra.mxu0 %v742
    %2296 = vmatmul.bf16.gmra.mxu0 %v2287
    %v2297 = vpop.f32.mrf.mxu0
    %v2298 = vadd.f32 0.0, %v2297
    %v2299 = vpop.f32.mrf.mxu0
    %2300 = vdwg.mxu0
    %2301 = vmatpush.bf16.msra.mxu0 %v771
    %2302 = vmatpush.bf16.msra.mxu0 %v767
    %2303 = vmatpush.bf16.msra.mxu0 %v763
    %2304 = vmatpush.bf16.msra.mxu0 %v759
    %2305 = vmatpush.bf16.msra.mxu0 %v755
    %2306 = vmatpush.bf16.msra.mxu0 %v751
    %2307 = vmatpush.bf16.msra.mxu0 %v747
    %2308 = vmatpush.bf16.msra.mxu0 %v743
    %2309 = vmatmul.bf16.gmra.mxu0 %v2287
    %v2310 = vpop.f32.mrf.mxu0
    %v2311 = vadd.f32 0.0, %v2310
    %v2312 = vpop.f32.mrf.mxu0
    %2313 = vdwg.mxu0
    %2314 = vmatpush.bf16.msra.mxu0 %v772
    %2315 = vmatpush.bf16.msra.mxu0 %v768
    %2316 = vmatpush.bf16.msra.mxu0 %v764
    %2317 = vmatpush.bf16.msra.mxu0 %v760
    %2318 = vmatpush.bf16.msra.mxu0 %v756
    %2319 = vmatpush.bf16.msra.mxu0 %v752
    %2320 = vmatpush.bf16.msra.mxu0 %v748
    %2321 = vmatpush.bf16.msra.mxu0 %v744
    %2322 = vmatmul.bf16.gmra.mxu0 %v2287
    %v2323 = vpop.f32.mrf.mxu0
    %v2324 = vadd.f32 0.0, %v2323
    %v2325 = vpop.f32.mrf.mxu0
    %2326 = vdwg.mxu0
    %2327 = vmatpush.bf16.msra.mxu0 %v773
    %2328 = vmatpush.bf16.msra.mxu0 %v769
    %2329 = vmatpush.bf16.msra.mxu0 %v765
    %2330 = vmatpush.bf16.msra.mxu0 %v761
    %2331 = vmatpush.bf16.msra.mxu0 %v757
    %2332 = vmatpush.bf16.msra.mxu0 %v753
    %2333 = vmatpush.bf16.msra.mxu0 %v749
    %2334 = vmatpush.bf16.msra.mxu0 %v745
    %2335 = vmatmul.bf16.gmra.mxu0 %v2287
    %v2336 = vpop.f32.mrf.mxu0
    %v2337 = vadd.f32 0.0, %v2336
    %v2338 = vpop.f32.mrf.mxu0
    %2339 = vdwg.mxu0
    %v2340 = vadd.f32 %v2283, %v2298
    %v2341 = vadd.f32 %v2284, %v2311
    %v2342 = vadd.f32 %v2285, %v2324
    %v2343 = vadd.f32 %v2286, %v2337
    %v2344 = vld [vmem:[#allocation2 + $0xa0] sm:$0xff]
    %v2345 = vld [vmem:[#allocation2 + $0xa8] sm:$0xff]
    %v2346 = vld [vmem:[#allocation2 + $0xb0] sm:$0xff]
    %v2347 = vld [vmem:[#allocation2 + $0xb8] sm:$0xff]
    %v2348 = vpack.c.bf16 %v2269, %v2269
    %2349 = vmatpush.bf16.msra.mxu0 %v990
    %2350 = vmatpush.bf16.msra.mxu0 %v986
    %2351 = vmatpush.bf16.msra.mxu0 %v982
    %2352 = vmatpush.bf16.msra.mxu0 %v978
    %2353 = vmatpush.bf16.msra.mxu0 %v974
    %2354 = vmatpush.bf16.msra.mxu0 %v970
    %2355 = vmatpush.bf16.msra.mxu0 %v966
    %2356 = vmatpush.bf16.msra.mxu0 %v962
    %2357 = vmatmul.bf16.gmra.mxu0 %v2348
    %v2358 = vpop.f32.mrf.mxu0
    %v2359 = vadd.f32 0.0, %v2358
    %v2360 = vpop.f32.mrf.mxu0
    %2361 = vdwg.mxu0
    %2362 = vmatpush.bf16.msra.mxu0 %v991
    %2363 = vmatpush.bf16.msra.mxu0 %v987
    %2364 = vmatpush.bf16.msra.mxu0 %v983
    %2365 = vmatpush.bf16.msra.mxu0 %v979
    %2366 = vmatpush.bf16.msra.mxu0 %v975
    %2367 = vmatpush.bf16.msra.mxu0 %v971
    %2368 = vmatpush.bf16.msra.mxu0 %v967
    %2369 = vmatpush.bf16.msra.mxu0 %v963
    %2370 = vmatmul.bf16.gmra.mxu0 %v2348
    %v2371 = vpop.f32.mrf.mxu0
    %v2372 = vadd.f32 0.0, %v2371
    %v2373 = vpop.f32.mrf.mxu0
    %2374 = vdwg.mxu0
    %2375 = vmatpush.bf16.msra.mxu0 %v992
    %2376 = vmatpush.bf16.msra.mxu0 %v988
    %2377 = vmatpush.bf16.msra.mxu0 %v984
    %2378 = vmatpush.bf16.msra.mxu0 %v980
    %2379 = vmatpush.bf16.msra.mxu0 %v976
    %2380 = vmatpush.bf16.msra.mxu0 %v972
    %2381 = vmatpush.bf16.msra.mxu0 %v968
    %2382 = vmatpush.bf16.msra.mxu0 %v964
    %2383 = vmatmul.bf16.gmra.mxu0 %v2348
    %v2384 = vpop.f32.mrf.mxu0
    %v2385 = vadd.f32 0.0, %v2384
    %v2386 = vpop.f32.mrf.mxu0
    %2387 = vdwg.mxu0
    %2388 = vmatpush.bf16.msra.mxu0 %v993
    %2389 = vmatpush.bf16.msra.mxu0 %v989
    %2390 = vmatpush.bf16.msra.mxu0 %v985
    %2391 = vmatpush.bf16.msra.mxu0 %v981
    %2392 = vmatpush.bf16.msra.mxu0 %v977
    %2393 = vmatpush.bf16.msra.mxu0 %v973
    %2394 = vmatpush.bf16.msra.mxu0 %v969
    %2395 = vmatpush.bf16.msra.mxu0 %v965
    %2396 = vmatmul.bf16.gmra.mxu0 %v2348
    %v2397 = vpop.f32.mrf.mxu0
    %v2398 = vadd.f32 0.0, %v2397
    %v2399 = vpop.f32.mrf.mxu0
    %2400 = vdwg.mxu0
    %v2401 = vadd.f32 %v2344, %v2359
    %v2402 = vadd.f32 %v2345, %v2372
    %v2403 = vadd.f32 %v2346, %v2385
    %v2404 = vadd.f32 %v2347, %v2398
    %v2405 = vxor.u32 %v2340, 2147483648
    %v2406 = vxor.u32 %v2341, 2147483648
    %v2407 = vxor.u32 %v2342, 2147483648
    %v2408 = vmul.f32 %v2405, 1.442695
    %v2409 = vpow.pop %v2408
    %v2410 = vmul.f32 %v2406, 1.442695
    %v2411 = vpow.pop %v2410
    %v2412 = vmul.f32 %v2407, 1.442695
    %v2413 = vpow.pop %v2412
    %v2414 = vadd.f32 %v2409, 1.0
    %v2415 = vadd.f32 %v2411, 1.0
    %v2416 = vadd.f32 %v2413, 1.0
    %v2417 = vrcp.pop %v2414
    %v2418 = vmul.f32 %v2414, %v2417
    %v2419 = vsub.f32 1.0, %v2418
    %v2420 = vmul.f32 %v2417, %v2419
    %v2421 = vadd.f32 %v2417, %v2420
    %vm2422 = vweird.f32 %v2414
    %vm2423 = vweird.f32 %v2417
    %vm2424 = vmor %vm2422, %vm2423
    %v2425 = vsel %vm2424, %v2417, %v2421
    %v2426 = vand.u32 2147483647, %v2414
    %vm2427 = vcmp.eq.f32.partialorder %v2426, 8.507059e+37
    %v2428 = vand.u32 %v2414, 2147483648
    %v2429 = vor.u32 1.1754944e-38, %v2428
    %v2430 = vsel %vm2427, %v2429, %v2425
    %v2431 = vmul.f32 1.0, %v2430
    %v2432 = vrcp.pop %v2415
    %v2433 = vmul.f32 %v2415, %v2432
    %v2434 = vsub.f32 1.0, %v2433
    %v2435 = vmul.f32 %v2432, %v2434
    %v2436 = vadd.f32 %v2432, %v2435
    %vm2437 = vweird.f32 %v2415
    %vm2438 = vweird.f32 %v2432
    %vm2439 = vmor %vm2437, %vm2438
    %v2440 = vsel %vm2439, %v2432, %v2436
    %v2441 = vand.u32 2147483647, %v2415
    %vm2442 = vcmp.eq.f32.partialorder %v2441, 8.507059e+37
    %v2443 = vand.u32 %v2415, 2147483648
    %v2444 = vor.u32 1.1754944e-38, %v2443
    %v2445 = vsel %vm2442, %v2444, %v2440
    %v2446 = vmul.f32 1.0, %v2445
    %v2447 = vrcp.pop %v2416
    %v2448 = vmul.f32 %v2416, %v2447
    %v2449 = vsub.f32 1.0, %v2448
    %v2450 = vmul.f32 %v2447, %v2449
    %v2451 = vadd.f32 %v2447, %v2450
    %vm2452 = vweird.f32 %v2416
    %vm2453 = vweird.f32 %v2447
    %vm2454 = vmor %vm2452, %vm2453
    %v2455 = vsel %vm2454, %v2447, %v2451
    %v2456 = vand.u32 2147483647, %v2416
    %vm2457 = vcmp.eq.f32.partialorder %v2456, 8.507059e+37
    %v2458 = vand.u32 %v2416, 2147483648
    %v2459 = vor.u32 1.1754944e-38, %v2458
    %v2460 = vsel %vm2457, %v2459, %v2455
    %v2461 = vmul.f32 1.0, %v2460
    %v2462 = vtanh.pop %v2343
    %v2463 = vmul.f32 %v2446, %v2202
    %v2464 = vmul.f32 %v2431, %v2462
    %v2465 = vadd.f32 %v2463, %v2464
    %v2466 = vtanh.pop %v2465
    %v2467 = vmul.f32 %v2461, %v2466
    %v2468 = vxor.u32 %v2401, 2147483648
    %v2469 = vxor.u32 %v2402, 2147483648
    %v2470 = vxor.u32 %v2403, 2147483648
    %v2471 = vmul.f32 %v2468, 1.442695
    %v2472 = vpow.pop %v2471
    %v2473 = vmul.f32 %v2469, 1.442695
    %v2474 = vpow.pop %v2473
    %v2475 = vmul.f32 %v2470, 1.442695
    %v2476 = vpow.pop %v2475
    %v2477 = vadd.f32 %v2472, 1.0
    %v2478 = vadd.f32 %v2474, 1.0
    %v2479 = vadd.f32 %v2476, 1.0
    %v2480 = vrcp.pop %v2477
    %v2481 = vmul.f32 %v2477, %v2480
    %v2482 = vsub.f32 1.0, %v2481
    %v2483 = vmul.f32 %v2480, %v2482
    %v2484 = vadd.f32 %v2480, %v2483
    %vm2485 = vweird.f32 %v2477
    %vm2486 = vweird.f32 %v2480
    %vm2487 = vmor %vm2485, %vm2486
    %v2488 = vsel %vm2487, %v2480, %v2484
    %v2489 = vand.u32 2147483647, %v2477
    %vm2490 = vcmp.eq.f32.partialorder %v2489, 8.507059e+37
    %v2491 = vand.u32 %v2477, 2147483648
    %v2492 = vor.u32 1.1754944e-38, %v2491
    %v2493 = vsel %vm2490, %v2492, %v2488
    %v2494 = vmul.f32 1.0, %v2493
    %v2495 = vrcp.pop %v2478
    %v2496 = vmul.f32 %v2478, %v2495
    %v2497 = vsub.f32 1.0, %v2496
    %v2498 = vmul.f32 %v2495, %v2497
    %v2499 = vadd.f32 %v2495, %v2498
    %vm2500 = vweird.f32 %v2478
    %vm2501 = vweird.f32 %v2495
    %vm2502 = vmor %vm2500, %vm2501
    %v2503 = vsel %vm2502, %v2495, %v2499
    %v2504 = vand.u32 2147483647, %v2478
    %vm2505 = vcmp.eq.f32.partialorder %v2504, 8.507059e+37
    %v2506 = vand.u32 %v2478, 2147483648
    %v2507 = vor.u32 1.1754944e-38, %v2506
    %v2508 = vsel %vm2505, %v2507, %v2503
    %v2509 = vmul.f32 1.0, %v2508
    %v2510 = vrcp.pop %v2479
    %v2511 = vmul.f32 %v2479, %v2510
    %v2512 = vsub.f32 1.0, %v2511
    %v2513 = vmul.f32 %v2510, %v2512
    %v2514 = vadd.f32 %v2510, %v2513
    %vm2515 = vweird.f32 %v2479
    %vm2516 = vweird.f32 %v2510
    %vm2517 = vmor %vm2515, %vm2516
    %v2518 = vsel %vm2517, %v2510, %v2514
    %v2519 = vand.u32 2147483647, %v2479
    %vm2520 = vcmp.eq.f32.partialorder %v2519, 8.507059e+37
    %v2521 = vand.u32 %v2479, 2147483648
    %v2522 = vor.u32 1.1754944e-38, %v2521
    %v2523 = vsel %vm2520, %v2522, %v2518
    %v2524 = vmul.f32 1.0, %v2523
    %v2525 = vtanh.pop %v2404
    %v2526 = vmul.f32 %v2509, %v2270
    %v2527 = vmul.f32 %v2494, %v2525
    %v2528 = vadd.f32 %v2526, %v2527
    %v2529 = vtanh.pop %v2528
    %v2530 = vmul.f32 %v2524, %v2529
    %v2531 = vmul.f32 %v2467, %v1739
    %v2532 = vmul.f32 %v2530, %v1738
    %v2533 = vmul.f32 %v2528, %v1738
    %v2534 = vld [vmem:[#allocation10 + $0x28] sm:$0xff]
    %v2535 = vmul.f32 %v2531, %v2534
    %v2536 = vadd.f32 %v2276, %v2535
    %v2537 = vld [vmem:[#allocation11 + $0x10] sm:$0xff]
    %v2538 = vmul.f32 %v2532, %v2537
    %v2539 = vadd.f32 %v2536, %v2538
    %v2540 = vld [vmem:[#allocation10 + $0x68] sm:$0xff]
    %v2541 = vmul.f32 %v2531, %v2540
    %v2542 = vadd.f32 %v2282, %v2541
    %v2543 = vld [vmem:[#allocation11 + $0x50] sm:$0xff]
    %v2544 = vmul.f32 %v2532, %v2543
    %v2545 = vadd.f32 %v2542, %v2544
    %v2546 = vld [vmem:[#allocation2 + $0x180] sm:$0xff]
    %v2547 = vld [vmem:[#allocation2 + $0x188] sm:$0xff]
    %v2548 = vld [vmem:[#allocation2 + $0x190] sm:$0xff]
    %v2549 = vld [vmem:[#allocation2 + $0x198] sm:$0xff]
    %v2550 = vpack.c.bf16 %v2467, %v2467
    %2551 = vmatpush.bf16.msra.mxu0 %v770
    %2552 = vmatpush.bf16.msra.mxu0 %v766
    %2553 = vmatpush.bf16.msra.mxu0 %v762
    %2554 = vmatpush.bf16.msra.mxu0 %v758
    %2555 = vmatpush.bf16.msra.mxu0 %v754
    %2556 = vmatpush.bf16.msra.mxu0 %v750
    %2557 = vmatpush.bf16.msra.mxu0 %v746
    %2558 = vmatpush.bf16.msra.mxu0 %v742
    %2559 = vmatmul.bf16.gmra.mxu0 %v2550
    %v2560 = vpop.f32.mrf.mxu0
    %v2561 = vadd.f32 0.0, %v2560
    %v2562 = vpop.f32.mrf.mxu0
    %2563 = vdwg.mxu0
    %2564 = vmatpush.bf16.msra.mxu0 %v771
    %2565 = vmatpush.bf16.msra.mxu0 %v767
    %2566 = vmatpush.bf16.msra.mxu0 %v763
    %2567 = vmatpush.bf16.msra.mxu0 %v759
    %2568 = vmatpush.bf16.msra.mxu0 %v755
    %2569 = vmatpush.bf16.msra.mxu0 %v751
    %2570 = vmatpush.bf16.msra.mxu0 %v747
    %2571 = vmatpush.bf16.msra.mxu0 %v743
    %2572 = vmatmul.bf16.gmra.mxu0 %v2550
    %v2573 = vpop.f32.mrf.mxu0
    %v2574 = vadd.f32 0.0, %v2573
    %v2575 = vpop.f32.mrf.mxu0
    %2576 = vdwg.mxu0
    %2577 = vmatpush.bf16.msra.mxu0 %v772
    %2578 = vmatpush.bf16.msra.mxu0 %v768
    %2579 = vmatpush.bf16.msra.mxu0 %v764
    %2580 = vmatpush.bf16.msra.mxu0 %v760
    %2581 = vmatpush.bf16.msra.mxu0 %v756
    %2582 = vmatpush.bf16.msra.mxu0 %v752
    %2583 = vmatpush.bf16.msra.mxu0 %v748
    %2584 = vmatpush.bf16.msra.mxu0 %v744
    %2585 = vmatmul.bf16.gmra.mxu0 %v2550
    %v2586 = vpop.f32.mrf.mxu0
    %v2587 = vadd.f32 0.0, %v2586
    %v2588 = vpop.f32.mrf.mxu0
    %2589 = vdwg.mxu0
    %2590 = vmatpush.bf16.msra.mxu0 %v773
    %2591 = vmatpush.bf16.msra.mxu0 %v769
    %2592 = vmatpush.bf16.msra.mxu0 %v765
    %2593 = vmatpush.bf16.msra.mxu0 %v761
    %2594 = vmatpush.bf16.msra.mxu0 %v757
    %2595 = vmatpush.bf16.msra.mxu0 %v753
    %2596 = vmatpush.bf16.msra.mxu0 %v749
    %2597 = vmatpush.bf16.msra.mxu0 %v745
    %2598 = vmatmul.bf16.gmra.mxu0 %v2550
    %v2599 = vpop.f32.mrf.mxu0
    %v2600 = vadd.f32 0.0, %v2599
    %v2601 = vpop.f32.mrf.mxu0
    %2602 = vdwg.mxu0
    %v2603 = vadd.f32 %v2546, %v2561
    %v2604 = vadd.f32 %v2547, %v2574
    %v2605 = vadd.f32 %v2548, %v2587
    %v2606 = vadd.f32 %v2549, %v2600
    %v2607 = vld [vmem:[#allocation2 + $0x60] sm:$0xff]
    %v2608 = vld [vmem:[#allocation2 + $0x68] sm:$0xff]
    %v2609 = vld [vmem:[#allocation2 + $0x70] sm:$0xff]
    %v2610 = vld [vmem:[#allocation2 + $0x78] sm:$0xff]
    %v2611 = vpack.c.bf16 %v2532, %v2532
    %2612 = vmatpush.bf16.msra.mxu0 %v990
    %2613 = vmatpush.bf16.msra.mxu0 %v986
    %2614 = vmatpush.bf16.msra.mxu0 %v982
    %2615 = vmatpush.bf16.msra.mxu0 %v978
    %2616 = vmatpush.bf16.msra.mxu0 %v974
    %2617 = vmatpush.bf16.msra.mxu0 %v970
    %2618 = vmatpush.bf16.msra.mxu0 %v966
    %2619 = vmatpush.bf16.msra.mxu0 %v962
    %2620 = vmatmul.bf16.gmra.mxu0 %v2611
    %v2621 = vpop.f32.mrf.mxu0
    %v2622 = vadd.f32 0.0, %v2621
    %v2623 = vpop.f32.mrf.mxu0
    %2624 = vdwg.mxu0
    %2625 = vmatpush.bf16.msra.mxu0 %v991
    %2626 = vmatpush.bf16.msra.mxu0 %v987
    %2627 = vmatpush.bf16.msra.mxu0 %v983
    %2628 = vmatpush.bf16.msra.mxu0 %v979
    %2629 = vmatpush.bf16.msra.mxu0 %v975
    %2630 = vmatpush.bf16.msra.mxu0 %v971
    %2631 = vmatpush.bf16.msra.mxu0 %v967
    %2632 = vmatpush.bf16.msra.mxu0 %v963
    %2633 = vmatmul.bf16.gmra.mxu0 %v2611
    %v2634 = vpop.f32.mrf.mxu0
    %v2635 = vadd.f32 0.0, %v2634
    %v2636 = vpop.f32.mrf.mxu0
    %2637 = vdwg.mxu0
    %2638 = vmatpush.bf16.msra.mxu0 %v992
    %2639 = vmatpush.bf16.msra.mxu0 %v988
    %2640 = vmatpush.bf16.msra.mxu0 %v984
    %2641 = vmatpush.bf16.msra.mxu0 %v980
    %2642 = vmatpush.bf16.msra.mxu0 %v976
    %2643 = vmatpush.bf16.msra.mxu0 %v972
    %2644 = vmatpush.bf16.msra.mxu0 %v968
    %2645 = vmatpush.bf16.msra.mxu0 %v964
    %2646 = vmatmul.bf16.gmra.mxu0 %v2611
    %v2647 = vpop.f32.mrf.mxu0
    %v2648 = vadd.f32 0.0, %v2647
    %v2649 = vpop.f32.mrf.mxu0
    %2650 = vdwg.mxu0
    %2651 = vmatpush.bf16.msra.mxu0 %v993
    %2652 = vmatpush.bf16.msra.mxu0 %v989
    %2653 = vmatpush.bf16.msra.mxu0 %v985
    %2654 = vmatpush.bf16.msra.mxu0 %v981
    %2655 = vmatpush.bf16.msra.mxu0 %v977
    %2656 = vmatpush.bf16.msra.mxu0 %v973
    %2657 = vmatpush.bf16.msra.mxu0 %v969
    %2658 = vmatpush.bf16.msra.mxu0 %v965
    %2659 = vmatmul.bf16.gmra.mxu0 %v2611
    %v2660 = vpop.f32.mrf.mxu0
    %v2661 = vadd.f32 0.0, %v2660
    %v2662 = vpop.f32.mrf.mxu0
    %2663 = vdwg.mxu0
    %v2664 = vadd.f32 %v2607, %v2622
    %v2665 = vadd.f32 %v2608, %v2635
    %v2666 = vadd.f32 %v2609, %v2648
    %v2667 = vadd.f32 %v2610, %v2661
    %v2668 = vxor.u32 %v2603, 2147483648
    %v2669 = vxor.u32 %v2604, 2147483648
    %v2670 = vxor.u32 %v2605, 2147483648
    %v2671 = vmul.f32 %v2668, 1.442695
    %v2672 = vpow.pop %v2671
    %v2673 = vmul.f32 %v2669, 1.442695
    %v2674 = vpow.pop %v2673
    %v2675 = vmul.f32 %v2670, 1.442695
    %v2676 = vpow.pop %v2675
    %v2677 = vadd.f32 %v2672, 1.0
    %v2678 = vadd.f32 %v2674, 1.0
    %v2679 = vadd.f32 %v2676, 1.0
    %v2680 = vrcp.pop %v2677
    %v2681 = vmul.f32 %v2677, %v2680
    %v2682 = vsub.f32 1.0, %v2681
    %v2683 = vmul.f32 %v2680, %v2682
    %v2684 = vadd.f32 %v2680, %v2683
    %vm2685 = vweird.f32 %v2677
    %vm2686 = vweird.f32 %v2680
    %vm2687 = vmor %vm2685, %vm2686
    %v2688 = vsel %vm2687, %v2680, %v2684
    %v2689 = vand.u32 2147483647, %v2677
    %vm2690 = vcmp.eq.f32.partialorder %v2689, 8.507059e+37
    %v2691 = vand.u32 %v2677, 2147483648
    %v2692 = vor.u32 1.1754944e-38, %v2691
    %v2693 = vsel %vm2690, %v2692, %v2688
    %v2694 = vmul.f32 1.0, %v2693
    %v2695 = vrcp.pop %v2678
    %v2696 = vmul.f32 %v2678, %v2695
    %v2697 = vsub.f32 1.0, %v2696
    %v2698 = vmul.f32 %v2695, %v2697
    %v2699 = vadd.f32 %v2695, %v2698
    %vm2700 = vweird.f32 %v2678
    %vm2701 = vweird.f32 %v2695
    %vm2702 = vmor %vm2700, %vm2701
    %v2703 = vsel %vm2702, %v2695, %v2699
    %v2704 = vand.u32 2147483647, %v2678
    %vm2705 = vcmp.eq.f32.partialorder %v2704, 8.507059e+37
    %v2706 = vand.u32 %v2678, 2147483648
    %v2707 = vor.u32 1.1754944e-38, %v2706
    %v2708 = vsel %vm2705, %v2707, %v2703
    %v2709 = vmul.f32 1.0, %v2708
    %v2710 = vrcp.pop %v2679
    %v2711 = vmul.f32 %v2679, %v2710
    %v2712 = vsub.f32 1.0, %v2711
    %v2713 = vmul.f32 %v2710, %v2712
    %v2714 = vadd.f32 %v2710, %v2713
    %vm2715 = vweird.f32 %v2679
    %vm2716 = vweird.f32 %v2710
    %vm2717 = vmor %vm2715, %vm2716
    %v2718 = vsel %vm2717, %v2710, %v2714
    %v2719 = vand.u32 2147483647, %v2679
    %vm2720 = vcmp.eq.f32.partialorder %v2719, 8.507059e+37
    %v2721 = vand.u32 %v2679, 2147483648
    %v2722 = vor.u32 1.1754944e-38, %v2721
    %v2723 = vsel %vm2720, %v2722, %v2718
    %v2724 = vmul.f32 1.0, %v2723
    %v2725 = vtanh.pop %v2606
    %v2726 = vmul.f32 %v2709, %v2465
    %v2727 = vmul.f32 %v2694, %v2725
    %v2728 = vadd.f32 %v2726, %v2727
    %v2729 = vtanh.pop %v2728
    %v2730 = vmul.f32 %v2724, %v2729
    %v2731 = vxor.u32 %v2664, 2147483648
    %v2732 = vxor.u32 %v2665, 2147483648
    %v2733 = vxor.u32 %v2666, 2147483648
    %v2734 = vmul.f32 %v2731, 1.442695
    %v2735 = vpow.pop %v2734
    %v2736 = vmul.f32 %v2732, 1.442695
    %v2737 = vpow.pop %v2736
    %v2738 = vmul.f32 %v2733, 1.442695
    %v2739 = vpow.pop %v2738
    %v2740 = vadd.f32 %v2735, 1.0
    %v2741 = vadd.f32 %v2737, 1.0
    %v2742 = vadd.f32 %v2739, 1.0
    %v2743 = vrcp.pop %v2740
    %v2744 = vmul.f32 %v2740, %v2743
    %v2745 = vsub.f32 1.0, %v2744
    %v2746 = vmul.f32 %v2743, %v2745
    %v2747 = vadd.f32 %v2743, %v2746
    %vm2748 = vweird.f32 %v2740
    %vm2749 = vweird.f32 %v2743
    %vm2750 = vmor %vm2748, %vm2749
    %v2751 = vsel %vm2750, %v2743, %v2747
    %v2752 = vand.u32 2147483647, %v2740
    %vm2753 = vcmp.eq.f32.partialorder %v2752, 8.507059e+37
    %v2754 = vand.u32 %v2740, 2147483648
    %v2755 = vor.u32 1.1754944e-38, %v2754
    %v2756 = vsel %vm2753, %v2755, %v2751
    %v2757 = vmul.f32 1.0, %v2756
    %v2758 = vrcp.pop %v2741
    %v2759 = vmul.f32 %v2741, %v2758
    %v2760 = vsub.f32 1.0, %v2759
    %v2761 = vmul.f32 %v2758, %v2760
    %v2762 = vadd.f32 %v2758, %v2761
    %vm2763 = vweird.f32 %v2741
    %vm2764 = vweird.f32 %v2758
    %vm2765 = vmor %vm2763, %vm2764
    %v2766 = vsel %vm2765, %v2758, %v2762
    %v2767 = vand.u32 2147483647, %v2741
    %vm2768 = vcmp.eq.f32.partialorder %v2767, 8.507059e+37
    %v2769 = vand.u32 %v2741, 2147483648
    %v2770 = vor.u32 1.1754944e-38, %v2769
    %v2771 = vsel %vm2768, %v2770, %v2766
    %v2772 = vmul.f32 1.0, %v2771
    %v2773 = vrcp.pop %v2742
    %v2774 = vmul.f32 %v2742, %v2773
    %v2775 = vsub.f32 1.0, %v2774
    %v2776 = vmul.f32 %v2773, %v2775
    %v2777 = vadd.f32 %v2773, %v2776
    %vm2778 = vweird.f32 %v2742
    %vm2779 = vweird.f32 %v2773
    %vm2780 = vmor %vm2778, %vm2779
    %v2781 = vsel %vm2780, %v2773, %v2777
    %v2782 = vand.u32 2147483647, %v2742
    %vm2783 = vcmp.eq.f32.partialorder %v2782, 8.507059e+37
    %v2784 = vand.u32 %v2742, 2147483648
    %v2785 = vor.u32 1.1754944e-38, %v2784
    %v2786 = vsel %vm2783, %v2785, %v2781
    %v2787 = vmul.f32 1.0, %v2786
    %v2788 = vtanh.pop %v2667
    %v2789 = vmul.f32 %v2772, %v2533
    %v2790 = vmul.f32 %v2757, %v2788
    %v2791 = vadd.f32 %v2789, %v2790
    %v2792 = vtanh.pop %v2791
    %v2793 = vmul.f32 %v2787, %v2792
    %v2794 = vmul.f32 %v2730, %v1474
    %v2795 = vmul.f32 %v2793, %v1473
    %v2796 = vmul.f32 %v2791, %v1473
    %v2797 = vld [vmem:[#allocation10 + $0x30] sm:$0xff]
    %v2798 = vmul.f32 %v2794, %v2797
    %v2799 = vadd.f32 %v2539, %v2798
    %v2800 = vld [vmem:[#allocation11 + $0x8] sm:$0xff]
    %v2801 = vmul.f32 %v2795, %v2800
    %v2802 = vadd.f32 %v2799, %v2801
    %v2803 = vld [vmem:[#allocation10 + $0x70] sm:$0xff]
    %v2804 = vmul.f32 %v2794, %v2803
    %v2805 = vadd.f32 %v2545, %v2804
    %v2806 = vld [vmem:[#allocation11 + $0x48] sm:$0xff]
    %v2807 = vmul.f32 %v2795, %v2806
    %v2808 = vadd.f32 %v2805, %v2807
    %v2809 = vld [vmem:[#allocation2 + $0x1c0] sm:$0xff]
    %v2810 = vld [vmem:[#allocation2 + $0x1c8] sm:$0xff]
    %v2811 = vld [vmem:[#allocation2 + $0x1d0] sm:$0xff]
    %v2812 = vld [vmem:[#allocation2 + $0x1d8] sm:$0xff]
    %v2813 = vpack.c.bf16 %v2730, %v2730
    %2814 = vmatpush.bf16.msra.mxu0 %v770
    %2815 = vmatpush.bf16.msra.mxu0 %v766
    %2816 = vmatpush.bf16.msra.mxu0 %v762
    %2817 = vmatpush.bf16.msra.mxu0 %v758
    %2818 = vmatpush.bf16.msra.mxu0 %v754
    %2819 = vmatpush.bf16.msra.mxu0 %v750
    %2820 = vmatpush.bf16.msra.mxu0 %v746
    %2821 = vmatpush.bf16.msra.mxu0 %v742
    %2822 = vmatmul.bf16.gmra.mxu0 %v2813
    %v2823 = vpop.f32.mrf.mxu0
    %v2824 = vadd.f32 0.0, %v2823
    %v2825 = vpop.f32.mrf.mxu0
    %2826 = vdwg.mxu0
    %2827 = vmatpush.bf16.msra.mxu0 %v771
    %2828 = vmatpush.bf16.msra.mxu0 %v767
    %2829 = vmatpush.bf16.msra.mxu0 %v763
    %2830 = vmatpush.bf16.msra.mxu0 %v759
    %2831 = vmatpush.bf16.msra.mxu0 %v755
    %2832 = vmatpush.bf16.msra.mxu0 %v751
    %2833 = vmatpush.bf16.msra.mxu0 %v747
    %2834 = vmatpush.bf16.msra.mxu0 %v743
    %2835 = vmatmul.bf16.gmra.mxu0 %v2813
    %v2836 = vpop.f32.mrf.mxu0
    %v2837 = vadd.f32 0.0, %v2836
    %v2838 = vpop.f32.mrf.mxu0
    %2839 = vdwg.mxu0
    %2840 = vmatpush.bf16.msra.mxu0 %v772
    %2841 = vmatpush.bf16.msra.mxu0 %v768
    %2842 = vmatpush.bf16.msra.mxu0 %v764
    %2843 = vmatpush.bf16.msra.mxu0 %v760
    %2844 = vmatpush.bf16.msra.mxu0 %v756
    %2845 = vmatpush.bf16.msra.mxu0 %v752
    %2846 = vmatpush.bf16.msra.mxu0 %v748
    %2847 = vmatpush.bf16.msra.mxu0 %v744
    %2848 = vmatmul.bf16.gmra.mxu0 %v2813
    %v2849 = vpop.f32.mrf.mxu0
    %v2850 = vadd.f32 0.0, %v2849
    %v2851 = vpop.f32.mrf.mxu0
    %2852 = vdwg.mxu0
    %2853 = vmatpush.bf16.msra.mxu0 %v773
    %2854 = vmatpush.bf16.msra.mxu0 %v769
    %2855 = vmatpush.bf16.msra.mxu0 %v765
    %2856 = vmatpush.bf16.msra.mxu0 %v761
    %2857 = vmatpush.bf16.msra.mxu0 %v757
    %2858 = vmatpush.bf16.msra.mxu0 %v753
    %2859 = vmatpush.bf16.msra.mxu0 %v749
    %2860 = vmatpush.bf16.msra.mxu0 %v745
    %2861 = vmatmul.bf16.gmra.mxu0 %v2813
    %v2862 = vpop.f32.mrf.mxu0
    %v2863 = vadd.f32 0.0, %v2862
    %v2864 = vpop.f32.mrf.mxu0
    %2865 = vdwg.mxu0
    %v2866 = vadd.f32 %v2809, %v2824
    %v2867 = vadd.f32 %v2810, %v2837
    %v2868 = vadd.f32 %v2811, %v2850
    %v2869 = vadd.f32 %v2812, %v2863
    %v2870 = vld [vmem:[#allocation2 + $0x20] sm:$0xff]
    %v2871 = vld [vmem:[#allocation2 + $0x28] sm:$0xff]
    %v2872 = vld [vmem:[#allocation2 + $0x30] sm:$0xff]
    %v2873 = vld [vmem:[#allocation2 + $0x38] sm:$0xff]
    %v2874 = vpack.c.bf16 %v2795, %v2795
    %2875 = vmatpush.bf16.msra.mxu0 %v990
    %2876 = vmatpush.bf16.msra.mxu0 %v986
    %2877 = vmatpush.bf16.msra.mxu0 %v982
    %2878 = vmatpush.bf16.msra.mxu0 %v978
    %2879 = vmatpush.bf16.msra.mxu0 %v974
    %2880 = vmatpush.bf16.msra.mxu0 %v970
    %2881 = vmatpush.bf16.msra.mxu0 %v966
    %2882 = vmatpush.bf16.msra.mxu0 %v962
    %2883 = vmatmul.bf16.gmra.mxu0 %v2874
    %v2884 = vpop.f32.mrf.mxu0
    %v2885 = vadd.f32 0.0, %v2884
    %v2886 = vpop.f32.mrf.mxu0
    %2887 = vdwg.mxu0
    %2888 = vmatpush.bf16.msra.mxu0 %v991
    %2889 = vmatpush.bf16.msra.mxu0 %v987
    %2890 = vmatpush.bf16.msra.mxu0 %v983
    %2891 = vmatpush.bf16.msra.mxu0 %v979
    %2892 = vmatpush.bf16.msra.mxu0 %v975
    %2893 = vmatpush.bf16.msra.mxu0 %v971
    %2894 = vmatpush.bf16.msra.mxu0 %v967
    %2895 = vmatpush.bf16.msra.mxu0 %v963
    %2896 = vmatmul.bf16.gmra.mxu0 %v2874
    %v2897 = vpop.f32.mrf.mxu0
    %v2898 = vadd.f32 0.0, %v2897
    %v2899 = vpop.f32.mrf.mxu0
    %2900 = vdwg.mxu0
    %2901 = vmatpush.bf16.msra.mxu0 %v992
    %2902 = vmatpush.bf16.msra.mxu0 %v988
    %2903 = vmatpush.bf16.msra.mxu0 %v984
    %2904 = vmatpush.bf16.msra.mxu0 %v980
    %2905 = vmatpush.bf16.msra.mxu0 %v976
    %2906 = vmatpush.bf16.msra.mxu0 %v972
    %2907 = vmatpush.bf16.msra.mxu0 %v968
    %2908 = vmatpush.bf16.msra.mxu0 %v964
    %2909 = vmatmul.bf16.gmra.mxu0 %v2874
    %v2910 = vpop.f32.mrf.mxu0
    %v2911 = vadd.f32 0.0, %v2910
    %v2912 = vpop.f32.mrf.mxu0
    %2913 = vdwg.mxu0
    %2914 = vmatpush.bf16.msra.mxu0 %v993
    %2915 = vmatpush.bf16.msra.mxu0 %v989
    %2916 = vmatpush.bf16.msra.mxu0 %v985
    %2917 = vmatpush.bf16.msra.mxu0 %v981
    %2918 = vmatpush.bf16.msra.mxu0 %v977
    %2919 = vmatpush.bf16.msra.mxu0 %v973
    %2920 = vmatpush.bf16.msra.mxu0 %v969
    %2921 = vmatpush.bf16.msra.mxu0 %v965
    %2922 = vmatmul.bf16.gmra.mxu0 %v2874
    %v2923 = vpop.f32.mrf.mxu0
    %v2924 = vadd.f32 0.0, %v2923
    %v2925 = vpop.f32.mrf.mxu0
    %2926 = vdwg.mxu0
    %v2927 = vadd.f32 %v2870, %v2885
    %v2928 = vadd.f32 %v2871, %v2898
    %v2929 = vadd.f32 %v2872, %v2911
    %v2930 = vadd.f32 %v2873, %v2924
    %v2931 = vxor.u32 %v2866, 2147483648
    %v2932 = vxor.u32 %v2867, 2147483648
    %v2933 = vxor.u32 %v2868, 2147483648
    %v2934 = vmul.f32 %v2931, 1.442695
    %v2935 = vpow.pop %v2934
    %v2936 = vmul.f32 %v2932, 1.442695
    %v2937 = vpow.pop %v2936
    %v2938 = vmul.f32 %v2933, 1.442695
    %v2939 = vpow.pop %v2938
    %v2940 = vadd.f32 %v2935, 1.0
    %v2941 = vadd.f32 %v2937, 1.0
    %v2942 = vadd.f32 %v2939, 1.0
    %v2943 = vrcp.pop %v2940
    %v2944 = vmul.f32 %v2940, %v2943
    %v2945 = vsub.f32 1.0, %v2944
    %v2946 = vmul.f32 %v2943, %v2945
    %v2947 = vadd.f32 %v2943, %v2946
    %vm2948 = vweird.f32 %v2940
    %vm2949 = vweird.f32 %v2943
    %vm2950 = vmor %vm2948, %vm2949
    %v2951 = vsel %vm2950, %v2943, %v2947
    %v2952 = vand.u32 2147483647, %v2940
    %vm2953 = vcmp.eq.f32.partialorder %v2952, 8.507059e+37
    %v2954 = vand.u32 %v2940, 2147483648
    %v2955 = vor.u32 1.1754944e-38, %v2954
    %v2956 = vsel %vm2953, %v2955, %v2951
    %v2957 = vmul.f32 1.0, %v2956
    %v2958 = vrcp.pop %v2941
    %v2959 = vmul.f32 %v2941, %v2958
    %v2960 = vsub.f32 1.0, %v2959
    %v2961 = vmul.f32 %v2958, %v2960
    %v2962 = vadd.f32 %v2958, %v2961
    %vm2963 = vweird.f32 %v2941
    %vm2964 = vweird.f32 %v2958
    %vm2965 = vmor %vm2963, %vm2964
    %v2966 = vsel %vm2965, %v2958, %v2962
    %v2967 = vand.u32 2147483647, %v2941
    %vm2968 = vcmp.eq.f32.partialorder %v2967, 8.507059e+37
    %v2969 = vand.u32 %v2941, 2147483648
    %v2970 = vor.u32 1.1754944e-38, %v2969
    %v2971 = vsel %vm2968, %v2970, %v2966
    %v2972 = vmul.f32 1.0, %v2971
    %v2973 = vrcp.pop %v2942
    %v2974 = vmul.f32 %v2942, %v2973
    %v2975 = vsub.f32 1.0, %v2974
    %v2976 = vmul.f32 %v2973, %v2975
    %v2977 = vadd.f32 %v2973, %v2976
    %vm2978 = vweird.f32 %v2942
    %vm2979 = vweird.f32 %v2973
    %vm2980 = vmor %vm2978, %vm2979
    %v2981 = vsel %vm2980, %v2973, %v2977
    %v2982 = vand.u32 2147483647, %v2942
    %vm2983 = vcmp.eq.f32.partialorder %v2982, 8.507059e+37
    %v2984 = vand.u32 %v2942, 2147483648
    %v2985 = vor.u32 1.1754944e-38, %v2984
    %v2986 = vsel %vm2983, %v2985, %v2981
    %v2987 = vmul.f32 1.0, %v2986
    %v2988 = vtanh.pop %v2869
    %v2989 = vmul.f32 %v2972, %v2728
    %v2990 = vmul.f32 %v2957, %v2988
    %v2991 = vadd.f32 %v2989, %v2990
    %v2992 = vtanh.pop %v2991
    %v2993 = vmul.f32 %v2987, %v2992
    %v2994 = vxor.u32 %v2927, 2147483648
    %v2995 = vxor.u32 %v2928, 2147483648
    %v2996 = vxor.u32 %v2929, 2147483648
    %v2997 = vmul.f32 %v2994, 1.442695
    %v2998 = vpow.pop %v2997
    %v2999 = vmul.f32 %v2995, 1.442695
    %v3000 = vpow.pop %v2999
    %v3001 = vmul.f32 %v2996, 1.442695
    %v3002 = vpow.pop %v3001
    %v3003 = vadd.f32 %v2998, 1.0
    %v3004 = vadd.f32 %v3000, 1.0
    %v3005 = vadd.f32 %v3002, 1.0
    %v3006 = vrcp.pop %v3003
    %v3007 = vmul.f32 %v3003, %v3006
    %v3008 = vsub.f32 1.0, %v3007
    %v3009 = vmul.f32 %v3006, %v3008
    %v3010 = vadd.f32 %v3006, %v3009
    %vm3011 = vweird.f32 %v3003
    %vm3012 = vweird.f32 %v3006
    %vm3013 = vmor %vm3011, %vm3012
    %v3014 = vsel %vm3013, %v3006, %v3010
    %v3015 = vand.u32 2147483647, %v3003
    %vm3016 = vcmp.eq.f32.partialorder %v3015, 8.507059e+37
    %v3017 = vand.u32 %v3003, 2147483648
    %v3018 = vor.u32 1.1754944e-38, %v3017
    %v3019 = vsel %vm3016, %v3018, %v3014
    %v3020 = vmul.f32 1.0, %v3019
    %v3021 = vrcp.pop %v3004
    %v3022 = vmul.f32 %v3004, %v3021
    %v3023 = vsub.f32 1.0, %v3022
    %v3024 = vmul.f32 %v3021, %v3023
    %v3025 = vadd.f32 %v3021, %v3024
    %vm3026 = vweird.f32 %v3004
    %vm3027 = vweird.f32 %v3021
    %vm3028 = vmor %vm3026, %vm3027
    %v3029 = vsel %vm3028, %v3021, %v3025
    %v3030 = vand.u32 2147483647, %v3004
    %vm3031 = vcmp.eq.f32.partialorder %v3030, 8.507059e+37
    %v3032 = vand.u32 %v3004, 2147483648
    %v3033 = vor.u32 1.1754944e-38, %v3032
    %v3034 = vsel %vm3031, %v3033, %v3029
    %v3035 = vmul.f32 1.0, %v3034
    %v3036 = vrcp.pop %v3005
    %v3037 = vmul.f32 %v3005, %v3036
    %v3038 = vsub.f32 1.0, %v3037
    %v3039 = vmul.f32 %v3036, %v3038
    %v3040 = vadd.f32 %v3036, %v3039
    %vm3041 = vweird.f32 %v3005
    %vm3042 = vweird.f32 %v3036
    %vm3043 = vmor %vm3041, %vm3042
    %v3044 = vsel %vm3043, %v3036, %v3040
    %v3045 = vand.u32 2147483647, %v3005
    %vm3046 = vcmp.eq.f32.partialorder %v3045, 8.507059e+37
    %v3047 = vand.u32 %v3005, 2147483648
    %v3048 = vor.u32 1.1754944e-38, %v3047
    %v3049 = vsel %vm3046, %v3048, %v3044
    %v3050 = vmul.f32 1.0, %v3049
    %v3051 = vtanh.pop %v2930
    %v3052 = vmul.f32 %v3035, %v2796
    %v3053 = vmul.f32 %v3020, %v3051
    %v3054 = vadd.f32 %v3052, %v3053
    %v3055 = vtanh.pop %v3054
    %v3056 = vmul.f32 %v3050, %v3055
    %v3057 = vmul.f32 %v2993, %v1209
    %v3058 = vmul.f32 %v3056, %v1208
    %v3059 = vld [vmem:[#allocation10 + $0x38] sm:$0xff]
    %v3060 = vmul.f32 %v3057, %v3059
    %v3061 = vadd.f32 %v2802, %v3060
    %v3062 = vld [vmem:[#allocation11] sm:$0xff]
    %v3063 = vmul.f32 %v3058, %v3062
    %v3064 = vadd.f32 %v3061, %v3063
    %v3065 = vld [vmem:[#allocation10 + $0x78] sm:$0xff]
    %v3066 = vmul.f32 %v3057, %v3065
    %v3067 = vadd.f32 %v2808, %v3066
    %v3068 = vld [vmem:[#allocation11 + $0x40] sm:$0xff]
    %v3069 = vmul.f32 %v3058, %v3068
    %v3070 = vadd.f32 %v3067, %v3069
    %3071 = vadd.xlane.f32.xlu0 %v3064
    %v3072 = vpop.xlane.xlu0 %3071
    %3073 = vadd.xlane.f32.xlu0 %v3070
    %v3074 = vpop.xlane.xlu0 %3073
    %vm3075 = vcmask 7168
    %v3076 = vsel %vm3075, %v3072, %v3074
    %v3077 = vld [vmem:[%s8] sm:$0x1]
    %v3079 = vperm.slane %v3077, 0
    %v3081 = vadd.f32 %v3076, %v3079
    %vm3082 = vcmask 15360
    %3083 = vst.msk [vmem:[%s9] sm:$0xff] %vm3082, %v3081
    // Predicated region
    $region62: #{tpu_custom_call.1} parent=1 // pred_check
      _
    $region63: #{tpu_custom_call.1} parent=1 // pred_check_branch
      %3085 = sbr.rel (0) target = $region65
    $region64: #{tpu_custom_call.1} parent=1 // pred_region
      _
    $region65: #{tpu_custom_call.1} parent=1 // pred_fallthru
      _
    // Predicated region
    $region66: #{tpu_custom_call.1} parent=1 // pred_check
      _
    $region67: #{tpu_custom_call.1} parent=1 // pred_check_branch
      %3087 = sbr.rel (0) target = $region69
    $region68: #{tpu_custom_call.1} parent=1 // pred_region
      _
    $region69: #{tpu_custom_call.1} parent=1 // pred_fallthru
      _
    %3088 = vsyncpa [#allocation4], 1
    %3089 = vsyncpa [#allocation6], 1
    %3090 = vsyncpa [#allocation9], 1
    %3091 = vsyncpa [#allocation12], 1

</llo_original>
